<compile_context>
chip_gen: v5e
topology: v5e:2x2
jax: 0.10.0
libtpu: 0.0.40
codegen_flags: <defaults>
</compile_context>

<pallas_src>
import itertools

import jax
import jax.numpy as jnp
from jax.experimental import pallas as pl
from jax.experimental.pallas import tpu as pltpu

_LANE = 128      # lane width: padding granularity for Cout and the contraction dim
_MAX_TM = 1024   # max im2col rows per grid step (large tiles amortize per-step overhead)


def _round_up(x, m):
    return ((x + m - 1) // m) * m


# ----------------------------------------------------------------------------- Pallas kernel
def _gemm_relu_kernel(t_ref, w_ref, o_ref):
    """o[m, :] = relu(taps[m, :] @ w)  -- taps folded (K=27*Cin) into one MXU contraction."""
    acc = jnp.dot(t_ref[...], w_ref[...], preferred_element_type=jnp.float32)
    o_ref[...] = jnp.maximum(acc, 0.0).astype(o_ref.dtype)


def _matmul_relu(taps, w, out_dtype=jnp.bfloat16):
    """taps: (M_pad, Kc_pad) bf16, w: (Kc_pad, Cout_pad) bf16 -> (M_pad, Cout_pad)."""
    M_pad, Kc = taps.shape
    Cout_pad = w.shape[-1]
    tm = min(_MAX_TM, M_pad)
    assert M_pad % tm == 0 and Cout_pad % _LANE == 0
    return pl.pallas_call(
        _gemm_relu_kernel,
        out_shape=jax.ShapeDtypeStruct((M_pad, Cout_pad), out_dtype),
        grid_spec=pltpu.PrefetchScalarGridSpec(
            num_scalar_prefetch=0,
            grid=(M_pad // tm,),
            in_specs=[
                pl.BlockSpec((tm, Kc), lambda m: (m, 0)),
                # weight: full-array block, constant index -> fetched once, stays resident
                pl.BlockSpec((Kc, Cout_pad), lambda m: (0, 0)),
            ],
            out_specs=pl.BlockSpec((tm, Cout_pad), lambda m: (m, 0)),
        ),
        compiler_params=pltpu.CompilerParams(
            # single data-parallel axis: sharded across the 2 TensorCores on v7x
            dimension_semantics=("parallel",)),
    )(taps, w)


# ----------------------------------------------------------------------------- conv wrappers
def _conv3d_core_relu(x, w, stride, pad_lo, pad_hi):
    """3-D conv (kernel 3, no bias) + ReLU via folded im2col GEMM on the MXU."""
    x = x.astype(jnp.bfloat16)
    B, D, H, W, Cin = x.shape
    Cout = w.shape[-1]
    xp = jnp.pad(x, ((0, 0),
                     (pad_lo[0], pad_hi[0]),
                     (pad_lo[1], pad_hi[1]),
                     (pad_lo[2], pad_hi[2]),
                     (0, 0)))
    Do, Ho, Wo = [(dim + lo + hi - 3) // s + 1
                  for dim, lo, hi, s in zip((D, H, W), pad_lo, pad_hi, stride)]
    sd, sh, sw = stride

    cols = []
    for kd, kh, kw in itertools.product(range(3), repeat=3):
        sl = xp[:,
                kd: kd + sd * (Do - 1) + 1: sd,
                kh: kh + sh * (Ho - 1) + 1: sh,
                kw: kw + sw * (Wo - 1) + 1: sw,
                :]
        cols.append(sl.reshape(-1, Cin))
    taps = jnp.concatenate(cols, axis=-1)                # (M, 27*Cin), bf16

    M, Kc = taps.shape
    Kc_pad = _round_up(Kc, _LANE)
    Cout_pad = _round_up(Cout, _LANE)
    tm = min(_MAX_TM, _round_up(M, _LANE))
    M_pad = _round_up(M, tm)

    taps = jnp.pad(taps, ((0, M_pad - M), (0, Kc_pad - Kc)))
    w2 = w.reshape(27 * Cin, Cout).astype(jnp.bfloat16)  # matches tap column order
    w2 = jnp.pad(w2, ((0, Kc_pad - Kc), (0, Cout_pad - Cout)))

    y = _matmul_relu(taps, w2)                           # (M_pad, Cout_pad), lane-dense
    return y[:M, :Cout].reshape(B, Do, Ho, Wo, Cout)


def conv3d_relu(x, w, stride):
    """nn.Conv3d(kernel=3, padding=1, stride=stride, bias=False) + ReLU."""
    return _conv3d_core_relu(x, w, stride, (1, 1, 1), (1, 1, 1))


def convtranspose3d_relu(x, w_eq, stride, output_padding):
    """nn.ConvTranspose3d(kernel=3, padding=1, stride, output_padding, bias=False) + ReLU.

    Implemented as zero-upsample + stride-1 conv.  `w_eq` is the equivalent regular-conv
    weight (synthetic here; a real ConvTranspose3d checkpoint must be spatially flipped
    and Cin/Cout transposed first).
    """
    x = x.astype(jnp.bfloat16)
    B, D, H, W, C = x.shape
    sd, sh, sw = stride
    if stride == (1, 1, 1):
        up = x
    else:
        up = jnp.zeros((B, (D - 1) * sd + 1, (H - 1) * sh + 1, (W - 1) * sw + 1, C),
                       x.dtype)
        up = up.at[:, ::sd, ::sh, ::sw, :].set(x)
    pad_hi = tuple(1 + op for op in output_padding)
    return _conv3d_core_relu(up, w_eq, (1, 1, 1), (1, 1, 1), pad_hi)


# ----------------------------------------------------------------------------- U-Net wiring
def _init_conv(key, cin, cout):
    scale = 1.0 / (cin * 27) ** 0.5
    return (scale * jax.random.normal(key, (3, 3, 3, cin, cout), jnp.float32)
            ).astype(jnp.bfloat16)


def build_unet3d_params(key, in_channels=1, out_channels=1, nr_levels=3,
                        initial_down_channels=8):
    inter = [initial_down_channels * 2 ** l for l in range(nr_levels)]
    keys = jax.random.split(key, nr_levels * 6)
    params = []
    for l in range(nr_levels):
        cin = in_channels if l == 0 else inter[l - 1]
        cout = out_channels if l == 0 else inter[l - 1]
        cmid = inter[l]
        has_skip = l != nr_levels - 1            # 'concat' everywhere but the deepest level
        k = keys[l * 6:(l + 1) * 6]
        params.append(dict(
            pre1=_init_conv(k[0], cin, cmid),
            pre2=_init_conv(k[1], cmid, cmid),
            enc=_init_conv(k[2], cmid, cmid),     # -> next level in_channels (== cmid)
            dec=_init_conv(k[3], cmid, cmid),     # ConvTranspose (equivalent-conv form)
            post1=_init_conv(k[4], cmid * (2 if has_skip else 1), cmid),
            post2=_init_conv(k[5], cmid, cout),
            alpha=jnp.zeros((1,), jnp.float32),   # superskip = 0.0
        ))
    return params


def _level_forward(x, params, level, nr_levels, strides, output_paddings):
    p = params[level]
    stride = strides[level]
    skip = 'concat' if level != nr_levels - 1 else None
    x1 = conv3d_relu(x, p['pre1'], (1, 1, 1))
    x1 = conv3d_relu(x1, p['pre2'], (1, 1, 1))
    x2 = conv3d_relu(x1, p['enc'], stride)
    if level + 1 < nr_levels:
        x2 = _level_forward(x2, params, level + 1, nr_levels, strides, output_paddings)
    x1_up = convtranspose3d_relu(x2, p['dec'], stride, output_paddings[level])
    if skip == 'concat':
        x1 = jnp.concatenate([x1, x1_up], axis=-1)
    else:
        x1 = x1_up
    y = conv3d_relu(x1, p['post1'], (1, 1, 1))
    y = conv3d_relu(y, p['post2'], (1, 1, 1))
    alpha = p['alpha']
    return alpha * x + (1.0 - alpha) * y


def unet3d_forward(x, params, attack_frame):
    """Forward pass of Unet3d (sequence_length>1, space_dims=2, t_dim=1).

    x: (B, T, H, W, 1) -- the trailing size-1 spatial dim of the PyTorch 5D input maps to
    the channel axis of the channels-last layout.  T must be odd, H/W even.
    Returns (B, 1, H, W): the extracted attack frame.
    """
    assert x.ndim == 5 and x.shape[-1] == 1
    nr_levels = len(params)
    strides = [(2, 2, 2)] * (nr_levels - 1) + [(1, 1, 1)]
    input_shape_odd = (True, False, False)
    output_paddings = [tuple(1 if s == 2 and not odd else 0
                             for s, odd in zip(st, input_shape_odd))
                       for st in strides]
    y = _level_forward(x, params, 0, nr_levels, strides, output_paddings)  # (B,T,H,W,1)
    frame = y[:, attack_frame, :, :, 0]        # _extract_attack_frame (t_dim=1, middle of size-1 depth)
    return frame[:, None, :, :].astype(jnp.float32)


# ----------------------------------------------------------------------------- main
if __name__ == "__main__":
    key = jax.random.PRNGKey(0)
    kx, kp = jax.random.split(key)

    B, T, H, W = 2, 5, 8, 8          # sequence_length=5 (odd), spatial 8x8, space_dims=2
    attack_frame = 2
    x = jax.random.normal(kx, (B, T, H, W, 1), jnp.float32)

    params = build_unet3d_params(kp, in_channels=1, out_channels=1,
                                 nr_levels=3, initial_down_channels=8)

    forward = jax.jit(unet3d_forward, static_argnums=(2,))
    out = forward(x, params, attack_frame)
    out = jax.block_until_ready(out)
    assert out.shape == (B, 1, H, W), out.shape
    print("KERNEL_OK")
</pallas_src>

<mosaic_0001>
module attributes {stable_mosaic.version = 11 : i64} {
  func.func @_gemm_relu_kernel(%arg0: i32, %arg1: memref<640x128xbf16, #tpu.memory_space<vmem>>, %arg2: memref<128x128xbf16, #tpu.memory_space<vmem>>, %arg3: memref<640x128xbf16, #tpu.memory_space<vmem>>) attributes {dimension_semantics = [#tpu.dimension_semantics<parallel>], iteration_bounds = array<i64: 1>, scalar_prefetch = 0 : i64, scratch_operands = 0 : i64, tpu.core_type = #tpu.core_type<tc>, window_params = [{transform_indices = @transform_0, window_bounds = array<i64: 640, 128>}, {pipeline_mode = #tpu.pipeline_mode<synchronous>, transform_indices = @transform_1, window_bounds = array<i64: 128, 128>}, {transform_indices = @transform_2, window_bounds = array<i64: 640, 128>}]} {
    %c0 = arith.constant 0 : index
    %c0_0 = arith.constant 0 : index
    %0 = vector.load %arg1[%c0, %c0_0] : memref<640x128xbf16, #tpu.memory_space<vmem>>, vector<640x128xbf16>
    %c0_1 = arith.constant 0 : index
    %c0_2 = arith.constant 0 : index
    %1 = vector.load %arg2[%c0_1, %c0_2] : memref<128x128xbf16, #tpu.memory_space<vmem>>, vector<128x128xbf16>
    %cst = arith.constant dense<0.000000e+00> : vector<640x128xf32>
    %2 = tpu.matmul %0, %1, %cst {dimension_numbers = #tpu.dot_dimension_numbers<[1], [0], [0], [1], [0, 0, 1, 1], [], []>} : vector<640x128xbf16>, vector<128x128xbf16>, vector<640x128xf32> -> vector<640x128xf32>
    %cst_3 = arith.constant 0.000000e+00 : f32
    %3 = vector.broadcast %cst_3 : f32 to vector<640x128xf32>
    %4 = arith.maximumf %2, %3 : vector<640x128xf32>
    %5 = arith.truncf %4 : vector<640x128xf32> to vector<640x128xbf16>
    %c0_4 = arith.constant 0 : index
    %c0_5 = arith.constant 0 : index
    %6 = vector.load %arg3[%c0_4, %c0_5] : memref<640x128xbf16, #tpu.memory_space<vmem>>, vector<640x128xbf16>
    tpu.vector_store %arg3[%c0_4, %c0_5], %5 {strides = array<i32>} : memref<640x128xbf16, #tpu.memory_space<vmem>>, vector<640x128xbf16>,
    return
  }
  func.func @transform_0(%arg0: i32) -> (i32, i32) {
    %c0_i32 = arith.constant 0 : i32
    %c0_i32_0 = arith.constant 0 : i32
    return %arg0, %c0_i32 : i32, i32
  }
  func.func @transform_1(%arg0: i32) -> (i32, i32) {
    %c0_i32 = arith.constant 0 : i32
    %c0_i32_0 = arith.constant 0 : i32
    %c0_i32_1 = arith.constant 0 : i32
    return %c0_i32, %c0_i32_0 : i32, i32
  }
  func.func @transform_2(%arg0: i32) -> (i32, i32) {
    %c0_i32 = arith.constant 0 : i32
    %c0_i32_0 = arith.constant 0 : i32
    return %arg0, %c0_i32 : i32, i32
  }
}

module attributes {stable_mosaic.version = 11 : i64} {
  func.func @_gemm_relu_kernel(%arg0: i32, %arg1: memref<640x256xbf16, #tpu.memory_space<vmem>>, %arg2: memref<256x128xbf16, #tpu.memory_space<vmem>>, %arg3: memref<640x128xbf16, #tpu.memory_space<vmem>>) attributes {dimension_semantics = [#tpu.dimension_semantics<parallel>], iteration_bounds = array<i64: 1>, scalar_prefetch = 0 : i64, scratch_operands = 0 : i64, tpu.core_type = #tpu.core_type<tc>, window_params = [{transform_indices = @transform_0, window_bounds = array<i64: 640, 256>}, {pipeline_mode = #tpu.pipeline_mode<synchronous>, transform_indices = @transform_1, window_bounds = array<i64: 256, 128>}, {transform_indices = @transform_2, window_bounds = array<i64: 640, 128>}]} {
    %c0 = arith.constant 0 : index
    %c0_0 = arith.constant 0 : index
    %0 = vector.load %arg1[%c0, %c0_0] : memref<640x256xbf16, #tpu.memory_space<vmem>>, vector<640x256xbf16>
    %c0_1 = arith.constant 0 : index
    %c0_2 = arith.constant 0 : index
    %1 = vector.load %arg2[%c0_1, %c0_2] : memref<256x128xbf16, #tpu.memory_space<vmem>>, vector<256x128xbf16>
    %cst = arith.constant dense<0.000000e+00> : vector<640x128xf32>
    %2 = tpu.matmul %0, %1, %cst {dimension_numbers = #tpu.dot_dimension_numbers<[1], [0], [0], [1], [0, 0, 1, 1], [], []>} : vector<640x256xbf16>, vector<256x128xbf16>, vector<640x128xf32> -> vector<640x128xf32>
    %cst_3 = arith.constant 0.000000e+00 : f32
    %3 = vector.broadcast %cst_3 : f32 to vector<640x128xf32>
    %4 = arith.maximumf %2, %3 : vector<640x128xf32>
    %5 = arith.truncf %4 : vector<640x128xf32> to vector<640x128xbf16>
    %c0_4 = arith.constant 0 : index
    %c0_5 = arith.constant 0 : index
    %6 = vector.load %arg3[%c0_4, %c0_5] : memref<640x128xbf16, #tpu.memory_space<vmem>>, vector<640x128xbf16>
    tpu.vector_store %arg3[%c0_4, %c0_5], %5 {strides = array<i32>} : memref<640x128xbf16, #tpu.memory_space<vmem>>, vector<640x128xbf16>,
    return
  }
  func.func @transform_0(%arg0: i32) -> (i32, i32) {
    %c0_i32 = arith.constant 0 : i32
    %c0_i32_0 = arith.constant 0 : i32
    return %arg0, %c0_i32 : i32, i32
  }
  func.func @transform_1(%arg0: i32) -> (i32, i32) {
    %c0_i32 = arith.constant 0 : i32
    %c0_i32_0 = arith.constant 0 : i32
    %c0_i32_1 = arith.constant 0 : i32
    return %c0_i32, %c0_i32_0 : i32, i32
  }
  func.func @transform_2(%arg0: i32) -> (i32, i32) {
    %c0_i32 = arith.constant 0 : i32
    %c0_i32_0 = arith.constant 0 : i32
    return %arg0, %c0_i32 : i32, i32
  }
}

module attributes {stable_mosaic.version = 11 : i64} {
  func.func @_gemm_relu_kernel(%arg0: i32, %arg1: memref<128x256xbf16, #tpu.memory_space<vmem>>, %arg2: memref<256x128xbf16, #tpu.memory_space<vmem>>, %arg3: memref<128x128xbf16, #tpu.memory_space<vmem>>) attributes {dimension_semantics = [#tpu.dimension_semantics<parallel>], iteration_bounds = array<i64: 1>, scalar_prefetch = 0 : i64, scratch_operands = 0 : i64, tpu.core_type = #tpu.core_type<tc>, window_params = [{transform_indices = @transform_0, window_bounds = array<i64: 128, 256>}, {pipeline_mode = #tpu.pipeline_mode<synchronous>, transform_indices = @transform_1, window_bounds = array<i64: 256, 128>}, {transform_indices = @transform_2, window_bounds = array<i64: 128, 128>}]} {
    %c0 = arith.constant 0 : index
    %c0_0 = arith.constant 0 : index
    %0 = vector.load %arg1[%c0, %c0_0] : memref<128x256xbf16, #tpu.memory_space<vmem>>, vector<128x256xbf16>
    %c0_1 = arith.constant 0 : index
    %c0_2 = arith.constant 0 : index
    %1 = vector.load %arg2[%c0_1, %c0_2] : memref<256x128xbf16, #tpu.memory_space<vmem>>, vector<256x128xbf16>
    %cst = arith.constant dense<0.000000e+00> : vector<128x128xf32>
    %2 = tpu.matmul %0, %1, %cst {dimension_numbers = #tpu.dot_dimension_numbers<[1], [0], [0], [1], [0, 0, 1, 1], [], []>} : vector<128x256xbf16>, vector<256x128xbf16>, vector<128x128xf32> -> vector<128x128xf32>
    %cst_3 = arith.constant 0.000000e+00 : f32
    %3 = vector.broadcast %cst_3 : f32 to vector<128x128xf32>
    %4 = arith.maximumf %2, %3 : vector<128x128xf32>
    %5 = arith.truncf %4 : vector<128x128xf32> to vector<128x128xbf16>
    %c0_4 = arith.constant 0 : index
    %c0_5 = arith.constant 0 : index
    %6 = vector.load %arg3[%c0_4, %c0_5] : memref<128x128xbf16, #tpu.memory_space<vmem>>, vector<128x128xbf16>
    tpu.vector_store %arg3[%c0_4, %c0_5], %5 {strides = array<i32>} : memref<128x128xbf16, #tpu.memory_space<vmem>>, vector<128x128xbf16>,
    return
  }
  func.func @transform_0(%arg0: i32) -> (i32, i32) {
    %c0_i32 = arith.constant 0 : i32
    %c0_i32_0 = arith.constant 0 : i32
    return %arg0, %c0_i32 : i32, i32
  }
  func.func @transform_1(%arg0: i32) -> (i32, i32) {
    %c0_i32 = arith.constant 0 : i32
    %c0_i32_0 = arith.constant 0 : i32
    %c0_i32_1 = arith.constant 0 : i32
    return %c0_i32, %c0_i32_0 : i32, i32
  }
  func.func @transform_2(%arg0: i32) -> (i32, i32) {
    %c0_i32 = arith.constant 0 : i32
    %c0_i32_0 = arith.constant 0 : i32
    return %arg0, %c0_i32 : i32, i32
  }
}

module attributes {stable_mosaic.version = 11 : i64} {
  func.func @_gemm_relu_kernel(%arg0: i32, %arg1: memref<128x512xbf16, #tpu.memory_space<vmem>>, %arg2: memref<512x128xbf16, #tpu.memory_space<vmem>>, %arg3: memref<128x128xbf16, #tpu.memory_space<vmem>>) attributes {dimension_semantics = [#tpu.dimension_semantics<parallel>], iteration_bounds = array<i64: 1>, scalar_prefetch = 0 : i64, scratch_operands = 0 : i64, tpu.core_type = #tpu.core_type<tc>, window_params = [{transform_indices = @transform_0, window_bounds = array<i64: 128, 512>}, {pipeline_mode = #tpu.pipeline_mode<synchronous>, transform_indices = @transform_1, window_bounds = array<i64: 512, 128>}, {transform_indices = @transform_2, window_bounds = array<i64: 128, 128>}]} {
    %c0 = arith.constant 0 : index
    %c0_0 = arith.constant 0 : index
    %0 = vector.load %arg1[%c0, %c0_0] : memref<128x512xbf16, #tpu.memory_space<vmem>>, vector<128x512xbf16>
    %c0_1 = arith.constant 0 : index
    %c0_2 = arith.constant 0 : index
    %1 = vector.load %arg2[%c0_1, %c0_2] : memref<512x128xbf16, #tpu.memory_space<vmem>>, vector<512x128xbf16>
    %cst = arith.constant dense<0.000000e+00> : vector<128x128xf32>
    %2 = tpu.matmul %0, %1, %cst {dimension_numbers = #tpu.dot_dimension_numbers<[1], [0], [0], [1], [0, 0, 1, 1], [], []>} : vector<128x512xbf16>, vector<512x128xbf16>, vector<128x128xf32> -> vector<128x128xf32>
    %cst_3 = arith.constant 0.000000e+00 : f32
    %3 = vector.broadcast %cst_3 : f32 to vector<128x128xf32>
    %4 = arith.maximumf %2, %3 : vector<128x128xf32>
    %5 = arith.truncf %4 : vector<128x128xf32> to vector<128x128xbf16>
    %c0_4 = arith.constant 0 : index
    %c0_5 = arith.constant 0 : index
    %6 = vector.load %arg3[%c0_4, %c0_5] : memref<128x128xbf16, #tpu.memory_space<vmem>>, vector<128x128xbf16>
    tpu.vector_store %arg3[%c0_4, %c0_5], %5 {strides = array<i32>} : memref<128x128xbf16, #tpu.memory_space<vmem>>, vector<128x128xbf16>,
    return
  }
  func.func @transform_0(%arg0: i32) -> (i32, i32) {
    %c0_i32 = arith.constant 0 : i32
    %c0_i32_0 = arith.constant 0 : i32
    return %arg0, %c0_i32 : i32, i32
  }
  func.func @transform_1(%arg0: i32) -> (i32, i32) {
    %c0_i32 = arith.constant 0 : i32
    %c0_i32_0 = arith.constant 0 : i32
    %c0_i32_1 = arith.constant 0 : i32
    return %c0_i32, %c0_i32_0 : i32, i32
  }
  func.func @transform_2(%arg0: i32) -> (i32, i32) {
    %c0_i32 = arith.constant 0 : i32
    %c0_i32_0 = arith.constant 0 : i32
    return %arg0, %c0_i32 : i32, i32
  }
}

module attributes {stable_mosaic.version = 11 : i64} {
  func.func @_gemm_relu_kernel(%arg0: i32, %arg1: memref<128x896xbf16, #tpu.memory_space<vmem>>, %arg2: memref<896x128xbf16, #tpu.memory_space<vmem>>, %arg3: memref<128x128xbf16, #tpu.memory_space<vmem>>) attributes {dimension_semantics = [#tpu.dimension_semantics<parallel>], iteration_bounds = array<i64: 1>, scalar_prefetch = 0 : i64, scratch_operands = 0 : i64, tpu.core_type = #tpu.core_type<tc>, window_params = [{transform_indices = @transform_0, window_bounds = array<i64: 128, 896>}, {pipeline_mode = #tpu.pipeline_mode<synchronous>, transform_indices = @transform_1, window_bounds = array<i64: 896, 128>}, {transform_indices = @transform_2, window_bounds = array<i64: 128, 128>}]} {
    %c0 = arith.constant 0 : index
    %c0_0 = arith.constant 0 : index
    %0 = vector.load %arg1[%c0, %c0_0] : memref<128x896xbf16, #tpu.memory_space<vmem>>, vector<128x896xbf16>
    %c0_1 = arith.constant 0 : index
    %c0_2 = arith.constant 0 : index
    %1 = vector.load %arg2[%c0_1, %c0_2] : memref<896x128xbf16, #tpu.memory_space<vmem>>, vector<896x128xbf16>
    %cst = arith.constant dense<0.000000e+00> : vector<128x128xf32>
    %2 = tpu.matmul %0, %1, %cst {dimension_numbers = #tpu.dot_dimension_numbers<[1], [0], [0], [1], [0, 0, 1, 1], [], []>} : vector<128x896xbf16>, vector<896x128xbf16>, vector<128x128xf32> -> vector<128x128xf32>
    %cst_3 = arith.constant 0.000000e+00 : f32
    %3 = vector.broadcast %cst_3 : f32 to vector<128x128xf32>
    %4 = arith.maximumf %2, %3 : vector<128x128xf32>
    %5 = arith.truncf %4 : vector<128x128xf32> to vector<128x128xbf16>
    %c0_4 = arith.constant 0 : index
    %c0_5 = arith.constant 0 : index
    %6 = vector.load %arg3[%c0_4, %c0_5] : memref<128x128xbf16, #tpu.memory_space<vmem>>, vector<128x128xbf16>
    tpu.vector_store %arg3[%c0_4, %c0_5], %5 {strides = array<i32>} : memref<128x128xbf16, #tpu.memory_space<vmem>>, vector<128x128xbf16>,
    return
  }
  func.func @transform_0(%arg0: i32) -> (i32, i32) {
    %c0_i32 = arith.constant 0 : i32
    %c0_i32_0 = arith.constant 0 : i32
    return %arg0, %c0_i32 : i32, i32
  }
  func.func @transform_1(%arg0: i32) -> (i32, i32) {
    %c0_i32 = arith.constant 0 : i32
    %c0_i32_0 = arith.constant 0 : i32
    %c0_i32_1 = arith.constant 0 : i32
    return %c0_i32, %c0_i32_0 : i32, i32
  }
  func.func @transform_2(%arg0: i32) -> (i32, i32) {
    %c0_i32 = arith.constant 0 : i32
    %c0_i32_0 = arith.constant 0 : i32
    return %arg0, %c0_i32 : i32, i32
  }
}

module attributes {stable_mosaic.version = 11 : i64} {
  func.func @_gemm_relu_kernel(%arg0: i32, %arg1: memref<640x512xbf16, #tpu.memory_space<vmem>>, %arg2: memref<512x128xbf16, #tpu.memory_space<vmem>>, %arg3: memref<640x128xbf16, #tpu.memory_space<vmem>>) attributes {dimension_semantics = [#tpu.dimension_semantics<parallel>], iteration_bounds = array<i64: 1>, scalar_prefetch = 0 : i64, scratch_operands = 0 : i64, tpu.core_type = #tpu.core_type<tc>, window_params = [{transform_indices = @transform_0, window_bounds = array<i64: 640, 512>}, {pipeline_mode = #tpu.pipeline_mode<synchronous>, transform_indices = @transform_1, window_bounds = array<i64: 512, 128>}, {transform_indices = @transform_2, window_bounds = array<i64: 640, 128>}]} {
    %c0 = arith.constant 0 : index
    %c0_0 = arith.constant 0 : index
    %0 = vector.load %arg1[%c0, %c0_0] : memref<640x512xbf16, #tpu.memory_space<vmem>>, vector<640x512xbf16>
    %c0_1 = arith.constant 0 : index
    %c0_2 = arith.constant 0 : index
    %1 = vector.load %arg2[%c0_1, %c0_2] : memref<512x128xbf16, #tpu.memory_space<vmem>>, vector<512x128xbf16>
    %cst = arith.constant dense<0.000000e+00> : vector<640x128xf32>
    %2 = tpu.matmul %0, %1, %cst {dimension_numbers = #tpu.dot_dimension_numbers<[1], [0], [0], [1], [0, 0, 1, 1], [], []>} : vector<640x512xbf16>, vector<512x128xbf16>, vector<640x128xf32> -> vector<640x128xf32>
    %cst_3 = arith.constant 0.000000e+00 : f32
    %3 = vector.broadcast %cst_3 : f32 to vector<640x128xf32>
    %4 = arith.maximumf %2, %3 : vector<640x128xf32>
    %5 = arith.truncf %4 : vector<640x128xf32> to vector<640x128xbf16>
    %c0_4 = arith.constant 0 : index
    %c0_5 = arith.constant 0 : index
    %6 = vector.load %arg3[%c0_4, %c0_5] : memref<640x128xbf16, #tpu.memory_space<vmem>>, vector<640x128xbf16>
    tpu.vector_store %arg3[%c0_4, %c0_5], %5 {strides = array<i32>} : memref<640x128xbf16, #tpu.memory_space<vmem>>, vector<640x128xbf16>,
    return
  }
  func.func @transform_0(%arg0: i32) -> (i32, i32) {
    %c0_i32 = arith.constant 0 : i32
    %c0_i32_0 = arith.constant 0 : i32
    return %arg0, %c0_i32 : i32, i32
  }
  func.func @transform_1(%arg0: i32) -> (i32, i32) {
    %c0_i32 = arith.constant 0 : i32
    %c0_i32_0 = arith.constant 0 : i32
    %c0_i32_1 = arith.constant 0 : i32
    return %c0_i32, %c0_i32_0 : i32, i32
  }
  func.func @transform_2(%arg0: i32) -> (i32, i32) {
    %c0_i32 = arith.constant 0 : i32
    %c0_i32_0 = arith.constant 0 : i32
    return %arg0, %c0_i32 : i32, i32
  }
}

</mosaic_0001>

<llo_original>
// kernel: unet3d_forward.18
$region0: #{unet3d_forward.18}
  #allocation0 [shape = 'u32[]', space=smem, size = 0x4, offset = 0x4, fixed_abs, tag = 'smem constant byte address 0x4 - core index']
  #allocation1 [shape = 'u32[72,128]{1,0:T(1,128)}', space=vmem, size = 0x9000, scoped, tag = 'internal scratch']
  %s0 = inlined_call_operand.vmem [shape: bf16[640,128], index: 0, kind: input, shape index: {}]
  %s1 = inlined_call_operand.vmem [shape: bf16[128,128], index: 1, kind: input, shape index: {}]
  %s2 = inlined_call_operand.vmem [shape: bf16[640,128], index: 2, kind: output, shape index: {}]
  %s3 = sld [smem:[#allocation0]]
  $region18: #{unet3d_forward.18} parent=0
    _
  %s5 = ssub.s32 1, %s3
  %s6 = scalar_select 0, %s5, %s3
  // Predicated region
  $region2: #{unet3d_forward.18} parent=0 // pred_check
    _
  $region3: #{unet3d_forward.18} parent=0 // pred_check_branch
    %8 = sbr.rel (0) target = $region5
  $region4: #{unet3d_forward.18} parent=0 // pred_region
    _
  $region5: #{unet3d_forward.18} parent=0 // pred_fallthru
    _
  // Predicated region
  $region6: #{unet3d_forward.18} parent=0 // pred_check
    _
  $region7: #{unet3d_forward.18} parent=0 // pred_check_branch
    %10 = sbr.rel (0) target = $region9
  $region8: #{unet3d_forward.18} parent=0 // pred_region
    _
  $region9: #{unet3d_forward.18} parent=0 // pred_fallthru
    _
  %v11 = vld [vmem:[%s0] sm:$0xf]
  %v12 = vld [vmem:[%s0 + $0x4] sm:$0xf]
  %v13 = vld [vmem:[%s0 + $0x8] sm:$0xf]
  %v14 = vld [vmem:[%s0 + $0xc] sm:$0xf]
  %v15 = vld [vmem:[%s0 + $0x10] sm:$0xf]
  %v16 = vld [vmem:[%s0 + $0x14] sm:$0xf]
  %v17 = vld [vmem:[%s0 + $0x18] sm:$0xf]
  %v18 = vld [vmem:[%s0 + $0x1c] sm:$0xf]
  %v19 = vld [vmem:[%s0 + $0x20] sm:$0xf]
  %v20 = vld [vmem:[%s0 + $0x24] sm:$0xf]
  %v21 = vld [vmem:[%s0 + $0x28] sm:$0xf]
  %v22 = vld [vmem:[%s0 + $0x2c] sm:$0xf]
  %v23 = vld [vmem:[%s0 + $0x30] sm:$0xf]
  %v24 = vld [vmem:[%s0 + $0x34] sm:$0xf]
  %v25 = vld [vmem:[%s0 + $0x38] sm:$0xf]
  %v26 = vld [vmem:[%s0 + $0x3c] sm:$0xf]
  %v27 = vld [vmem:[%s0 + $0x40] sm:$0xf]
  %v28 = vld [vmem:[%s0 + $0x44] sm:$0xf]
  %v29 = vld [vmem:[%s0 + $0x48] sm:$0xf]
  %v30 = vld [vmem:[%s0 + $0x4c] sm:$0xf]
  %v31 = vld [vmem:[%s0 + $0x50] sm:$0xf]
  %v32 = vld [vmem:[%s0 + $0x54] sm:$0xf]
  %v33 = vld [vmem:[%s0 + $0x58] sm:$0xf]
  %v34 = vld [vmem:[%s0 + $0x5c] sm:$0xf]
  %v35 = vld [vmem:[%s0 + $0x60] sm:$0xf]
  %v36 = vld [vmem:[%s0 + $0x64] sm:$0xf]
  %v37 = vld [vmem:[%s0 + $0x68] sm:$0xf]
  %v38 = vld [vmem:[%s0 + $0x6c] sm:$0xf]
  %v39 = vld [vmem:[%s0 + $0x70] sm:$0xf]
  %v40 = vld [vmem:[%s0 + $0x74] sm:$0xf]
  %v41 = vld [vmem:[%s0 + $0x78] sm:$0xf]
  %v42 = vld [vmem:[%s0 + $0x7c] sm:$0xf]
  %v43 = vld [vmem:[%s0 + $0x80] sm:$0xf]
  %v44 = vld [vmem:[%s0 + $0x84] sm:$0xf]
  %v45 = vld [vmem:[%s0 + $0x88] sm:$0xf]
  %v46 = vld [vmem:[%s0 + $0x8c] sm:$0xf]
  %v47 = vld [vmem:[%s0 + $0x90] sm:$0xf]
  %v48 = vld [vmem:[%s0 + $0x94] sm:$0xf]
  %v49 = vld [vmem:[%s0 + $0x98] sm:$0xf]
  %v50 = vld [vmem:[%s0 + $0x9c] sm:$0xf]
  %v51 = vld [vmem:[%s0 + $0xa0] sm:$0xf]
  %v52 = vld [vmem:[%s0 + $0xa4] sm:$0xf]
  %v53 = vld [vmem:[%s0 + $0xa8] sm:$0xf]
  %v54 = vld [vmem:[%s0 + $0xac] sm:$0xf]
  %v55 = vld [vmem:[%s0 + $0xb0] sm:$0xf]
  %v56 = vld [vmem:[%s0 + $0xb4] sm:$0xf]
  %v57 = vld [vmem:[%s0 + $0xb8] sm:$0xf]
  %v58 = vld [vmem:[%s0 + $0xbc] sm:$0xf]
  %v59 = vld [vmem:[%s0 + $0xc0] sm:$0xf]
  %v60 = vld [vmem:[%s0 + $0xc4] sm:$0xf]
  %v61 = vld [vmem:[%s0 + $0xc8] sm:$0xf]
  %v62 = vld [vmem:[%s0 + $0xcc] sm:$0xf]
  %v63 = vld [vmem:[%s0 + $0xd0] sm:$0xf]
  %v64 = vld [vmem:[%s0 + $0xd4] sm:$0xf]
  %v65 = vld [vmem:[%s0 + $0xd8] sm:$0xf]
  %v66 = vld [vmem:[%s0 + $0xdc] sm:$0xf]
  %v67 = vld [vmem:[%s0 + $0xe0] sm:$0xf]
  %v68 = vld [vmem:[%s0 + $0xe4] sm:$0xf]
  %v69 = vld [vmem:[%s0 + $0xe8] sm:$0xf]
  %v70 = vld [vmem:[%s0 + $0xec] sm:$0xf]
  %v71 = vld [vmem:[%s0 + $0xf0] sm:$0xf]
  %v72 = vld [vmem:[%s0 + $0xf4] sm:$0xf]
  %v73 = vld [vmem:[%s0 + $0xf8] sm:$0xf]
  %v74 = vld [vmem:[%s0 + $0xfc] sm:$0xf]
  %v75 = vld [vmem:[%s0 + $0x100] sm:$0xf]
  %v76 = vld [vmem:[%s0 + $0x104] sm:$0xf]
  %v77 = vld [vmem:[%s0 + $0x108] sm:$0xf]
  %v78 = vld [vmem:[%s0 + $0x10c] sm:$0xf]
  %v79 = vld [vmem:[%s0 + $0x110] sm:$0xf]
  %v80 = vld [vmem:[%s0 + $0x114] sm:$0xf]
  %v81 = vld [vmem:[%s0 + $0x118] sm:$0xf]
  %v82 = vld [vmem:[%s0 + $0x11c] sm:$0xf]
  %v83 = vld [vmem:[%s0 + $0x120] sm:$0xf]
  %v84 = vld [vmem:[%s0 + $0x124] sm:$0xf]
  %v85 = vld [vmem:[%s0 + $0x128] sm:$0xf]
  %v86 = vld [vmem:[%s0 + $0x12c] sm:$0xf]
  %v87 = vld [vmem:[%s0 + $0x130] sm:$0xf]
  %v88 = vld [vmem:[%s0 + $0x134] sm:$0xf]
  %v89 = vld [vmem:[%s0 + $0x138] sm:$0xf]
  %v90 = vld [vmem:[%s0 + $0x13c] sm:$0xf]
  %v91 = vld [vmem:[%s1] sm:$0xf]
  %v92 = vld [vmem:[%s1 + $0x4] sm:$0xf]
  %v93 = vld [vmem:[%s1 + $0x8] sm:$0xf]
  %v94 = vld [vmem:[%s1 + $0xc] sm:$0xf]
  %v95 = vld [vmem:[%s1 + $0x10] sm:$0xf]
  %v96 = vld [vmem:[%s1 + $0x14] sm:$0xf]
  %v97 = vld [vmem:[%s1 + $0x18] sm:$0xf]
  %v98 = vld [vmem:[%s1 + $0x1c] sm:$0xf]
  %v99 = vld [vmem:[%s1 + $0x20] sm:$0xf]
  %v100 = vld [vmem:[%s1 + $0x24] sm:$0xf]
  %v101 = vld [vmem:[%s1 + $0x28] sm:$0xf]
  %v102 = vld [vmem:[%s1 + $0x2c] sm:$0xf]
  %v103 = vld [vmem:[%s1 + $0x30] sm:$0xf]
  %v104 = vld [vmem:[%s1 + $0x34] sm:$0xf]
  %v105 = vld [vmem:[%s1 + $0x38] sm:$0xf]
  %v106 = vld [vmem:[%s1 + $0x3c] sm:$0xf]
  %v187 = vunpack.c.l.b16 %v11
  %v188 = vunpack.c.l.b16 %v12
  %v189 = vunpack.c.l.b16 %v13
  %v190 = vunpack.c.l.b16 %v14
  %v191 = vunpack.c.l.b16 %v15
  %v192 = vunpack.c.l.b16 %v16
  %v193 = vunpack.c.l.b16 %v17
  %v194 = vunpack.c.l.b16 %v18
  %v195 = vunpack.c.l.b16 %v19
  %v196 = vunpack.c.l.b16 %v20
  %v197 = vunpack.c.l.b16 %v21
  %v198 = vunpack.c.l.b16 %v22
  %v199 = vunpack.c.l.b16 %v23
  %v200 = vunpack.c.l.b16 %v24
  %v201 = vunpack.c.l.b16 %v25
  %v202 = vunpack.c.l.b16 %v26
  %v203 = vunpack.c.l.b16 %v27
  %v204 = vunpack.c.l.b16 %v28
  %v205 = vunpack.c.l.b16 %v29
  %v206 = vunpack.c.l.b16 %v30
  %v207 = vunpack.c.l.b16 %v31
  %v208 = vunpack.c.l.b16 %v32
  %v209 = vunpack.c.l.b16 %v33
  %v210 = vunpack.c.l.b16 %v34
  %v211 = vunpack.c.l.b16 %v35
  %v212 = vunpack.c.l.b16 %v36
  %v213 = vunpack.c.l.b16 %v37
  %v214 = vunpack.c.l.b16 %v38
  %v215 = vunpack.c.l.b16 %v39
  %v216 = vunpack.c.l.b16 %v40
  %v217 = vunpack.c.l.b16 %v41
  %v218 = vunpack.c.l.b16 %v42
  %v219 = vunpack.c.l.b16 %v43
  %v220 = vunpack.c.l.b16 %v44
  %v221 = vunpack.c.l.b16 %v45
  %v222 = vunpack.c.l.b16 %v46
  %v223 = vunpack.c.l.b16 %v47
  %v224 = vunpack.c.l.b16 %v48
  %v225 = vunpack.c.l.b16 %v49
  %v226 = vunpack.c.l.b16 %v50
  %v227 = vunpack.c.l.b16 %v51
  %v228 = vunpack.c.l.b16 %v52
  %v229 = vunpack.c.l.b16 %v53
  %v230 = vunpack.c.l.b16 %v54
  %v231 = vunpack.c.l.b16 %v55
  %v232 = vunpack.c.l.b16 %v56
  %v233 = vunpack.c.l.b16 %v57
  %v234 = vunpack.c.l.b16 %v58
  %v235 = vunpack.c.l.b16 %v59
  %v236 = vunpack.c.l.b16 %v60
  %v237 = vunpack.c.l.b16 %v61
  %v238 = vunpack.c.l.b16 %v62
  %v239 = vunpack.c.l.b16 %v63
  %v240 = vunpack.c.l.b16 %v64
  %v241 = vunpack.c.l.b16 %v65
  %v242 = vunpack.c.l.b16 %v66
  %v243 = vunpack.c.l.b16 %v67
  %v244 = vunpack.c.l.b16 %v68
  %v245 = vunpack.c.l.b16 %v69
  %v246 = vunpack.c.l.b16 %v70
  %v247 = vunpack.c.l.b16 %v71
  %v248 = vunpack.c.l.b16 %v72
  %v249 = vunpack.c.l.b16 %v73
  %v250 = vunpack.c.l.b16 %v74
  %v251 = vunpack.c.l.b16 %v75
  %v252 = vunpack.c.l.b16 %v76
  %v253 = vunpack.c.l.b16 %v77
  %v254 = vunpack.c.l.b16 %v78
  %v255 = vunpack.c.l.b16 %v79
  %v256 = vunpack.c.l.b16 %v80
  %v257 = vunpack.c.l.b16 %v81
  %v258 = vunpack.c.l.b16 %v82
  %v259 = vunpack.c.l.b16 %v83
  %v260 = vunpack.c.l.b16 %v84
  %v261 = vunpack.c.l.b16 %v85
  %v262 = vunpack.c.l.b16 %v86
  %v263 = vunpack.c.l.b16 %v87
  %v264 = vunpack.c.l.b16 %v88
  %v265 = vunpack.c.l.b16 %v89
  %v266 = vunpack.c.l.b16 %v90
  %v267 = vpack.c.b16 %v188, %v187
  %v268 = vpack.c.b16 %v190, %v189
  %v269 = vpack.c.b16 %v192, %v191
  %v270 = vpack.c.b16 %v194, %v193
  %v271 = vpack.c.b16 %v196, %v195
  %v272 = vpack.c.b16 %v198, %v197
  %v273 = vpack.c.b16 %v200, %v199
  %v274 = vpack.c.b16 %v202, %v201
  %v275 = vpack.c.b16 %v204, %v203
  %v276 = vpack.c.b16 %v206, %v205
  %v277 = vpack.c.b16 %v208, %v207
  %v278 = vpack.c.b16 %v210, %v209
  %v279 = vpack.c.b16 %v212, %v211
  %v280 = vpack.c.b16 %v214, %v213
  %v281 = vpack.c.b16 %v216, %v215
  %v282 = vpack.c.b16 %v218, %v217
  %v283 = vpack.c.b16 %v220, %v219
  %v284 = vpack.c.b16 %v222, %v221
  %v285 = vpack.c.b16 %v224, %v223
  %v286 = vpack.c.b16 %v226, %v225
  %v287 = vpack.c.b16 %v228, %v227
  %v288 = vpack.c.b16 %v230, %v229
  %v289 = vpack.c.b16 %v232, %v231
  %v290 = vpack.c.b16 %v234, %v233
  %v291 = vpack.c.b16 %v236, %v235
  %v292 = vpack.c.b16 %v238, %v237
  %v293 = vpack.c.b16 %v240, %v239
  %v294 = vpack.c.b16 %v242, %v241
  %v295 = vpack.c.b16 %v244, %v243
  %v296 = vpack.c.b16 %v246, %v245
  %v297 = vpack.c.b16 %v248, %v247
  %v298 = vpack.c.b16 %v250, %v249
  %v299 = vpack.c.b16 %v252, %v251
  %v300 = vpack.c.b16 %v254, %v253
  %v301 = vpack.c.b16 %v256, %v255
  %v302 = vpack.c.b16 %v258, %v257
  %v303 = vpack.c.b16 %v260, %v259
  %v304 = vpack.c.b16 %v262, %v261
  %v305 = vpack.c.b16 %v264, %v263
  %v306 = vpack.c.b16 %v266, %v265
  %v363 = vunpack.c.l.b16 %v91
  %v364 = vunpack.c.l.b16 %v92
  %v365 = vunpack.c.l.b16 %v93
  %v366 = vunpack.c.l.b16 %v94
  %v367 = vunpack.c.l.b16 %v95
  %v368 = vunpack.c.l.b16 %v96
  %v369 = vunpack.c.l.b16 %v97
  %v370 = vunpack.c.l.b16 %v98
  %v371 = vunpack.c.l.b16 %v99
  %v372 = vunpack.c.l.b16 %v100
  %v373 = vunpack.c.l.b16 %v101
  %v374 = vunpack.c.l.b16 %v102
  %v375 = vunpack.c.l.b16 %v103
  %v376 = vunpack.c.l.b16 %v104
  %v377 = vunpack.c.l.b16 %v105
  %v378 = vunpack.c.l.b16 %v106
  %v379 = vpack.c.b16 %v364, %v363
  %v380 = vpack.c.b16 %v366, %v365
  %v381 = vpack.c.b16 %v368, %v367
  %v382 = vpack.c.b16 %v370, %v369
  %v383 = vpack.c.b16 %v372, %v371
  %v384 = vpack.c.b16 %v374, %v373
  %v385 = vpack.c.b16 %v376, %v375
  %v386 = vpack.c.b16 %v378, %v377
  %395 = vmatpush.bf16.msra.mxu0 %v386
  %396 = vmatpush.bf16.msra.mxu0 %v385
  %397 = vmatpush.bf16.msra.mxu0 %v384
  %398 = vmatpush.bf16.msra.mxu0 %v383
  %399 = vmatpush.bf16.msra.mxu0 %v382
  %400 = vmatpush.bf16.msra.mxu0 %v381
  %401 = vmatpush.bf16.msra.mxu0 %v380
  %402 = vmatpush.bf16.msra.mxu0 %v379
  %403 = vmatmul.bf16.gmra.mxu0 %v267
  %v404 = vpop.f32.mrf.mxu0
  %v405 = vadd.f32 0.0, %v404
  %v406 = vpop.f32.mrf.mxu0
  %v407 = vadd.f32 0.0, %v406
  %408 = vmatmul.bf16.gmra.mxu0 %v268
  %v409 = vpop.f32.mrf.mxu0
  %v410 = vadd.f32 0.0, %v409
  %v411 = vpop.f32.mrf.mxu0
  %v412 = vadd.f32 0.0, %v411
  %413 = vmatmul.bf16.gmra.mxu0 %v269
  %v414 = vpop.f32.mrf.mxu0
  %v415 = vadd.f32 0.0, %v414
  %v416 = vpop.f32.mrf.mxu0
  %v417 = vadd.f32 0.0, %v416
  %418 = vmatmul.bf16.gmra.mxu0 %v270
  %v419 = vpop.f32.mrf.mxu0
  %v420 = vadd.f32 0.0, %v419
  %v421 = vpop.f32.mrf.mxu0
  %v422 = vadd.f32 0.0, %v421
  %423 = vmatmul.bf16.gmra.mxu0 %v271
  %v424 = vpop.f32.mrf.mxu0
  %v425 = vadd.f32 0.0, %v424
  %v426 = vpop.f32.mrf.mxu0
  %v427 = vadd.f32 0.0, %v426
  %428 = vmatmul.bf16.gmra.mxu0 %v272
  %v429 = vpop.f32.mrf.mxu0
  %v430 = vadd.f32 0.0, %v429
  %v431 = vpop.f32.mrf.mxu0
  %v432 = vadd.f32 0.0, %v431
  %433 = vmatmul.bf16.gmra.mxu0 %v273
  %v434 = vpop.f32.mrf.mxu0
  %v435 = vadd.f32 0.0, %v434
  %v436 = vpop.f32.mrf.mxu0
  %v437 = vadd.f32 0.0, %v436
  %438 = vmatmul.bf16.gmra.mxu0 %v274
  %v439 = vpop.f32.mrf.mxu0
  %v440 = vadd.f32 0.0, %v439
  %v441 = vpop.f32.mrf.mxu0
  %v442 = vadd.f32 0.0, %v441
  %443 = vmatmul.bf16.gmra.mxu0 %v275
  %v444 = vpop.f32.mrf.mxu0
  %v445 = vadd.f32 0.0, %v444
  %v446 = vpop.f32.mrf.mxu0
  %v447 = vadd.f32 0.0, %v446
  %448 = vmatmul.bf16.gmra.mxu0 %v276
  %v449 = vpop.f32.mrf.mxu0
  %v450 = vadd.f32 0.0, %v449
  %v451 = vpop.f32.mrf.mxu0
  %v452 = vadd.f32 0.0, %v451
  %453 = vmatmul.bf16.gmra.mxu0 %v277
  %v454 = vpop.f32.mrf.mxu0
  %v455 = vadd.f32 0.0, %v454
  %v456 = vpop.f32.mrf.mxu0
  %v457 = vadd.f32 0.0, %v456
  %458 = vmatmul.bf16.gmra.mxu0 %v278
  %v459 = vpop.f32.mrf.mxu0
  %v460 = vadd.f32 0.0, %v459
  %v461 = vpop.f32.mrf.mxu0
  %v462 = vadd.f32 0.0, %v461
  %463 = vmatmul.bf16.gmra.mxu0 %v279
  %v464 = vpop.f32.mrf.mxu0
  %v465 = vadd.f32 0.0, %v464
  %v466 = vpop.f32.mrf.mxu0
  %v467 = vadd.f32 0.0, %v466
  %468 = vmatmul.bf16.gmra.mxu0 %v280
  %v469 = vpop.f32.mrf.mxu0
  %v470 = vadd.f32 0.0, %v469
  %v471 = vpop.f32.mrf.mxu0
  %v472 = vadd.f32 0.0, %v471
  %473 = vmatmul.bf16.gmra.mxu0 %v281
  %v474 = vpop.f32.mrf.mxu0
  %v475 = vadd.f32 0.0, %v474
  %v476 = vpop.f32.mrf.mxu0
  %v477 = vadd.f32 0.0, %v476
  %478 = vmatmul.bf16.gmra.mxu0 %v282
  %v479 = vpop.f32.mrf.mxu0
  %v480 = vadd.f32 0.0, %v479
  %v481 = vpop.f32.mrf.mxu0
  %v482 = vadd.f32 0.0, %v481
  %483 = vmatmul.bf16.gmra.mxu0 %v283
  %v484 = vpop.f32.mrf.mxu0
  %v485 = vadd.f32 0.0, %v484
  %v486 = vpop.f32.mrf.mxu0
  %v487 = vadd.f32 0.0, %v486
  %488 = vmatmul.bf16.gmra.mxu0 %v284
  %v489 = vpop.f32.mrf.mxu0
  %v490 = vadd.f32 0.0, %v489
  %v491 = vpop.f32.mrf.mxu0
  %v492 = vadd.f32 0.0, %v491
  %493 = vmatmul.bf16.gmra.mxu0 %v285
  %v494 = vpop.f32.mrf.mxu0
  %v495 = vadd.f32 0.0, %v494
  %v496 = vpop.f32.mrf.mxu0
  %v497 = vadd.f32 0.0, %v496
  %498 = vmatmul.bf16.gmra.mxu0 %v286
  %v499 = vpop.f32.mrf.mxu0
  %v500 = vadd.f32 0.0, %v499
  %v501 = vpop.f32.mrf.mxu0
  %v502 = vadd.f32 0.0, %v501
  %503 = vmatmul.bf16.gmra.mxu0 %v287
  %v504 = vpop.f32.mrf.mxu0
  %v505 = vadd.f32 0.0, %v504
  %v506 = vpop.f32.mrf.mxu0
  %v507 = vadd.f32 0.0, %v506
  %508 = vmatmul.bf16.gmra.mxu0 %v288
  %v509 = vpop.f32.mrf.mxu0
  %v510 = vadd.f32 0.0, %v509
  %v511 = vpop.f32.mrf.mxu0
  %v512 = vadd.f32 0.0, %v511
  %513 = vmatmul.bf16.gmra.mxu0 %v289
  %v514 = vpop.f32.mrf.mxu0
  %v515 = vadd.f32 0.0, %v514
  %v516 = vpop.f32.mrf.mxu0
  %v517 = vadd.f32 0.0, %v516
  %518 = vmatmul.bf16.gmra.mxu0 %v290
  %v519 = vpop.f32.mrf.mxu0
  %v520 = vadd.f32 0.0, %v519
  %v521 = vpop.f32.mrf.mxu0
  %v522 = vadd.f32 0.0, %v521
  %523 = vmatmul.bf16.gmra.mxu0 %v291
  %v524 = vpop.f32.mrf.mxu0
  %v525 = vadd.f32 0.0, %v524
  %v526 = vpop.f32.mrf.mxu0
  %v527 = vadd.f32 0.0, %v526
  %528 = vmatmul.bf16.gmra.mxu0 %v292
  %v529 = vpop.f32.mrf.mxu0
  %v530 = vadd.f32 0.0, %v529
  %v531 = vpop.f32.mrf.mxu0
  %v532 = vadd.f32 0.0, %v531
  %533 = vmatmul.bf16.gmra.mxu0 %v293
  %v534 = vpop.f32.mrf.mxu0
  %v535 = vadd.f32 0.0, %v534
  %v536 = vpop.f32.mrf.mxu0
  %v537 = vadd.f32 0.0, %v536
  %538 = vmatmul.bf16.gmra.mxu0 %v294
  %v539 = vpop.f32.mrf.mxu0
  %v540 = vadd.f32 0.0, %v539
  %v541 = vpop.f32.mrf.mxu0
  %v542 = vadd.f32 0.0, %v541
  %543 = vmatmul.bf16.gmra.mxu0 %v295
  %v544 = vpop.f32.mrf.mxu0
  %v545 = vadd.f32 0.0, %v544
  %v546 = vpop.f32.mrf.mxu0
  %v547 = vadd.f32 0.0, %v546
  %548 = vmatmul.bf16.gmra.mxu0 %v296
  %v549 = vpop.f32.mrf.mxu0
  %v550 = vadd.f32 0.0, %v549
  %v551 = vpop.f32.mrf.mxu0
  %v552 = vadd.f32 0.0, %v551
  %553 = vmatmul.bf16.gmra.mxu0 %v297
  %v554 = vpop.f32.mrf.mxu0
  %v555 = vadd.f32 0.0, %v554
  %v556 = vpop.f32.mrf.mxu0
  %v557 = vadd.f32 0.0, %v556
  %558 = vmatmul.bf16.gmra.mxu0 %v298
  %v559 = vpop.f32.mrf.mxu0
  %v560 = vadd.f32 0.0, %v559
  %v561 = vpop.f32.mrf.mxu0
  %v562 = vadd.f32 0.0, %v561
  %563 = vmatmul.bf16.gmra.mxu0 %v299
  %v564 = vpop.f32.mrf.mxu0
  %v565 = vadd.f32 0.0, %v564
  %v566 = vpop.f32.mrf.mxu0
  %v567 = vadd.f32 0.0, %v566
  %568 = vmatmul.bf16.gmra.mxu0 %v300
  %v569 = vpop.f32.mrf.mxu0
  %v570 = vadd.f32 0.0, %v569
  %v571 = vpop.f32.mrf.mxu0
  %v572 = vadd.f32 0.0, %v571
  %573 = vmatmul.bf16.gmra.mxu0 %v301
  %v574 = vpop.f32.mrf.mxu0
  %v575 = vadd.f32 0.0, %v574
  %v576 = vpop.f32.mrf.mxu0
  %v577 = vadd.f32 0.0, %v576
  %578 = vmatmul.bf16.gmra.mxu0 %v302
  %v579 = vpop.f32.mrf.mxu0
  %v580 = vadd.f32 0.0, %v579
  %v581 = vpop.f32.mrf.mxu0
  %v582 = vadd.f32 0.0, %v581
  %583 = vmatmul.bf16.gmra.mxu0 %v303
  %v584 = vpop.f32.mrf.mxu0
  %v585 = vadd.f32 0.0, %v584
  %v586 = vpop.f32.mrf.mxu0
  %v587 = vadd.f32 0.0, %v586
  %588 = vmatmul.bf16.gmra.mxu0 %v304
  %v589 = vpop.f32.mrf.mxu0
  %v590 = vadd.f32 0.0, %v589
  %v591 = vpop.f32.mrf.mxu0
  %v592 = vadd.f32 0.0, %v591
  %593 = vmatmul.bf16.gmra.mxu0 %v305
  %v594 = vpop.f32.mrf.mxu0
  %v595 = vadd.f32 0.0, %v594
  %v596 = vpop.f32.mrf.mxu0
  %v597 = vadd.f32 0.0, %v596
  %598 = vmatmul.bf16.gmra.mxu0 %v306
  %v599 = vpop.f32.mrf.mxu0
  %v600 = vadd.f32 0.0, %v599
  %v601 = vpop.f32.mrf.mxu0
  %v602 = vadd.f32 0.0, %v601
  %603 = vdwg.mxu0
  %v604 = vmax.f32 %v405, 0.0
  %v605 = vmax.f32 %v407, 0.0
  %v606 = vmax.f32 %v410, 0.0
  %v607 = vmax.f32 %v412, 0.0
  %v608 = vmax.f32 %v415, 0.0
  %v609 = vmax.f32 %v417, 0.0
  %v610 = vmax.f32 %v420, 0.0
  %v611 = vmax.f32 %v422, 0.0
  %v612 = vmax.f32 %v425, 0.0
  %v613 = vmax.f32 %v427, 0.0
  %v614 = vmax.f32 %v430, 0.0
  %v615 = vmax.f32 %v432, 0.0
  %v616 = vmax.f32 %v435, 0.0
  %v617 = vmax.f32 %v437, 0.0
  %v618 = vmax.f32 %v440, 0.0
  %v619 = vmax.f32 %v442, 0.0
  %v620 = vmax.f32 %v445, 0.0
  %v621 = vmax.f32 %v447, 0.0
  %v622 = vmax.f32 %v450, 0.0
  %v623 = vmax.f32 %v452, 0.0
  %v624 = vmax.f32 %v455, 0.0
  %v625 = vmax.f32 %v457, 0.0
  %v626 = vmax.f32 %v460, 0.0
  %v627 = vmax.f32 %v462, 0.0
  %v628 = vmax.f32 %v465, 0.0
  %v629 = vmax.f32 %v467, 0.0
  %v630 = vmax.f32 %v470, 0.0
  %v631 = vmax.f32 %v472, 0.0
  %v632 = vmax.f32 %v475, 0.0
  %v633 = vmax.f32 %v477, 0.0
  %v634 = vmax.f32 %v480, 0.0
  %v635 = vmax.f32 %v482, 0.0
  %v636 = vmax.f32 %v485, 0.0
  %v637 = vmax.f32 %v487, 0.0
  %v638 = vmax.f32 %v490, 0.0
  %v639 = vmax.f32 %v492, 0.0
  %v640 = vmax.f32 %v495, 0.0
  %v641 = vmax.f32 %v497, 0.0
  %v642 = vmax.f32 %v500, 0.0
  %v643 = vmax.f32 %v502, 0.0
  %v644 = vmax.f32 %v505, 0.0
  %v645 = vmax.f32 %v507, 0.0
  %v646 = vmax.f32 %v510, 0.0
  %v647 = vmax.f32 %v512, 0.0
  %v648 = vmax.f32 %v515, 0.0
  %v649 = vmax.f32 %v517, 0.0
  %v650 = vmax.f32 %v520, 0.0
  %v651 = vmax.f32 %v522, 0.0
  %v652 = vmax.f32 %v525, 0.0
  %v653 = vmax.f32 %v527, 0.0
  %v654 = vmax.f32 %v530, 0.0
  %v655 = vmax.f32 %v532, 0.0
  %v656 = vmax.f32 %v535, 0.0
  %v657 = vmax.f32 %v537, 0.0
  %v658 = vmax.f32 %v540, 0.0
  %v659 = vmax.f32 %v542, 0.0
  %v660 = vmax.f32 %v545, 0.0
  %v661 = vmax.f32 %v547, 0.0
  %v662 = vmax.f32 %v550, 0.0
  %v663 = vmax.f32 %v552, 0.0
  %v664 = vmax.f32 %v555, 0.0
  %v665 = vmax.f32 %v557, 0.0
  %v666 = vmax.f32 %v560, 0.0
  %v667 = vmax.f32 %v562, 0.0
  %v668 = vmax.f32 %v565, 0.0
  %v669 = vmax.f32 %v567, 0.0
  %v670 = vmax.f32 %v570, 0.0
  %v671 = vmax.f32 %v572, 0.0
  %v672 = vmax.f32 %v575, 0.0
  %v673 = vmax.f32 %v577, 0.0
  %v674 = vmax.f32 %v580, 0.0
  %v675 = vmax.f32 %v582, 0.0
  %v676 = vmax.f32 %v585, 0.0
  %v677 = vmax.f32 %v587, 0.0
  %v678 = vmax.f32 %v590, 0.0
  %v679 = vmax.f32 %v592, 0.0
  %v680 = vmax.f32 %v595, 0.0
  %v681 = vmax.f32 %v597, 0.0
  %v682 = vmax.f32 %v600, 0.0
  %v683 = vmax.f32 %v602, 0.0
  %v684 = vpack.c.bf16 %v604, %v604
  %v685 = vpack.c.bf16 %v605, %v605
  %v686 = vpack.c.bf16 %v606, %v606
  %v687 = vpack.c.bf16 %v607, %v607
  %v688 = vpack.c.bf16 %v608, %v608
  %v689 = vpack.c.bf16 %v609, %v609
  %v690 = vpack.c.bf16 %v610, %v610
  %v691 = vpack.c.bf16 %v611, %v611
  %v692 = vpack.c.bf16 %v612, %v612
  %v693 = vpack.c.bf16 %v613, %v613
  %v694 = vpack.c.bf16 %v614, %v614
  %v695 = vpack.c.bf16 %v615, %v615
  %v696 = vpack.c.bf16 %v616, %v616
  %v697 = vpack.c.bf16 %v617, %v617
  %v698 = vpack.c.bf16 %v618, %v618
  %v699 = vpack.c.bf16 %v619, %v619
  %v700 = vpack.c.bf16 %v620, %v620
  %v701 = vpack.c.bf16 %v621, %v621
  %v702 = vpack.c.bf16 %v622, %v622
  %v703 = vpack.c.bf16 %v623, %v623
  %v704 = vpack.c.bf16 %v624, %v624
  %v705 = vpack.c.bf16 %v625, %v625
  %v706 = vpack.c.bf16 %v626, %v626
  %v707 = vpack.c.bf16 %v627, %v627
  %v708 = vpack.c.bf16 %v628, %v628
  %v709 = vpack.c.bf16 %v629, %v629
  %v710 = vpack.c.bf16 %v630, %v630
  %v711 = vpack.c.bf16 %v631, %v631
  %v712 = vpack.c.bf16 %v632, %v632
  %v713 = vpack.c.bf16 %v633, %v633
  %v714 = vpack.c.bf16 %v634, %v634
  %v715 = vpack.c.bf16 %v635, %v635
  %v716 = vpack.c.bf16 %v636, %v636
  %v717 = vpack.c.bf16 %v637, %v637
  %v718 = vpack.c.bf16 %v638, %v638
  %v719 = vpack.c.bf16 %v639, %v639
  %v720 = vpack.c.bf16 %v640, %v640
  %v721 = vpack.c.bf16 %v641, %v641
  %v722 = vpack.c.bf16 %v642, %v642
  %v723 = vpack.c.bf16 %v643, %v643
  %v724 = vpack.c.bf16 %v644, %v644
  %v725 = vpack.c.bf16 %v645, %v645
  %v726 = vpack.c.bf16 %v646, %v646
  %v727 = vpack.c.bf16 %v647, %v647
  %v728 = vpack.c.bf16 %v648, %v648
  %v729 = vpack.c.bf16 %v649, %v649
  %v730 = vpack.c.bf16 %v650, %v650
  %v731 = vpack.c.bf16 %v651, %v651
  %v732 = vpack.c.bf16 %v652, %v652
  %v733 = vpack.c.bf16 %v653, %v653
  %v734 = vpack.c.bf16 %v654, %v654
  %v735 = vpack.c.bf16 %v655, %v655
  %v736 = vpack.c.bf16 %v656, %v656
  %v737 = vpack.c.bf16 %v657, %v657
  %v738 = vpack.c.bf16 %v658, %v658
  %v739 = vpack.c.bf16 %v659, %v659
  %v740 = vpack.c.bf16 %v660, %v660
  %v741 = vpack.c.bf16 %v661, %v661
  %v742 = vpack.c.bf16 %v662, %v662
  %v743 = vpack.c.bf16 %v663, %v663
  %v744 = vpack.c.bf16 %v664, %v664
  %v745 = vpack.c.bf16 %v665, %v665
  %v746 = vpack.c.bf16 %v666, %v666
  %v747 = vpack.c.bf16 %v667, %v667
  %v748 = vpack.c.bf16 %v668, %v668
  %v749 = vpack.c.bf16 %v669, %v669
  %v750 = vpack.c.bf16 %v670, %v670
  %v751 = vpack.c.bf16 %v671, %v671
  %v752 = vpack.c.bf16 %v672, %v672
  %v753 = vpack.c.bf16 %v673, %v673
  %v754 = vpack.c.bf16 %v674, %v674
  %v755 = vpack.c.bf16 %v675, %v675
  %v756 = vpack.c.bf16 %v676, %v676
  %v757 = vpack.c.bf16 %v677, %v677
  %v758 = vpack.c.bf16 %v678, %v678
  %v759 = vpack.c.bf16 %v679, %v679
  %v760 = vpack.c.bf16 %v680, %v680
  %v761 = vpack.c.bf16 %v681, %v681
  %v762 = vpack.c.bf16 %v682, %v682
  %v763 = vpack.c.bf16 %v683, %v683
  %764 = vst [vmem:[%s2] sm:$0xf] %v684
  %765 = vst [vmem:[%s2 + $0x4] sm:$0xf] %v685
  %766 = vst [vmem:[%s2 + $0x8] sm:$0xf] %v686
  %767 = vst [vmem:[%s2 + $0xc] sm:$0xf] %v687
  %768 = vst [vmem:[%s2 + $0x10] sm:$0xf] %v688
  %769 = vst [vmem:[%s2 + $0x14] sm:$0xf] %v689
  %770 = vst [vmem:[%s2 + $0x18] sm:$0xf] %v690
  %771 = vst [vmem:[%s2 + $0x1c] sm:$0xf] %v691
  %772 = vst [vmem:[%s2 + $0x20] sm:$0xf] %v692
  %773 = vst [vmem:[%s2 + $0x24] sm:$0xf] %v693
  %774 = vst [vmem:[%s2 + $0x28] sm:$0xf] %v694
  %775 = vst [vmem:[%s2 + $0x2c] sm:$0xf] %v695
  %776 = vst [vmem:[%s2 + $0x30] sm:$0xf] %v696
  %777 = vst [vmem:[%s2 + $0x34] sm:$0xf] %v697
  %778 = vst [vmem:[%s2 + $0x38] sm:$0xf] %v698
  %779 = vst [vmem:[%s2 + $0x3c] sm:$0xf] %v699
  %780 = vst [vmem:[%s2 + $0x40] sm:$0xf] %v700
  %781 = vst [vmem:[%s2 + $0x44] sm:$0xf] %v701
  %782 = vst [vmem:[%s2 + $0x48] sm:$0xf] %v702
  %783 = vst [vmem:[%s2 + $0x4c] sm:$0xf] %v703
  %784 = vst [vmem:[%s2 + $0x50] sm:$0xf] %v704
  %785 = vst [vmem:[%s2 + $0x54] sm:$0xf] %v705
  %786 = vst [vmem:[%s2 + $0x58] sm:$0xf] %v706
  %787 = vst [vmem:[%s2 + $0x5c] sm:$0xf] %v707
  %788 = vst [vmem:[%s2 + $0x60] sm:$0xf] %v708
  %789 = vst [vmem:[%s2 + $0x64] sm:$0xf] %v709
  %790 = vst [vmem:[%s2 + $0x68] sm:$0xf] %v710
  %791 = vst [vmem:[%s2 + $0x6c] sm:$0xf] %v711
  %792 = vst [vmem:[%s2 + $0x70] sm:$0xf] %v712
  %793 = vst [vmem:[%s2 + $0x74] sm:$0xf] %v713
  %794 = vst [vmem:[%s2 + $0x78] sm:$0xf] %v714
  %795 = vst [vmem:[%s2 + $0x7c] sm:$0xf] %v715
  %796 = vst [vmem:[%s2 + $0x80] sm:$0xf] %v716
  %797 = vst [vmem:[%s2 + $0x84] sm:$0xf] %v717
  %798 = vst [vmem:[%s2 + $0x88] sm:$0xf] %v718
  %799 = vst [vmem:[%s2 + $0x8c] sm:$0xf] %v719
  %800 = vst [vmem:[%s2 + $0x90] sm:$0xf] %v720
  %801 = vst [vmem:[%s2 + $0x94] sm:$0xf] %v721
  %802 = vst [vmem:[%s2 + $0x98] sm:$0xf] %v722
  %803 = vst [vmem:[%s2 + $0x9c] sm:$0xf] %v723
  %804 = vst [vmem:[%s2 + $0xa0] sm:$0xf] %v724
  %805 = vst [vmem:[%s2 + $0xa4] sm:$0xf] %v725
  %806 = vst [vmem:[%s2 + $0xa8] sm:$0xf] %v726
  %807 = vst [vmem:[%s2 + $0xac] sm:$0xf] %v727
  %808 = vst [vmem:[%s2 + $0xb0] sm:$0xf] %v728
  %809 = vst [vmem:[%s2 + $0xb4] sm:$0xf] %v729
  %810 = vst [vmem:[%s2 + $0xb8] sm:$0xf] %v730
  %811 = vst [vmem:[%s2 + $0xbc] sm:$0xf] %v731
  %812 = vst [vmem:[%s2 + $0xc0] sm:$0xf] %v732
  %813 = vst [vmem:[%s2 + $0xc4] sm:$0xf] %v733
  %814 = vst [vmem:[%s2 + $0xc8] sm:$0xf] %v734
  %815 = vst [vmem:[%s2 + $0xcc] sm:$0xf] %v735
  %816 = vst [vmem:[%s2 + $0xd0] sm:$0xf] %v736
  %817 = vst [vmem:[%s2 + $0xd4] sm:$0xf] %v737
  %818 = vst [vmem:[%s2 + $0xd8] sm:$0xf] %v738
  %819 = vst [vmem:[%s2 + $0xdc] sm:$0xf] %v739
  %820 = vst [vmem:[%s2 + $0xe0] sm:$0xf] %v740
  %821 = vst [vmem:[%s2 + $0xe4] sm:$0xf] %v741
  %822 = vst [vmem:[%s2 + $0xe8] sm:$0xf] %v742
  %823 = vst [vmem:[%s2 + $0xec] sm:$0xf] %v743
  %824 = vst [vmem:[%s2 + $0xf0] sm:$0xf] %v744
  %825 = vst [vmem:[%s2 + $0xf4] sm:$0xf] %v745
  %826 = vst [vmem:[%s2 + $0xf8] sm:$0xf] %v746
  %827 = vst [vmem:[%s2 + $0xfc] sm:$0xf] %v747
  %828 = vst [vmem:[%s2 + $0x100] sm:$0xf] %v748
  %829 = vst [vmem:[%s2 + $0x104] sm:$0xf] %v749
  %830 = vst [vmem:[%s2 + $0x108] sm:$0xf] %v750
  %831 = vst [vmem:[%s2 + $0x10c] sm:$0xf] %v751
  %832 = vst [vmem:[%s2 + $0x110] sm:$0xf] %v752
  %833 = vst [vmem:[%s2 + $0x114] sm:$0xf] %v753
  %834 = vst [vmem:[%s2 + $0x118] sm:$0xf] %v754
  %835 = vst [vmem:[%s2 + $0x11c] sm:$0xf] %v755
  %836 = vst [vmem:[%s2 + $0x120] sm:$0xf] %v756
  %837 = vst [vmem:[%s2 + $0x124] sm:$0xf] %v757
  %838 = vst [vmem:[%s2 + $0x128] sm:$0xf] %v758
  %839 = vst [vmem:[%s2 + $0x12c] sm:$0xf] %v759
  %840 = vst [vmem:[%s2 + $0x130] sm:$0xf] %v760
  %841 = vst [vmem:[%s2 + $0x134] sm:$0xf] %v761
  %842 = vst [vmem:[%s2 + $0x138] sm:$0xf] %v762
  %843 = vst [vmem:[%s2 + $0x13c] sm:$0xf] %v763
  // Predicated region
  $region10: #{unet3d_forward.18} parent=0 // pred_check
    _
  $region11: #{unet3d_forward.18} parent=0 // pred_check_branch
    %845 = sbr.rel (0) target = $region13
  $region12: #{unet3d_forward.18} parent=0 // pred_region
    _
  $region13: #{unet3d_forward.18} parent=0 // pred_fallthru
    _
  // Predicated region
  $region14: #{unet3d_forward.18} parent=0 // pred_check
    _
  $region15: #{unet3d_forward.18} parent=0 // pred_check_branch
    %847 = sbr.rel (0) target = $region17
  $region16: #{unet3d_forward.18} parent=0 // pred_region
    _
  $region17: #{unet3d_forward.18} parent=0 // pred_fallthru
    _

// kernel: unet3d_forward.19
$region0: #{unet3d_forward.19}
  #allocation0 [shape = 'u32[]', space=smem, size = 0x4, offset = 0x4, fixed_abs, tag = 'smem constant byte address 0x4 - core index']
  #allocation1 [shape = 'u32[72,128]{1,0:T(1,128)}', space=vmem, size = 0x9000, scoped, tag = 'internal scratch']
  %s0 = inlined_call_operand.vmem [shape: bf16[640,256], index: 0, kind: input, shape index: {}]
  %s1 = inlined_call_operand.vmem [shape: bf16[256,128], index: 1, kind: input, shape index: {}]
  %s2 = inlined_call_operand.vmem [shape: bf16[640,128], index: 2, kind: output, shape index: {}]
  %s3 = sld [smem:[#allocation0]]
  $region18: #{unet3d_forward.19} parent=0
    _
  %s5 = ssub.s32 1, %s3
  %s6 = scalar_select 0, %s5, %s3
  // Predicated region
  $region2: #{unet3d_forward.19} parent=0 // pred_check
    _
  $region3: #{unet3d_forward.19} parent=0 // pred_check_branch
    %8 = sbr.rel (0) target = $region5
  $region4: #{unet3d_forward.19} parent=0 // pred_region
    _
  $region5: #{unet3d_forward.19} parent=0 // pred_fallthru
    _
  // Predicated region
  $region6: #{unet3d_forward.19} parent=0 // pred_check
    _
  $region7: #{unet3d_forward.19} parent=0 // pred_check_branch
    %10 = sbr.rel (0) target = $region9
  $region8: #{unet3d_forward.19} parent=0 // pred_region
    _
  $region9: #{unet3d_forward.19} parent=0 // pred_fallthru
    _
  %v11 = vld [vmem:[%s0] sm:$0xff]
  %v12 = vld [vmem:[%s0 + $0x8] sm:$0xff]
  %v13 = vld [vmem:[%s0 + $0x10] sm:$0xff]
  %v14 = vld [vmem:[%s0 + $0x18] sm:$0xff]
  %v15 = vld [vmem:[%s0 + $0x20] sm:$0xff]
  %v16 = vld [vmem:[%s0 + $0x28] sm:$0xff]
  %v17 = vld [vmem:[%s0 + $0x30] sm:$0xff]
  %v18 = vld [vmem:[%s0 + $0x38] sm:$0xff]
  %v19 = vld [vmem:[%s0 + $0x40] sm:$0xff]
  %v20 = vld [vmem:[%s0 + $0x48] sm:$0xff]
  %v21 = vld [vmem:[%s0 + $0x50] sm:$0xff]
  %v22 = vld [vmem:[%s0 + $0x58] sm:$0xff]
  %v23 = vld [vmem:[%s0 + $0x60] sm:$0xff]
  %v24 = vld [vmem:[%s0 + $0x68] sm:$0xff]
  %v25 = vld [vmem:[%s0 + $0x70] sm:$0xff]
  %v26 = vld [vmem:[%s0 + $0x78] sm:$0xff]
  %v27 = vld [vmem:[%s0 + $0x80] sm:$0xff]
  %v28 = vld [vmem:[%s0 + $0x88] sm:$0xff]
  %v29 = vld [vmem:[%s0 + $0x90] sm:$0xff]
  %v30 = vld [vmem:[%s0 + $0x98] sm:$0xff]
  %v31 = vld [vmem:[%s0 + $0xa0] sm:$0xff]
  %v32 = vld [vmem:[%s0 + $0xa8] sm:$0xff]
  %v33 = vld [vmem:[%s0 + $0xb0] sm:$0xff]
  %v34 = vld [vmem:[%s0 + $0xb8] sm:$0xff]
  %v35 = vld [vmem:[%s0 + $0xc0] sm:$0xff]
  %v36 = vld [vmem:[%s0 + $0xc8] sm:$0xff]
  %v37 = vld [vmem:[%s0 + $0xd0] sm:$0xff]
  %v38 = vld [vmem:[%s0 + $0xd8] sm:$0xff]
  %v39 = vld [vmem:[%s0 + $0xe0] sm:$0xff]
  %v40 = vld [vmem:[%s0 + $0xe8] sm:$0xff]
  %v41 = vld [vmem:[%s0 + $0xf0] sm:$0xff]
  %v42 = vld [vmem:[%s0 + $0xf8] sm:$0xff]
  %v43 = vld [vmem:[%s0 + $0x100] sm:$0xff]
  %v44 = vld [vmem:[%s0 + $0x108] sm:$0xff]
  %v45 = vld [vmem:[%s0 + $0x110] sm:$0xff]
  %v46 = vld [vmem:[%s0 + $0x118] sm:$0xff]
  %v47 = vld [vmem:[%s0 + $0x120] sm:$0xff]
  %v48 = vld [vmem:[%s0 + $0x128] sm:$0xff]
  %v49 = vld [vmem:[%s0 + $0x130] sm:$0xff]
  %v50 = vld [vmem:[%s0 + $0x138] sm:$0xff]
  %v51 = vld [vmem:[%s0 + $0x140] sm:$0xff]
  %v52 = vld [vmem:[%s0 + $0x148] sm:$0xff]
  %v53 = vld [vmem:[%s0 + $0x150] sm:$0xff]
  %v54 = vld [vmem:[%s0 + $0x158] sm:$0xff]
  %v55 = vld [vmem:[%s0 + $0x160] sm:$0xff]
  %v56 = vld [vmem:[%s0 + $0x168] sm:$0xff]
  %v57 = vld [vmem:[%s0 + $0x170] sm:$0xff]
  %v58 = vld [vmem:[%s0 + $0x178] sm:$0xff]
  %v59 = vld [vmem:[%s0 + $0x180] sm:$0xff]
  %v60 = vld [vmem:[%s0 + $0x188] sm:$0xff]
  %v61 = vld [vmem:[%s0 + $0x190] sm:$0xff]
  %v62 = vld [vmem:[%s0 + $0x198] sm:$0xff]
  %v63 = vld [vmem:[%s0 + $0x1a0] sm:$0xff]
  %v64 = vld [vmem:[%s0 + $0x1a8] sm:$0xff]
  %v65 = vld [vmem:[%s0 + $0x1b0] sm:$0xff]
  %v66 = vld [vmem:[%s0 + $0x1b8] sm:$0xff]
  %v67 = vld [vmem:[%s0 + $0x1c0] sm:$0xff]
  %v68 = vld [vmem:[%s0 + $0x1c8] sm:$0xff]
  %v69 = vld [vmem:[%s0 + $0x1d0] sm:$0xff]
  %v70 = vld [vmem:[%s0 + $0x1d8] sm:$0xff]
  %v71 = vld [vmem:[%s0 + $0x1e0] sm:$0xff]
  %v72 = vld [vmem:[%s0 + $0x1e8] sm:$0xff]
  %v73 = vld [vmem:[%s0 + $0x1f0] sm:$0xff]
  %v74 = vld [vmem:[%s0 + $0x1f8] sm:$0xff]
  %v75 = vld [vmem:[%s0 + $0x200] sm:$0xff]
  %v76 = vld [vmem:[%s0 + $0x208] sm:$0xff]
  %v77 = vld [vmem:[%s0 + $0x210] sm:$0xff]
  %v78 = vld [vmem:[%s0 + $0x218] sm:$0xff]
  %v79 = vld [vmem:[%s0 + $0x220] sm:$0xff]
  %v80 = vld [vmem:[%s0 + $0x228] sm:$0xff]
  %v81 = vld [vmem:[%s0 + $0x230] sm:$0xff]
  %v82 = vld [vmem:[%s0 + $0x238] sm:$0xff]
  %v83 = vld [vmem:[%s0 + $0x240] sm:$0xff]
  %v84 = vld [vmem:[%s0 + $0x248] sm:$0xff]
  %v85 = vld [vmem:[%s0 + $0x250] sm:$0xff]
  %v86 = vld [vmem:[%s0 + $0x258] sm:$0xff]
  %v87 = vld [vmem:[%s0 + $0x260] sm:$0xff]
  %v88 = vld [vmem:[%s0 + $0x268] sm:$0xff]
  %v89 = vld [vmem:[%s0 + $0x270] sm:$0xff]
  %v90 = vld [vmem:[%s0 + $0x278] sm:$0xff]
  %v91 = vld [vmem:[%s1] sm:$0xf]
  %v92 = vld [vmem:[%s1 + $0x4] sm:$0xf]
  %v93 = vld [vmem:[%s1 + $0x8] sm:$0xf]
  %v94 = vld [vmem:[%s1 + $0xc] sm:$0xf]
  %v95 = vld [vmem:[%s1 + $0x10] sm:$0xf]
  %v96 = vld [vmem:[%s1 + $0x14] sm:$0xf]
  %v97 = vld [vmem:[%s1 + $0x18] sm:$0xf]
  %v98 = vld [vmem:[%s1 + $0x1c] sm:$0xf]
  %v99 = vld [vmem:[%s1 + $0x20] sm:$0xf]
  %v100 = vld [vmem:[%s1 + $0x24] sm:$0xf]
  %v101 = vld [vmem:[%s1 + $0x28] sm:$0xf]
  %v102 = vld [vmem:[%s1 + $0x2c] sm:$0xf]
  %v103 = vld [vmem:[%s1 + $0x30] sm:$0xf]
  %v104 = vld [vmem:[%s1 + $0x34] sm:$0xf]
  %v105 = vld [vmem:[%s1 + $0x38] sm:$0xf]
  %v106 = vld [vmem:[%s1 + $0x3c] sm:$0xf]
  %v107 = vld [vmem:[%s1 + $0x40] sm:$0xf]
  %v108 = vld [vmem:[%s1 + $0x44] sm:$0xf]
  %v109 = vld [vmem:[%s1 + $0x48] sm:$0xf]
  %v110 = vld [vmem:[%s1 + $0x4c] sm:$0xf]
  %v111 = vld [vmem:[%s1 + $0x50] sm:$0xf]
  %v112 = vld [vmem:[%s1 + $0x54] sm:$0xf]
  %v113 = vld [vmem:[%s1 + $0x58] sm:$0xf]
  %v114 = vld [vmem:[%s1 + $0x5c] sm:$0xf]
  %v115 = vld [vmem:[%s1 + $0x60] sm:$0xf]
  %v116 = vld [vmem:[%s1 + $0x64] sm:$0xf]
  %v117 = vld [vmem:[%s1 + $0x68] sm:$0xf]
  %v118 = vld [vmem:[%s1 + $0x6c] sm:$0xf]
  %v119 = vld [vmem:[%s1 + $0x70] sm:$0xf]
  %v120 = vld [vmem:[%s1 + $0x74] sm:$0xf]
  %v121 = vld [vmem:[%s1 + $0x78] sm:$0xf]
  %v122 = vld [vmem:[%s1 + $0x7c] sm:$0xf]
  %v203 = vunpack.c.l.b16 %v11
  %v204 = vunpack.c.h.b16 %v11
  %v205 = vunpack.c.l.b16 %v12
  %v206 = vunpack.c.h.b16 %v12
  %v207 = vunpack.c.l.b16 %v13
  %v208 = vunpack.c.h.b16 %v13
  %v209 = vunpack.c.l.b16 %v14
  %v210 = vunpack.c.h.b16 %v14
  %v211 = vunpack.c.l.b16 %v15
  %v212 = vunpack.c.h.b16 %v15
  %v213 = vunpack.c.l.b16 %v16
  %v214 = vunpack.c.h.b16 %v16
  %v215 = vunpack.c.l.b16 %v17
  %v216 = vunpack.c.h.b16 %v17
  %v217 = vunpack.c.l.b16 %v18
  %v218 = vunpack.c.h.b16 %v18
  %v219 = vunpack.c.l.b16 %v19
  %v220 = vunpack.c.h.b16 %v19
  %v221 = vunpack.c.l.b16 %v20
  %v222 = vunpack.c.h.b16 %v20
  %v223 = vunpack.c.l.b16 %v21
  %v224 = vunpack.c.h.b16 %v21
  %v225 = vunpack.c.l.b16 %v22
  %v226 = vunpack.c.h.b16 %v22
  %v227 = vunpack.c.l.b16 %v23
  %v228 = vunpack.c.h.b16 %v23
  %v229 = vunpack.c.l.b16 %v24
  %v230 = vunpack.c.h.b16 %v24
  %v231 = vunpack.c.l.b16 %v25
  %v232 = vunpack.c.h.b16 %v25
  %v233 = vunpack.c.l.b16 %v26
  %v234 = vunpack.c.h.b16 %v26
  %v235 = vunpack.c.l.b16 %v27
  %v236 = vunpack.c.h.b16 %v27
  %v237 = vunpack.c.l.b16 %v28
  %v238 = vunpack.c.h.b16 %v28
  %v239 = vunpack.c.l.b16 %v29
  %v240 = vunpack.c.h.b16 %v29
  %v241 = vunpack.c.l.b16 %v30
  %v242 = vunpack.c.h.b16 %v30
  %v243 = vunpack.c.l.b16 %v31
  %v244 = vunpack.c.h.b16 %v31
  %v245 = vunpack.c.l.b16 %v32
  %v246 = vunpack.c.h.b16 %v32
  %v247 = vunpack.c.l.b16 %v33
  %v248 = vunpack.c.h.b16 %v33
  %v249 = vunpack.c.l.b16 %v34
  %v250 = vunpack.c.h.b16 %v34
  %v251 = vunpack.c.l.b16 %v35
  %v252 = vunpack.c.h.b16 %v35
  %v253 = vunpack.c.l.b16 %v36
  %v254 = vunpack.c.h.b16 %v36
  %v255 = vunpack.c.l.b16 %v37
  %v256 = vunpack.c.h.b16 %v37
  %v257 = vunpack.c.l.b16 %v38
  %v258 = vunpack.c.h.b16 %v38
  %v259 = vunpack.c.l.b16 %v39
  %v260 = vunpack.c.h.b16 %v39
  %v261 = vunpack.c.l.b16 %v40
  %v262 = vunpack.c.h.b16 %v40
  %v263 = vunpack.c.l.b16 %v41
  %v264 = vunpack.c.h.b16 %v41
  %v265 = vunpack.c.l.b16 %v42
  %v266 = vunpack.c.h.b16 %v42
  %v267 = vunpack.c.l.b16 %v43
  %v268 = vunpack.c.h.b16 %v43
  %v269 = vunpack.c.l.b16 %v44
  %v270 = vunpack.c.h.b16 %v44
  %v271 = vunpack.c.l.b16 %v45
  %v272 = vunpack.c.h.b16 %v45
  %v273 = vunpack.c.l.b16 %v46
  %v274 = vunpack.c.h.b16 %v46
  %v275 = vunpack.c.l.b16 %v47
  %v276 = vunpack.c.h.b16 %v47
  %v277 = vunpack.c.l.b16 %v48
  %v278 = vunpack.c.h.b16 %v48
  %v279 = vunpack.c.l.b16 %v49
  %v280 = vunpack.c.h.b16 %v49
  %v281 = vunpack.c.l.b16 %v50
  %v282 = vunpack.c.h.b16 %v50
  %v283 = vunpack.c.l.b16 %v51
  %v284 = vunpack.c.h.b16 %v51
  %v285 = vunpack.c.l.b16 %v52
  %v286 = vunpack.c.h.b16 %v52
  %v287 = vunpack.c.l.b16 %v53
  %v288 = vunpack.c.h.b16 %v53
  %v289 = vunpack.c.l.b16 %v54
  %v290 = vunpack.c.h.b16 %v54
  %v291 = vunpack.c.l.b16 %v55
  %v292 = vunpack.c.h.b16 %v55
  %v293 = vunpack.c.l.b16 %v56
  %v294 = vunpack.c.h.b16 %v56
  %v295 = vunpack.c.l.b16 %v57
  %v296 = vunpack.c.h.b16 %v57
  %v297 = vunpack.c.l.b16 %v58
  %v298 = vunpack.c.h.b16 %v58
  %v299 = vunpack.c.l.b16 %v59
  %v300 = vunpack.c.h.b16 %v59
  %v301 = vunpack.c.l.b16 %v60
  %v302 = vunpack.c.h.b16 %v60
  %v303 = vunpack.c.l.b16 %v61
  %v304 = vunpack.c.h.b16 %v61
  %v305 = vunpack.c.l.b16 %v62
  %v306 = vunpack.c.h.b16 %v62
  %v307 = vunpack.c.l.b16 %v63
  %v308 = vunpack.c.h.b16 %v63
  %v309 = vunpack.c.l.b16 %v64
  %v310 = vunpack.c.h.b16 %v64
  %v311 = vunpack.c.l.b16 %v65
  %v312 = vunpack.c.h.b16 %v65
  %v313 = vunpack.c.l.b16 %v66
  %v314 = vunpack.c.h.b16 %v66
  %v315 = vunpack.c.l.b16 %v67
  %v316 = vunpack.c.h.b16 %v67
  %v317 = vunpack.c.l.b16 %v68
  %v318 = vunpack.c.h.b16 %v68
  %v319 = vunpack.c.l.b16 %v69
  %v320 = vunpack.c.h.b16 %v69
  %v321 = vunpack.c.l.b16 %v70
  %v322 = vunpack.c.h.b16 %v70
  %v323 = vunpack.c.l.b16 %v71
  %v324 = vunpack.c.h.b16 %v71
  %v325 = vunpack.c.l.b16 %v72
  %v326 = vunpack.c.h.b16 %v72
  %v327 = vunpack.c.l.b16 %v73
  %v328 = vunpack.c.h.b16 %v73
  %v329 = vunpack.c.l.b16 %v74
  %v330 = vunpack.c.h.b16 %v74
  %v331 = vunpack.c.l.b16 %v75
  %v332 = vunpack.c.h.b16 %v75
  %v333 = vunpack.c.l.b16 %v76
  %v334 = vunpack.c.h.b16 %v76
  %v335 = vunpack.c.l.b16 %v77
  %v336 = vunpack.c.h.b16 %v77
  %v337 = vunpack.c.l.b16 %v78
  %v338 = vunpack.c.h.b16 %v78
  %v339 = vunpack.c.l.b16 %v79
  %v340 = vunpack.c.h.b16 %v79
  %v341 = vunpack.c.l.b16 %v80
  %v342 = vunpack.c.h.b16 %v80
  %v343 = vunpack.c.l.b16 %v81
  %v344 = vunpack.c.h.b16 %v81
  %v345 = vunpack.c.l.b16 %v82
  %v346 = vunpack.c.h.b16 %v82
  %v347 = vunpack.c.l.b16 %v83
  %v348 = vunpack.c.h.b16 %v83
  %v349 = vunpack.c.l.b16 %v84
  %v350 = vunpack.c.h.b16 %v84
  %v351 = vunpack.c.l.b16 %v85
  %v352 = vunpack.c.h.b16 %v85
  %v353 = vunpack.c.l.b16 %v86
  %v354 = vunpack.c.h.b16 %v86
  %v355 = vunpack.c.l.b16 %v87
  %v356 = vunpack.c.h.b16 %v87
  %v357 = vunpack.c.l.b16 %v88
  %v358 = vunpack.c.h.b16 %v88
  %v359 = vunpack.c.l.b16 %v89
  %v360 = vunpack.c.h.b16 %v89
  %v361 = vunpack.c.l.b16 %v90
  %v362 = vunpack.c.h.b16 %v90
  %v363 = vpack.c.b16 %v205, %v203
  %v364 = vpack.c.b16 %v206, %v204
  %v365 = vpack.c.b16 %v209, %v207
  %v366 = vpack.c.b16 %v210, %v208
  %v367 = vpack.c.b16 %v213, %v211
  %v368 = vpack.c.b16 %v214, %v212
  %v369 = vpack.c.b16 %v217, %v215
  %v370 = vpack.c.b16 %v218, %v216
  %v371 = vpack.c.b16 %v221, %v219
  %v372 = vpack.c.b16 %v222, %v220
  %v373 = vpack.c.b16 %v225, %v223
  %v374 = vpack.c.b16 %v226, %v224
  %v375 = vpack.c.b16 %v229, %v227
  %v376 = vpack.c.b16 %v230, %v228
  %v377 = vpack.c.b16 %v233, %v231
  %v378 = vpack.c.b16 %v234, %v232
  %v379 = vpack.c.b16 %v237, %v235
  %v380 = vpack.c.b16 %v238, %v236
  %v381 = vpack.c.b16 %v241, %v239
  %v382 = vpack.c.b16 %v242, %v240
  %v383 = vpack.c.b16 %v245, %v243
  %v384 = vpack.c.b16 %v246, %v244
  %v385 = vpack.c.b16 %v249, %v247
  %v386 = vpack.c.b16 %v250, %v248
  %v387 = vpack.c.b16 %v253, %v251
  %v388 = vpack.c.b16 %v254, %v252
  %v389 = vpack.c.b16 %v257, %v255
  %v390 = vpack.c.b16 %v258, %v256
  %v391 = vpack.c.b16 %v261, %v259
  %v392 = vpack.c.b16 %v262, %v260
  %v393 = vpack.c.b16 %v265, %v263
  %v394 = vpack.c.b16 %v266, %v264
  %v395 = vpack.c.b16 %v269, %v267
  %v396 = vpack.c.b16 %v270, %v268
  %v397 = vpack.c.b16 %v273, %v271
  %v398 = vpack.c.b16 %v274, %v272
  %v399 = vpack.c.b16 %v277, %v275
  %v400 = vpack.c.b16 %v278, %v276
  %v401 = vpack.c.b16 %v281, %v279
  %v402 = vpack.c.b16 %v282, %v280
  %v403 = vpack.c.b16 %v285, %v283
  %v404 = vpack.c.b16 %v286, %v284
  %v405 = vpack.c.b16 %v289, %v287
  %v406 = vpack.c.b16 %v290, %v288
  %v407 = vpack.c.b16 %v293, %v291
  %v408 = vpack.c.b16 %v294, %v292
  %v409 = vpack.c.b16 %v297, %v295
  %v410 = vpack.c.b16 %v298, %v296
  %v411 = vpack.c.b16 %v301, %v299
  %v412 = vpack.c.b16 %v302, %v300
  %v413 = vpack.c.b16 %v305, %v303
  %v414 = vpack.c.b16 %v306, %v304
  %v415 = vpack.c.b16 %v309, %v307
  %v416 = vpack.c.b16 %v310, %v308
  %v417 = vpack.c.b16 %v313, %v311
  %v418 = vpack.c.b16 %v314, %v312
  %v419 = vpack.c.b16 %v317, %v315
  %v420 = vpack.c.b16 %v318, %v316
  %v421 = vpack.c.b16 %v321, %v319
  %v422 = vpack.c.b16 %v322, %v320
  %v423 = vpack.c.b16 %v325, %v323
  %v424 = vpack.c.b16 %v326, %v324
  %v425 = vpack.c.b16 %v329, %v327
  %v426 = vpack.c.b16 %v330, %v328
  %v427 = vpack.c.b16 %v333, %v331
  %v428 = vpack.c.b16 %v334, %v332
  %v429 = vpack.c.b16 %v337, %v335
  %v430 = vpack.c.b16 %v338, %v336
  %v431 = vpack.c.b16 %v341, %v339
  %v432 = vpack.c.b16 %v342, %v340
  %v433 = vpack.c.b16 %v345, %v343
  %v434 = vpack.c.b16 %v346, %v344
  %v435 = vpack.c.b16 %v349, %v347
  %v436 = vpack.c.b16 %v350, %v348
  %v437 = vpack.c.b16 %v353, %v351
  %v438 = vpack.c.b16 %v354, %v352
  %v439 = vpack.c.b16 %v357, %v355
  %v440 = vpack.c.b16 %v358, %v356
  %v441 = vpack.c.b16 %v361, %v359
  %v442 = vpack.c.b16 %v362, %v360
  %v555 = vunpack.c.l.b16 %v91
  %v556 = vunpack.c.l.b16 %v92
  %v557 = vunpack.c.l.b16 %v93
  %v558 = vunpack.c.l.b16 %v94
  %v559 = vunpack.c.l.b16 %v95
  %v560 = vunpack.c.l.b16 %v96
  %v561 = vunpack.c.l.b16 %v97
  %v562 = vunpack.c.l.b16 %v98
  %v563 = vunpack.c.l.b16 %v99
  %v564 = vunpack.c.l.b16 %v100
  %v565 = vunpack.c.l.b16 %v101
  %v566 = vunpack.c.l.b16 %v102
  %v567 = vunpack.c.l.b16 %v103
  %v568 = vunpack.c.l.b16 %v104
  %v569 = vunpack.c.l.b16 %v105
  %v570 = vunpack.c.l.b16 %v106
  %v571 = vunpack.c.l.b16 %v107
  %v572 = vunpack.c.l.b16 %v108
  %v573 = vunpack.c.l.b16 %v109
  %v574 = vunpack.c.l.b16 %v110
  %v575 = vunpack.c.l.b16 %v111
  %v576 = vunpack.c.l.b16 %v112
  %v577 = vunpack.c.l.b16 %v113
  %v578 = vunpack.c.l.b16 %v114
  %v579 = vunpack.c.l.b16 %v115
  %v580 = vunpack.c.l.b16 %v116
  %v581 = vunpack.c.l.b16 %v117
  %v582 = vunpack.c.l.b16 %v118
  %v583 = vunpack.c.l.b16 %v119
  %v584 = vunpack.c.l.b16 %v120
  %v585 = vunpack.c.l.b16 %v121
  %v586 = vunpack.c.l.b16 %v122
  %v587 = vpack.c.b16 %v556, %v555
  %v588 = vpack.c.b16 %v558, %v557
  %v589 = vpack.c.b16 %v560, %v559
  %v590 = vpack.c.b16 %v562, %v561
  %v591 = vpack.c.b16 %v564, %v563
  %v592 = vpack.c.b16 %v566, %v565
  %v593 = vpack.c.b16 %v568, %v567
  %v594 = vpack.c.b16 %v570, %v569
  %v595 = vpack.c.b16 %v572, %v571
  %v596 = vpack.c.b16 %v574, %v573
  %v597 = vpack.c.b16 %v576, %v575
  %v598 = vpack.c.b16 %v578, %v577
  %v599 = vpack.c.b16 %v580, %v579
  %v600 = vpack.c.b16 %v582, %v581
  %v601 = vpack.c.b16 %v584, %v583
  %v602 = vpack.c.b16 %v586, %v585
  %619 = vmatpush.bf16.msra.mxu0 %v594
  %620 = vmatpush.bf16.msra.mxu0 %v593
  %621 = vmatpush.bf16.msra.mxu0 %v592
  %622 = vmatpush.bf16.msra.mxu0 %v591
  %623 = vmatpush.bf16.msra.mxu0 %v590
  %624 = vmatpush.bf16.msra.mxu0 %v589
  %625 = vmatpush.bf16.msra.mxu0 %v588
  %626 = vmatpush.bf16.msra.mxu0 %v587
  %627 = vmatmul.bf16.gmra.mxu0 %v363
  %v628 = vpop.f32.mrf.mxu0
  %v629 = vadd.f32 0.0, %v628
  %v630 = vpop.f32.mrf.mxu0
  %v631 = vadd.f32 0.0, %v630
  %632 = vmatmul.bf16.gmra.mxu0 %v365
  %v633 = vpop.f32.mrf.mxu0
  %v634 = vadd.f32 0.0, %v633
  %v635 = vpop.f32.mrf.mxu0
  %v636 = vadd.f32 0.0, %v635
  %637 = vmatmul.bf16.gmra.mxu0 %v367
  %v638 = vpop.f32.mrf.mxu0
  %v639 = vadd.f32 0.0, %v638
  %v640 = vpop.f32.mrf.mxu0
  %v641 = vadd.f32 0.0, %v640
  %642 = vmatmul.bf16.gmra.mxu0 %v369
  %v643 = vpop.f32.mrf.mxu0
  %v644 = vadd.f32 0.0, %v643
  %v645 = vpop.f32.mrf.mxu0
  %v646 = vadd.f32 0.0, %v645
  %647 = vmatmul.bf16.gmra.mxu0 %v371
  %v648 = vpop.f32.mrf.mxu0
  %v649 = vadd.f32 0.0, %v648
  %v650 = vpop.f32.mrf.mxu0
  %v651 = vadd.f32 0.0, %v650
  %652 = vmatmul.bf16.gmra.mxu0 %v373
  %v653 = vpop.f32.mrf.mxu0
  %v654 = vadd.f32 0.0, %v653
  %v655 = vpop.f32.mrf.mxu0
  %v656 = vadd.f32 0.0, %v655
  %657 = vmatmul.bf16.gmra.mxu0 %v375
  %v658 = vpop.f32.mrf.mxu0
  %v659 = vadd.f32 0.0, %v658
  %v660 = vpop.f32.mrf.mxu0
  %v661 = vadd.f32 0.0, %v660
  %662 = vmatmul.bf16.gmra.mxu0 %v377
  %v663 = vpop.f32.mrf.mxu0
  %v664 = vadd.f32 0.0, %v663
  %v665 = vpop.f32.mrf.mxu0
  %v666 = vadd.f32 0.0, %v665
  %667 = vmatmul.bf16.gmra.mxu0 %v379
  %v668 = vpop.f32.mrf.mxu0
  %v669 = vadd.f32 0.0, %v668
  %v670 = vpop.f32.mrf.mxu0
  %v671 = vadd.f32 0.0, %v670
  %672 = vmatmul.bf16.gmra.mxu0 %v381
  %v673 = vpop.f32.mrf.mxu0
  %v674 = vadd.f32 0.0, %v673
  %v675 = vpop.f32.mrf.mxu0
  %v676 = vadd.f32 0.0, %v675
  %677 = vmatmul.bf16.gmra.mxu0 %v383
  %v678 = vpop.f32.mrf.mxu0
  %v679 = vadd.f32 0.0, %v678
  %v680 = vpop.f32.mrf.mxu0
  %v681 = vadd.f32 0.0, %v680
  %682 = vmatmul.bf16.gmra.mxu0 %v385
  %v683 = vpop.f32.mrf.mxu0
  %v684 = vadd.f32 0.0, %v683
  %v685 = vpop.f32.mrf.mxu0
  %v686 = vadd.f32 0.0, %v685
  %687 = vmatmul.bf16.gmra.mxu0 %v387
  %v688 = vpop.f32.mrf.mxu0
  %v689 = vadd.f32 0.0, %v688
  %v690 = vpop.f32.mrf.mxu0
  %v691 = vadd.f32 0.0, %v690
  %692 = vmatmul.bf16.gmra.mxu0 %v389
  %v693 = vpop.f32.mrf.mxu0
  %v694 = vadd.f32 0.0, %v693
  %v695 = vpop.f32.mrf.mxu0
  %v696 = vadd.f32 0.0, %v695
  %697 = vmatmul.bf16.gmra.mxu0 %v391
  %v698 = vpop.f32.mrf.mxu0
  %v699 = vadd.f32 0.0, %v698
  %v700 = vpop.f32.mrf.mxu0
  %v701 = vadd.f32 0.0, %v700
  %702 = vmatmul.bf16.gmra.mxu0 %v393
  %v703 = vpop.f32.mrf.mxu0
  %v704 = vadd.f32 0.0, %v703
  %v705 = vpop.f32.mrf.mxu0
  %v706 = vadd.f32 0.0, %v705
  %707 = vmatmul.bf16.gmra.mxu0 %v395
  %v708 = vpop.f32.mrf.mxu0
  %v709 = vadd.f32 0.0, %v708
  %v710 = vpop.f32.mrf.mxu0
  %v711 = vadd.f32 0.0, %v710
  %712 = vmatmul.bf16.gmra.mxu0 %v397
  %v713 = vpop.f32.mrf.mxu0
  %v714 = vadd.f32 0.0, %v713
  %v715 = vpop.f32.mrf.mxu0
  %v716 = vadd.f32 0.0, %v715
  %717 = vmatmul.bf16.gmra.mxu0 %v399
  %v718 = vpop.f32.mrf.mxu0
  %v719 = vadd.f32 0.0, %v718
  %v720 = vpop.f32.mrf.mxu0
  %v721 = vadd.f32 0.0, %v720
  %722 = vmatmul.bf16.gmra.mxu0 %v401
  %v723 = vpop.f32.mrf.mxu0
  %v724 = vadd.f32 0.0, %v723
  %v725 = vpop.f32.mrf.mxu0
  %v726 = vadd.f32 0.0, %v725
  %727 = vmatmul.bf16.gmra.mxu0 %v403
  %v728 = vpop.f32.mrf.mxu0
  %v729 = vadd.f32 0.0, %v728
  %v730 = vpop.f32.mrf.mxu0
  %v731 = vadd.f32 0.0, %v730
  %732 = vmatmul.bf16.gmra.mxu0 %v405
  %v733 = vpop.f32.mrf.mxu0
  %v734 = vadd.f32 0.0, %v733
  %v735 = vpop.f32.mrf.mxu0
  %v736 = vadd.f32 0.0, %v735
  %737 = vmatmul.bf16.gmra.mxu0 %v407
  %v738 = vpop.f32.mrf.mxu0
  %v739 = vadd.f32 0.0, %v738
  %v740 = vpop.f32.mrf.mxu0
  %v741 = vadd.f32 0.0, %v740
  %742 = vmatmul.bf16.gmra.mxu0 %v409
  %v743 = vpop.f32.mrf.mxu0
  %v744 = vadd.f32 0.0, %v743
  %v745 = vpop.f32.mrf.mxu0
  %v746 = vadd.f32 0.0, %v745
  %747 = vmatmul.bf16.gmra.mxu0 %v411
  %v748 = vpop.f32.mrf.mxu0
  %v749 = vadd.f32 0.0, %v748
  %v750 = vpop.f32.mrf.mxu0
  %v751 = vadd.f32 0.0, %v750
  %752 = vmatmul.bf16.gmra.mxu0 %v413
  %v753 = vpop.f32.mrf.mxu0
  %v754 = vadd.f32 0.0, %v753
  %v755 = vpop.f32.mrf.mxu0
  %v756 = vadd.f32 0.0, %v755
  %757 = vmatmul.bf16.gmra.mxu0 %v415
  %v758 = vpop.f32.mrf.mxu0
  %v759 = vadd.f32 0.0, %v758
  %v760 = vpop.f32.mrf.mxu0
  %v761 = vadd.f32 0.0, %v760
  %762 = vmatmul.bf16.gmra.mxu0 %v417
  %v763 = vpop.f32.mrf.mxu0
  %v764 = vadd.f32 0.0, %v763
  %v765 = vpop.f32.mrf.mxu0
  %v766 = vadd.f32 0.0, %v765
  %767 = vmatmul.bf16.gmra.mxu0 %v419
  %v768 = vpop.f32.mrf.mxu0
  %v769 = vadd.f32 0.0, %v768
  %v770 = vpop.f32.mrf.mxu0
  %v771 = vadd.f32 0.0, %v770
  %772 = vmatmul.bf16.gmra.mxu0 %v421
  %v773 = vpop.f32.mrf.mxu0
  %v774 = vadd.f32 0.0, %v773
  %v775 = vpop.f32.mrf.mxu0
  %v776 = vadd.f32 0.0, %v775
  %777 = vmatmul.bf16.gmra.mxu0 %v423
  %v778 = vpop.f32.mrf.mxu0
  %v779 = vadd.f32 0.0, %v778
  %v780 = vpop.f32.mrf.mxu0
  %v781 = vadd.f32 0.0, %v780
  %782 = vmatmul.bf16.gmra.mxu0 %v425
  %v783 = vpop.f32.mrf.mxu0
  %v784 = vadd.f32 0.0, %v783
  %v785 = vpop.f32.mrf.mxu0
  %v786 = vadd.f32 0.0, %v785
  %787 = vmatmul.bf16.gmra.mxu0 %v427
  %v788 = vpop.f32.mrf.mxu0
  %v789 = vadd.f32 0.0, %v788
  %v790 = vpop.f32.mrf.mxu0
  %v791 = vadd.f32 0.0, %v790
  %792 = vmatmul.bf16.gmra.mxu0 %v429
  %v793 = vpop.f32.mrf.mxu0
  %v794 = vadd.f32 0.0, %v793
  %v795 = vpop.f32.mrf.mxu0
  %v796 = vadd.f32 0.0, %v795
  %797 = vmatmul.bf16.gmra.mxu0 %v431
  %v798 = vpop.f32.mrf.mxu0
  %v799 = vadd.f32 0.0, %v798
  %v800 = vpop.f32.mrf.mxu0
  %v801 = vadd.f32 0.0, %v800
  %802 = vmatmul.bf16.gmra.mxu0 %v433
  %v803 = vpop.f32.mrf.mxu0
  %v804 = vadd.f32 0.0, %v803
  %v805 = vpop.f32.mrf.mxu0
  %v806 = vadd.f32 0.0, %v805
  %807 = vmatmul.bf16.gmra.mxu0 %v435
  %v808 = vpop.f32.mrf.mxu0
  %v809 = vadd.f32 0.0, %v808
  %v810 = vpop.f32.mrf.mxu0
  %v811 = vadd.f32 0.0, %v810
  %812 = vmatmul.bf16.gmra.mxu0 %v437
  %v813 = vpop.f32.mrf.mxu0
  %v814 = vadd.f32 0.0, %v813
  %v815 = vpop.f32.mrf.mxu0
  %v816 = vadd.f32 0.0, %v815
  %817 = vmatmul.bf16.gmra.mxu0 %v439
  %v818 = vpop.f32.mrf.mxu0
  %v819 = vadd.f32 0.0, %v818
  %v820 = vpop.f32.mrf.mxu0
  %v821 = vadd.f32 0.0, %v820
  %822 = vmatmul.bf16.gmra.mxu0 %v441
  %v823 = vpop.f32.mrf.mxu0
  %v824 = vadd.f32 0.0, %v823
  %v825 = vpop.f32.mrf.mxu0
  %v826 = vadd.f32 0.0, %v825
  %827 = vdwg.mxu0
  %828 = vmatpush.bf16.msra.mxu0 %v602
  %829 = vmatpush.bf16.msra.mxu0 %v601
  %830 = vmatpush.bf16.msra.mxu0 %v600
  %831 = vmatpush.bf16.msra.mxu0 %v599
  %832 = vmatpush.bf16.msra.mxu0 %v598
  %833 = vmatpush.bf16.msra.mxu0 %v597
  %834 = vmatpush.bf16.msra.mxu0 %v596
  %835 = vmatpush.bf16.msra.mxu0 %v595
  %836 = vmatmul.bf16.gmra.mxu0 %v364
  %v837 = vpop.f32.mrf.mxu0
  %v838 = vadd.f32 %v629, %v837
  %v839 = vpop.f32.mrf.mxu0
  %v840 = vadd.f32 %v631, %v839
  %841 = vmatmul.bf16.gmra.mxu0 %v366
  %v842 = vpop.f32.mrf.mxu0
  %v843 = vadd.f32 %v634, %v842
  %v844 = vpop.f32.mrf.mxu0
  %v845 = vadd.f32 %v636, %v844
  %846 = vmatmul.bf16.gmra.mxu0 %v368
  %v847 = vpop.f32.mrf.mxu0
  %v848 = vadd.f32 %v639, %v847
  %v849 = vpop.f32.mrf.mxu0
  %v850 = vadd.f32 %v641, %v849
  %851 = vmatmul.bf16.gmra.mxu0 %v370
  %v852 = vpop.f32.mrf.mxu0
  %v853 = vadd.f32 %v644, %v852
  %v854 = vpop.f32.mrf.mxu0
  %v855 = vadd.f32 %v646, %v854
  %856 = vmatmul.bf16.gmra.mxu0 %v372
  %v857 = vpop.f32.mrf.mxu0
  %v858 = vadd.f32 %v649, %v857
  %v859 = vpop.f32.mrf.mxu0
  %v860 = vadd.f32 %v651, %v859
  %861 = vmatmul.bf16.gmra.mxu0 %v374
  %v862 = vpop.f32.mrf.mxu0
  %v863 = vadd.f32 %v654, %v862
  %v864 = vpop.f32.mrf.mxu0
  %v865 = vadd.f32 %v656, %v864
  %866 = vmatmul.bf16.gmra.mxu0 %v376
  %v867 = vpop.f32.mrf.mxu0
  %v868 = vadd.f32 %v659, %v867
  %v869 = vpop.f32.mrf.mxu0
  %v870 = vadd.f32 %v661, %v869
  %871 = vmatmul.bf16.gmra.mxu0 %v378
  %v872 = vpop.f32.mrf.mxu0
  %v873 = vadd.f32 %v664, %v872
  %v874 = vpop.f32.mrf.mxu0
  %v875 = vadd.f32 %v666, %v874
  %876 = vmatmul.bf16.gmra.mxu0 %v380
  %v877 = vpop.f32.mrf.mxu0
  %v878 = vadd.f32 %v669, %v877
  %v879 = vpop.f32.mrf.mxu0
  %v880 = vadd.f32 %v671, %v879
  %881 = vmatmul.bf16.gmra.mxu0 %v382
  %v882 = vpop.f32.mrf.mxu0
  %v883 = vadd.f32 %v674, %v882
  %v884 = vpop.f32.mrf.mxu0
  %v885 = vadd.f32 %v676, %v884
  %886 = vmatmul.bf16.gmra.mxu0 %v384
  %v887 = vpop.f32.mrf.mxu0
  %v888 = vadd.f32 %v679, %v887
  %v889 = vpop.f32.mrf.mxu0
  %v890 = vadd.f32 %v681, %v889
  %891 = vmatmul.bf16.gmra.mxu0 %v386
  %v892 = vpop.f32.mrf.mxu0
  %v893 = vadd.f32 %v684, %v892
  %v894 = vpop.f32.mrf.mxu0
  %v895 = vadd.f32 %v686, %v894
  %896 = vmatmul.bf16.gmra.mxu0 %v388
  %v897 = vpop.f32.mrf.mxu0
  %v898 = vadd.f32 %v689, %v897
  %v899 = vpop.f32.mrf.mxu0
  %v900 = vadd.f32 %v691, %v899
  %901 = vmatmul.bf16.gmra.mxu0 %v390
  %v902 = vpop.f32.mrf.mxu0
  %v903 = vadd.f32 %v694, %v902
  %v904 = vpop.f32.mrf.mxu0
  %v905 = vadd.f32 %v696, %v904
  %906 = vmatmul.bf16.gmra.mxu0 %v392
  %v907 = vpop.f32.mrf.mxu0
  %v908 = vadd.f32 %v699, %v907
  %v909 = vpop.f32.mrf.mxu0
  %v910 = vadd.f32 %v701, %v909
  %911 = vmatmul.bf16.gmra.mxu0 %v394
  %v912 = vpop.f32.mrf.mxu0
  %v913 = vadd.f32 %v704, %v912
  %v914 = vpop.f32.mrf.mxu0
  %v915 = vadd.f32 %v706, %v914
  %916 = vmatmul.bf16.gmra.mxu0 %v396
  %v917 = vpop.f32.mrf.mxu0
  %v918 = vadd.f32 %v709, %v917
  %v919 = vpop.f32.mrf.mxu0
  %v920 = vadd.f32 %v711, %v919
  %921 = vmatmul.bf16.gmra.mxu0 %v398
  %v922 = vpop.f32.mrf.mxu0
  %v923 = vadd.f32 %v714, %v922
  %v924 = vpop.f32.mrf.mxu0
  %v925 = vadd.f32 %v716, %v924
  %926 = vmatmul.bf16.gmra.mxu0 %v400
  %v927 = vpop.f32.mrf.mxu0
  %v928 = vadd.f32 %v719, %v927
  %v929 = vpop.f32.mrf.mxu0
  %v930 = vadd.f32 %v721, %v929
  %931 = vmatmul.bf16.gmra.mxu0 %v402
  %v932 = vpop.f32.mrf.mxu0
  %v933 = vadd.f32 %v724, %v932
  %v934 = vpop.f32.mrf.mxu0
  %v935 = vadd.f32 %v726, %v934
  %936 = vmatmul.bf16.gmra.mxu0 %v404
  %v937 = vpop.f32.mrf.mxu0
  %v938 = vadd.f32 %v729, %v937
  %v939 = vpop.f32.mrf.mxu0
  %v940 = vadd.f32 %v731, %v939
  %941 = vmatmul.bf16.gmra.mxu0 %v406
  %v942 = vpop.f32.mrf.mxu0
  %v943 = vadd.f32 %v734, %v942
  %v944 = vpop.f32.mrf.mxu0
  %v945 = vadd.f32 %v736, %v944
  %946 = vmatmul.bf16.gmra.mxu0 %v408
  %v947 = vpop.f32.mrf.mxu0
  %v948 = vadd.f32 %v739, %v947
  %v949 = vpop.f32.mrf.mxu0
  %v950 = vadd.f32 %v741, %v949
  %951 = vmatmul.bf16.gmra.mxu0 %v410
  %v952 = vpop.f32.mrf.mxu0
  %v953 = vadd.f32 %v744, %v952
  %v954 = vpop.f32.mrf.mxu0
  %v955 = vadd.f32 %v746, %v954
  %956 = vmatmul.bf16.gmra.mxu0 %v412
  %v957 = vpop.f32.mrf.mxu0
  %v958 = vadd.f32 %v749, %v957
  %v959 = vpop.f32.mrf.mxu0
  %v960 = vadd.f32 %v751, %v959
  %961 = vmatmul.bf16.gmra.mxu0 %v414
  %v962 = vpop.f32.mrf.mxu0
  %v963 = vadd.f32 %v754, %v962
  %v964 = vpop.f32.mrf.mxu0
  %v965 = vadd.f32 %v756, %v964
  %966 = vmatmul.bf16.gmra.mxu0 %v416
  %v967 = vpop.f32.mrf.mxu0
  %v968 = vadd.f32 %v759, %v967
  %v969 = vpop.f32.mrf.mxu0
  %v970 = vadd.f32 %v761, %v969
  %971 = vmatmul.bf16.gmra.mxu0 %v418
  %v972 = vpop.f32.mrf.mxu0
  %v973 = vadd.f32 %v764, %v972
  %v974 = vpop.f32.mrf.mxu0
  %v975 = vadd.f32 %v766, %v974
  %976 = vmatmul.bf16.gmra.mxu0 %v420
  %v977 = vpop.f32.mrf.mxu0
  %v978 = vadd.f32 %v769, %v977
  %v979 = vpop.f32.mrf.mxu0
  %v980 = vadd.f32 %v771, %v979
  %981 = vmatmul.bf16.gmra.mxu0 %v422
  %v982 = vpop.f32.mrf.mxu0
  %v983 = vadd.f32 %v774, %v982
  %v984 = vpop.f32.mrf.mxu0
  %v985 = vadd.f32 %v776, %v984
  %986 = vmatmul.bf16.gmra.mxu0 %v424
  %v987 = vpop.f32.mrf.mxu0
  %v988 = vadd.f32 %v779, %v987
  %v989 = vpop.f32.mrf.mxu0
  %v990 = vadd.f32 %v781, %v989
  %991 = vmatmul.bf16.gmra.mxu0 %v426
  %v992 = vpop.f32.mrf.mxu0
  %v993 = vadd.f32 %v784, %v992
  %v994 = vpop.f32.mrf.mxu0
  %v995 = vadd.f32 %v786, %v994
  %996 = vmatmul.bf16.gmra.mxu0 %v428
  %v997 = vpop.f32.mrf.mxu0
  %v998 = vadd.f32 %v789, %v997
  %v999 = vpop.f32.mrf.mxu0
  %v1000 = vadd.f32 %v791, %v999
  %1001 = vmatmul.bf16.gmra.mxu0 %v430
  %v1002 = vpop.f32.mrf.mxu0
  %v1003 = vadd.f32 %v794, %v1002
  %v1004 = vpop.f32.mrf.mxu0
  %v1005 = vadd.f32 %v796, %v1004
  %1006 = vmatmul.bf16.gmra.mxu0 %v432
  %v1007 = vpop.f32.mrf.mxu0
  %v1008 = vadd.f32 %v799, %v1007
  %v1009 = vpop.f32.mrf.mxu0
  %v1010 = vadd.f32 %v801, %v1009
  %1011 = vmatmul.bf16.gmra.mxu0 %v434
  %v1012 = vpop.f32.mrf.mxu0
  %v1013 = vadd.f32 %v804, %v1012
  %v1014 = vpop.f32.mrf.mxu0
  %v1015 = vadd.f32 %v806, %v1014
  %1016 = vmatmul.bf16.gmra.mxu0 %v436
  %v1017 = vpop.f32.mrf.mxu0
  %v1018 = vadd.f32 %v809, %v1017
  %v1019 = vpop.f32.mrf.mxu0
  %v1020 = vadd.f32 %v811, %v1019
  %1021 = vmatmul.bf16.gmra.mxu0 %v438
  %v1022 = vpop.f32.mrf.mxu0
  %v1023 = vadd.f32 %v814, %v1022
  %v1024 = vpop.f32.mrf.mxu0
  %v1025 = vadd.f32 %v816, %v1024
  %1026 = vmatmul.bf16.gmra.mxu0 %v440
  %v1027 = vpop.f32.mrf.mxu0
  %v1028 = vadd.f32 %v819, %v1027
  %v1029 = vpop.f32.mrf.mxu0
  %v1030 = vadd.f32 %v821, %v1029
  %1031 = vmatmul.bf16.gmra.mxu0 %v442
  %v1032 = vpop.f32.mrf.mxu0
  %v1033 = vadd.f32 %v824, %v1032
  %v1034 = vpop.f32.mrf.mxu0
  %v1035 = vadd.f32 %v826, %v1034
  %1036 = vdwg.mxu0
  %v1037 = vmax.f32 %v838, 0.0
  %v1038 = vmax.f32 %v840, 0.0
  %v1039 = vmax.f32 %v843, 0.0
  %v1040 = vmax.f32 %v845, 0.0
  %v1041 = vmax.f32 %v848, 0.0
  %v1042 = vmax.f32 %v850, 0.0
  %v1043 = vmax.f32 %v853, 0.0
  %v1044 = vmax.f32 %v855, 0.0
  %v1045 = vmax.f32 %v858, 0.0
  %v1046 = vmax.f32 %v860, 0.0
  %v1047 = vmax.f32 %v863, 0.0
  %v1048 = vmax.f32 %v865, 0.0
  %v1049 = vmax.f32 %v868, 0.0
  %v1050 = vmax.f32 %v870, 0.0
  %v1051 = vmax.f32 %v873, 0.0
  %v1052 = vmax.f32 %v875, 0.0
  %v1053 = vmax.f32 %v878, 0.0
  %v1054 = vmax.f32 %v880, 0.0
  %v1055 = vmax.f32 %v883, 0.0
  %v1056 = vmax.f32 %v885, 0.0
  %v1057 = vmax.f32 %v888, 0.0
  %v1058 = vmax.f32 %v890, 0.0
  %v1059 = vmax.f32 %v893, 0.0
  %v1060 = vmax.f32 %v895, 0.0
  %v1061 = vmax.f32 %v898, 0.0
  %v1062 = vmax.f32 %v900, 0.0
  %v1063 = vmax.f32 %v903, 0.0
  %v1064 = vmax.f32 %v905, 0.0
  %v1065 = vmax.f32 %v908, 0.0
  %v1066 = vmax.f32 %v910, 0.0
  %v1067 = vmax.f32 %v913, 0.0
  %v1068 = vmax.f32 %v915, 0.0
  %v1069 = vmax.f32 %v918, 0.0
  %v1070 = vmax.f32 %v920, 0.0
  %v1071 = vmax.f32 %v923, 0.0
  %v1072 = vmax.f32 %v925, 0.0
  %v1073 = vmax.f32 %v928, 0.0
  %v1074 = vmax.f32 %v930, 0.0
  %v1075 = vmax.f32 %v933, 0.0
  %v1076 = vmax.f32 %v935, 0.0
  %v1077 = vmax.f32 %v938, 0.0
  %v1078 = vmax.f32 %v940, 0.0
  %v1079 = vmax.f32 %v943, 0.0
  %v1080 = vmax.f32 %v945, 0.0
  %v1081 = vmax.f32 %v948, 0.0
  %v1082 = vmax.f32 %v950, 0.0
  %v1083 = vmax.f32 %v953, 0.0
  %v1084 = vmax.f32 %v955, 0.0
  %v1085 = vmax.f32 %v958, 0.0
  %v1086 = vmax.f32 %v960, 0.0
  %v1087 = vmax.f32 %v963, 0.0
  %v1088 = vmax.f32 %v965, 0.0
  %v1089 = vmax.f32 %v968, 0.0
  %v1090 = vmax.f32 %v970, 0.0
  %v1091 = vmax.f32 %v973, 0.0
  %v1092 = vmax.f32 %v975, 0.0
  %v1093 = vmax.f32 %v978, 0.0
  %v1094 = vmax.f32 %v980, 0.0
  %v1095 = vmax.f32 %v983, 0.0
  %v1096 = vmax.f32 %v985, 0.0
  %v1097 = vmax.f32 %v988, 0.0
  %v1098 = vmax.f32 %v990, 0.0
  %v1099 = vmax.f32 %v993, 0.0
  %v1100 = vmax.f32 %v995, 0.0
  %v1101 = vmax.f32 %v998, 0.0
  %v1102 = vmax.f32 %v1000, 0.0
  %v1103 = vmax.f32 %v1003, 0.0
  %v1104 = vmax.f32 %v1005, 0.0
  %v1105 = vmax.f32 %v1008, 0.0
  %v1106 = vmax.f32 %v1010, 0.0
  %v1107 = vmax.f32 %v1013, 0.0
  %v1108 = vmax.f32 %v1015, 0.0
  %v1109 = vmax.f32 %v1018, 0.0
  %v1110 = vmax.f32 %v1020, 0.0
  %v1111 = vmax.f32 %v1023, 0.0
  %v1112 = vmax.f32 %v1025, 0.0
  %v1113 = vmax.f32 %v1028, 0.0
  %v1114 = vmax.f32 %v1030, 0.0
  %v1115 = vmax.f32 %v1033, 0.0
  %v1116 = vmax.f32 %v1035, 0.0
  %v1117 = vpack.c.bf16 %v1037, %v1037
  %v1118 = vpack.c.bf16 %v1038, %v1038
  %v1119 = vpack.c.bf16 %v1039, %v1039
  %v1120 = vpack.c.bf16 %v1040, %v1040
  %v1121 = vpack.c.bf16 %v1041, %v1041
  %v1122 = vpack.c.bf16 %v1042, %v1042
  %v1123 = vpack.c.bf16 %v1043, %v1043
  %v1124 = vpack.c.bf16 %v1044, %v1044
  %v1125 = vpack.c.bf16 %v1045, %v1045
  %v1126 = vpack.c.bf16 %v1046, %v1046
  %v1127 = vpack.c.bf16 %v1047, %v1047
  %v1128 = vpack.c.bf16 %v1048, %v1048
  %v1129 = vpack.c.bf16 %v1049, %v1049
  %v1130 = vpack.c.bf16 %v1050, %v1050
  %v1131 = vpack.c.bf16 %v1051, %v1051
  %v1132 = vpack.c.bf16 %v1052, %v1052
  %v1133 = vpack.c.bf16 %v1053, %v1053
  %v1134 = vpack.c.bf16 %v1054, %v1054
  %v1135 = vpack.c.bf16 %v1055, %v1055
  %v1136 = vpack.c.bf16 %v1056, %v1056
  %v1137 = vpack.c.bf16 %v1057, %v1057
  %v1138 = vpack.c.bf16 %v1058, %v1058
  %v1139 = vpack.c.bf16 %v1059, %v1059
  %v1140 = vpack.c.bf16 %v1060, %v1060
  %v1141 = vpack.c.bf16 %v1061, %v1061
  %v1142 = vpack.c.bf16 %v1062, %v1062
  %v1143 = vpack.c.bf16 %v1063, %v1063
  %v1144 = vpack.c.bf16 %v1064, %v1064
  %v1145 = vpack.c.bf16 %v1065, %v1065
  %v1146 = vpack.c.bf16 %v1066, %v1066
  %v1147 = vpack.c.bf16 %v1067, %v1067
  %v1148 = vpack.c.bf16 %v1068, %v1068
  %v1149 = vpack.c.bf16 %v1069, %v1069
  %v1150 = vpack.c.bf16 %v1070, %v1070
  %v1151 = vpack.c.bf16 %v1071, %v1071
  %v1152 = vpack.c.bf16 %v1072, %v1072
  %v1153 = vpack.c.bf16 %v1073, %v1073
  %v1154 = vpack.c.bf16 %v1074, %v1074
  %v1155 = vpack.c.bf16 %v1075, %v1075
  %v1156 = vpack.c.bf16 %v1076, %v1076
  %v1157 = vpack.c.bf16 %v1077, %v1077
  %v1158 = vpack.c.bf16 %v1078, %v1078
  %v1159 = vpack.c.bf16 %v1079, %v1079
  %v1160 = vpack.c.bf16 %v1080, %v1080
  %v1161 = vpack.c.bf16 %v1081, %v1081
  %v1162 = vpack.c.bf16 %v1082, %v1082
  %v1163 = vpack.c.bf16 %v1083, %v1083
  %v1164 = vpack.c.bf16 %v1084, %v1084
  %v1165 = vpack.c.bf16 %v1085, %v1085
  %v1166 = vpack.c.bf16 %v1086, %v1086
  %v1167 = vpack.c.bf16 %v1087, %v1087
  %v1168 = vpack.c.bf16 %v1088, %v1088
  %v1169 = vpack.c.bf16 %v1089, %v1089
  %v1170 = vpack.c.bf16 %v1090, %v1090
  %v1171 = vpack.c.bf16 %v1091, %v1091
  %v1172 = vpack.c.bf16 %v1092, %v1092
  %v1173 = vpack.c.bf16 %v1093, %v1093
  %v1174 = vpack.c.bf16 %v1094, %v1094
  %v1175 = vpack.c.bf16 %v1095, %v1095
  %v1176 = vpack.c.bf16 %v1096, %v1096
  %v1177 = vpack.c.bf16 %v1097, %v1097
  %v1178 = vpack.c.bf16 %v1098, %v1098
  %v1179 = vpack.c.bf16 %v1099, %v1099
  %v1180 = vpack.c.bf16 %v1100, %v1100
  %v1181 = vpack.c.bf16 %v1101, %v1101
  %v1182 = vpack.c.bf16 %v1102, %v1102
  %v1183 = vpack.c.bf16 %v1103, %v1103
  %v1184 = vpack.c.bf16 %v1104, %v1104
  %v1185 = vpack.c.bf16 %v1105, %v1105
  %v1186 = vpack.c.bf16 %v1106, %v1106
  %v1187 = vpack.c.bf16 %v1107, %v1107
  %v1188 = vpack.c.bf16 %v1108, %v1108
  %v1189 = vpack.c.bf16 %v1109, %v1109
  %v1190 = vpack.c.bf16 %v1110, %v1110
  %v1191 = vpack.c.bf16 %v1111, %v1111
  %v1192 = vpack.c.bf16 %v1112, %v1112
  %v1193 = vpack.c.bf16 %v1113, %v1113
  %v1194 = vpack.c.bf16 %v1114, %v1114
  %v1195 = vpack.c.bf16 %v1115, %v1115
  %v1196 = vpack.c.bf16 %v1116, %v1116
  %1197 = vst [vmem:[%s2] sm:$0xf] %v1117
  %1198 = vst [vmem:[%s2 + $0x4] sm:$0xf] %v1118
  %1199 = vst [vmem:[%s2 + $0x8] sm:$0xf] %v1119
  %1200 = vst [vmem:[%s2 + $0xc] sm:$0xf] %v1120
  %1201 = vst [vmem:[%s2 + $0x10] sm:$0xf] %v1121
  %1202 = vst [vmem:[%s2 + $0x14] sm:$0xf] %v1122
  %1203 = vst [vmem:[%s2 + $0x18] sm:$0xf] %v1123
  %1204 = vst [vmem:[%s2 + $0x1c] sm:$0xf] %v1124
  %1205 = vst [vmem:[%s2 + $0x20] sm:$0xf] %v1125
  %1206 = vst [vmem:[%s2 + $0x24] sm:$0xf] %v1126
  %1207 = vst [vmem:[%s2 + $0x28] sm:$0xf] %v1127
  %1208 = vst [vmem:[%s2 + $0x2c] sm:$0xf] %v1128
  %1209 = vst [vmem:[%s2 + $0x30] sm:$0xf] %v1129
  %1210 = vst [vmem:[%s2 + $0x34] sm:$0xf] %v1130
  %1211 = vst [vmem:[%s2 + $0x38] sm:$0xf] %v1131
  %1212 = vst [vmem:[%s2 + $0x3c] sm:$0xf] %v1132
  %1213 = vst [vmem:[%s2 + $0x40] sm:$0xf] %v1133
  %1214 = vst [vmem:[%s2 + $0x44] sm:$0xf] %v1134
  %1215 = vst [vmem:[%s2 + $0x48] sm:$0xf] %v1135
  %1216 = vst [vmem:[%s2 + $0x4c] sm:$0xf] %v1136
  %1217 = vst [vmem:[%s2 + $0x50] sm:$0xf] %v1137
  %1218 = vst [vmem:[%s2 + $0x54] sm:$0xf] %v1138
  %1219 = vst [vmem:[%s2 + $0x58] sm:$0xf] %v1139
  %1220 = vst [vmem:[%s2 + $0x5c] sm:$0xf] %v1140
  %1221 = vst [vmem:[%s2 + $0x60] sm:$0xf] %v1141
  %1222 = vst [vmem:[%s2 + $0x64] sm:$0xf] %v1142
  %1223 = vst [vmem:[%s2 + $0x68] sm:$0xf] %v1143
  %1224 = vst [vmem:[%s2 + $0x6c] sm:$0xf] %v1144
  %1225 = vst [vmem:[%s2 + $0x70] sm:$0xf] %v1145
  %1226 = vst [vmem:[%s2 + $0x74] sm:$0xf] %v1146
  %1227 = vst [vmem:[%s2 + $0x78] sm:$0xf] %v1147
  %1228 = vst [vmem:[%s2 + $0x7c] sm:$0xf] %v1148
  %1229 = vst [vmem:[%s2 + $0x80] sm:$0xf] %v1149
  %1230 = vst [vmem:[%s2 + $0x84] sm:$0xf] %v1150
  %1231 = vst [vmem:[%s2 + $0x88] sm:$0xf] %v1151
  %1232 = vst [vmem:[%s2 + $0x8c] sm:$0xf] %v1152
  %1233 = vst [vmem:[%s2 + $0x90] sm:$0xf] %v1153
  %1234 = vst [vmem:[%s2 + $0x94] sm:$0xf] %v1154
  %1235 = vst [vmem:[%s2 + $0x98] sm:$0xf] %v1155
  %1236 = vst [vmem:[%s2 + $0x9c] sm:$0xf] %v1156
  %1237 = vst [vmem:[%s2 + $0xa0] sm:$0xf] %v1157
  %1238 = vst [vmem:[%s2 + $0xa4] sm:$0xf] %v1158
  %1239 = vst [vmem:[%s2 + $0xa8] sm:$0xf] %v1159
  %1240 = vst [vmem:[%s2 + $0xac] sm:$0xf] %v1160
  %1241 = vst [vmem:[%s2 + $0xb0] sm:$0xf] %v1161
  %1242 = vst [vmem:[%s2 + $0xb4] sm:$0xf] %v1162
  %1243 = vst [vmem:[%s2 + $0xb8] sm:$0xf] %v1163
  %1244 = vst [vmem:[%s2 + $0xbc] sm:$0xf] %v1164
  %1245 = vst [vmem:[%s2 + $0xc0] sm:$0xf] %v1165
  %1246 = vst [vmem:[%s2 + $0xc4] sm:$0xf] %v1166
  %1247 = vst [vmem:[%s2 + $0xc8] sm:$0xf] %v1167
  %1248 = vst [vmem:[%s2 + $0xcc] sm:$0xf] %v1168
  %1249 = vst [vmem:[%s2 + $0xd0] sm:$0xf] %v1169
  %1250 = vst [vmem:[%s2 + $0xd4] sm:$0xf] %v1170
  %1251 = vst [vmem:[%s2 + $0xd8] sm:$0xf] %v1171
  %1252 = vst [vmem:[%s2 + $0xdc] sm:$0xf] %v1172
  %1253 = vst [vmem:[%s2 + $0xe0] sm:$0xf] %v1173
  %1254 = vst [vmem:[%s2 + $0xe4] sm:$0xf] %v1174
  %1255 = vst [vmem:[%s2 + $0xe8] sm:$0xf] %v1175
  %1256 = vst [vmem:[%s2 + $0xec] sm:$0xf] %v1176
  %1257 = vst [vmem:[%s2 + $0xf0] sm:$0xf] %v1177
  %1258 = vst [vmem:[%s2 + $0xf4] sm:$0xf] %v1178
  %1259 = vst [vmem:[%s2 + $0xf8] sm:$0xf] %v1179
  %1260 = vst [vmem:[%s2 + $0xfc] sm:$0xf] %v1180
  %1261 = vst [vmem:[%s2 + $0x100] sm:$0xf] %v1181
  %1262 = vst [vmem:[%s2 + $0x104] sm:$0xf] %v1182
  %1263 = vst [vmem:[%s2 + $0x108] sm:$0xf] %v1183
  %1264 = vst [vmem:[%s2 + $0x10c] sm:$0xf] %v1184
  %1265 = vst [vmem:[%s2 + $0x110] sm:$0xf] %v1185
  %1266 = vst [vmem:[%s2 + $0x114] sm:$0xf] %v1186
  %1267 = vst [vmem:[%s2 + $0x118] sm:$0xf] %v1187
  %1268 = vst [vmem:[%s2 + $0x11c] sm:$0xf] %v1188
  %1269 = vst [vmem:[%s2 + $0x120] sm:$0xf] %v1189
  %1270 = vst [vmem:[%s2 + $0x124] sm:$0xf] %v1190
  %1271 = vst [vmem:[%s2 + $0x128] sm:$0xf] %v1191
  %1272 = vst [vmem:[%s2 + $0x12c] sm:$0xf] %v1192
  %1273 = vst [vmem:[%s2 + $0x130] sm:$0xf] %v1193
  %1274 = vst [vmem:[%s2 + $0x134] sm:$0xf] %v1194
  %1275 = vst [vmem:[%s2 + $0x138] sm:$0xf] %v1195
  %1276 = vst [vmem:[%s2 + $0x13c] sm:$0xf] %v1196
  // Predicated region
  $region10: #{unet3d_forward.19} parent=0 // pred_check
    _
  $region11: #{unet3d_forward.19} parent=0 // pred_check_branch
    %1278 = sbr.rel (0) target = $region13
  $region12: #{unet3d_forward.19} parent=0 // pred_region
    _
  $region13: #{unet3d_forward.19} parent=0 // pred_fallthru
    _
  // Predicated region
  $region14: #{unet3d_forward.19} parent=0 // pred_check
    _
  $region15: #{unet3d_forward.19} parent=0 // pred_check_branch
    %1280 = sbr.rel (0) target = $region17
  $region16: #{unet3d_forward.19} parent=0 // pred_region
    _
  $region17: #{unet3d_forward.19} parent=0 // pred_fallthru
    _

// kernel: unet3d_forward.20
$region0: #{unet3d_forward.20}
  #allocation0 [shape = 'u32[]', space=smem, size = 0x4, offset = 0x4, fixed_abs, tag = 'smem constant byte address 0x4 - core index']
  #allocation1 [shape = 'u32[72,128]{1,0:T(1,128)}', space=vmem, size = 0x9000, scoped, tag = 'internal scratch']
  %s0 = inlined_call_operand.vmem [shape: bf16[128,256], index: 0, kind: input, shape index: {}]
  %s1 = inlined_call_operand.vmem [shape: bf16[256,128], index: 1, kind: input, shape index: {}]
  %s2 = inlined_call_operand.vmem [shape: bf16[128,128], index: 2, kind: output, shape index: {}]
  %s3 = sld [smem:[#allocation0]]
  $region18: #{unet3d_forward.20} parent=0
    _
  %s5 = ssub.s32 1, %s3
  %s6 = scalar_select 0, %s5, %s3
  // Predicated region
  $region2: #{unet3d_forward.20} parent=0 // pred_check
    _
  $region3: #{unet3d_forward.20} parent=0 // pred_check_branch
    %8 = sbr.rel (0) target = $region5
  $region4: #{unet3d_forward.20} parent=0 // pred_region
    _
  $region5: #{unet3d_forward.20} parent=0 // pred_fallthru
    _
  // Predicated region
  $region6: #{unet3d_forward.20} parent=0 // pred_check
    _
  $region7: #{unet3d_forward.20} parent=0 // pred_check_branch
    %10 = sbr.rel (0) target = $region9
  $region8: #{unet3d_forward.20} parent=0 // pred_region
    _
  $region9: #{unet3d_forward.20} parent=0 // pred_fallthru
    _
  %v11 = vld [vmem:[%s0] sm:$0xff]
  %v12 = vld [vmem:[%s0 + $0x8] sm:$0xff]
  %v13 = vld [vmem:[%s0 + $0x10] sm:$0xff]
  %v14 = vld [vmem:[%s0 + $0x18] sm:$0xff]
  %v15 = vld [vmem:[%s0 + $0x20] sm:$0xff]
  %v16 = vld [vmem:[%s0 + $0x28] sm:$0xff]
  %v17 = vld [vmem:[%s0 + $0x30] sm:$0xff]
  %v18 = vld [vmem:[%s0 + $0x38] sm:$0xff]
  %v19 = vld [vmem:[%s0 + $0x40] sm:$0xff]
  %v20 = vld [vmem:[%s0 + $0x48] sm:$0xff]
  %v21 = vld [vmem:[%s0 + $0x50] sm:$0xff]
  %v22 = vld [vmem:[%s0 + $0x58] sm:$0xff]
  %v23 = vld [vmem:[%s0 + $0x60] sm:$0xff]
  %v24 = vld [vmem:[%s0 + $0x68] sm:$0xff]
  %v25 = vld [vmem:[%s0 + $0x70] sm:$0xff]
  %v26 = vld [vmem:[%s0 + $0x78] sm:$0xff]
  %v27 = vld [vmem:[%s1] sm:$0xf]
  %v28 = vld [vmem:[%s1 + $0x4] sm:$0xf]
  %v29 = vld [vmem:[%s1 + $0x8] sm:$0xf]
  %v30 = vld [vmem:[%s1 + $0xc] sm:$0xf]
  %v31 = vld [vmem:[%s1 + $0x10] sm:$0xf]
  %v32 = vld [vmem:[%s1 + $0x14] sm:$0xf]
  %v33 = vld [vmem:[%s1 + $0x18] sm:$0xf]
  %v34 = vld [vmem:[%s1 + $0x1c] sm:$0xf]
  %v35 = vld [vmem:[%s1 + $0x20] sm:$0xf]
  %v36 = vld [vmem:[%s1 + $0x24] sm:$0xf]
  %v37 = vld [vmem:[%s1 + $0x28] sm:$0xf]
  %v38 = vld [vmem:[%s1 + $0x2c] sm:$0xf]
  %v39 = vld [vmem:[%s1 + $0x30] sm:$0xf]
  %v40 = vld [vmem:[%s1 + $0x34] sm:$0xf]
  %v41 = vld [vmem:[%s1 + $0x38] sm:$0xf]
  %v42 = vld [vmem:[%s1 + $0x3c] sm:$0xf]
  %v43 = vld [vmem:[%s1 + $0x40] sm:$0xf]
  %v44 = vld [vmem:[%s1 + $0x44] sm:$0xf]
  %v45 = vld [vmem:[%s1 + $0x48] sm:$0xf]
  %v46 = vld [vmem:[%s1 + $0x4c] sm:$0xf]
  %v47 = vld [vmem:[%s1 + $0x50] sm:$0xf]
  %v48 = vld [vmem:[%s1 + $0x54] sm:$0xf]
  %v49 = vld [vmem:[%s1 + $0x58] sm:$0xf]
  %v50 = vld [vmem:[%s1 + $0x5c] sm:$0xf]
  %v51 = vld [vmem:[%s1 + $0x60] sm:$0xf]
  %v52 = vld [vmem:[%s1 + $0x64] sm:$0xf]
  %v53 = vld [vmem:[%s1 + $0x68] sm:$0xf]
  %v54 = vld [vmem:[%s1 + $0x6c] sm:$0xf]
  %v55 = vld [vmem:[%s1 + $0x70] sm:$0xf]
  %v56 = vld [vmem:[%s1 + $0x74] sm:$0xf]
  %v57 = vld [vmem:[%s1 + $0x78] sm:$0xf]
  %v58 = vld [vmem:[%s1 + $0x7c] sm:$0xf]
  %v75 = vunpack.c.l.b16 %v11
  %v76 = vunpack.c.h.b16 %v11
  %v77 = vunpack.c.l.b16 %v12
  %v78 = vunpack.c.h.b16 %v12
  %v79 = vunpack.c.l.b16 %v13
  %v80 = vunpack.c.h.b16 %v13
  %v81 = vunpack.c.l.b16 %v14
  %v82 = vunpack.c.h.b16 %v14
  %v83 = vunpack.c.l.b16 %v15
  %v84 = vunpack.c.h.b16 %v15
  %v85 = vunpack.c.l.b16 %v16
  %v86 = vunpack.c.h.b16 %v16
  %v87 = vunpack.c.l.b16 %v17
  %v88 = vunpack.c.h.b16 %v17
  %v89 = vunpack.c.l.b16 %v18
  %v90 = vunpack.c.h.b16 %v18
  %v91 = vunpack.c.l.b16 %v19
  %v92 = vunpack.c.h.b16 %v19
  %v93 = vunpack.c.l.b16 %v20
  %v94 = vunpack.c.h.b16 %v20
  %v95 = vunpack.c.l.b16 %v21
  %v96 = vunpack.c.h.b16 %v21
  %v97 = vunpack.c.l.b16 %v22
  %v98 = vunpack.c.h.b16 %v22
  %v99 = vunpack.c.l.b16 %v23
  %v100 = vunpack.c.h.b16 %v23
  %v101 = vunpack.c.l.b16 %v24
  %v102 = vunpack.c.h.b16 %v24
  %v103 = vunpack.c.l.b16 %v25
  %v104 = vunpack.c.h.b16 %v25
  %v105 = vunpack.c.l.b16 %v26
  %v106 = vunpack.c.h.b16 %v26
  %v107 = vpack.c.b16 %v77, %v75
  %v108 = vpack.c.b16 %v78, %v76
  %v109 = vpack.c.b16 %v81, %v79
  %v110 = vpack.c.b16 %v82, %v80
  %v111 = vpack.c.b16 %v85, %v83
  %v112 = vpack.c.b16 %v86, %v84
  %v113 = vpack.c.b16 %v89, %v87
  %v114 = vpack.c.b16 %v90, %v88
  %v115 = vpack.c.b16 %v93, %v91
  %v116 = vpack.c.b16 %v94, %v92
  %v117 = vpack.c.b16 %v97, %v95
  %v118 = vpack.c.b16 %v98, %v96
  %v119 = vpack.c.b16 %v101, %v99
  %v120 = vpack.c.b16 %v102, %v100
  %v121 = vpack.c.b16 %v105, %v103
  %v122 = vpack.c.b16 %v106, %v104
  %v171 = vunpack.c.l.b16 %v27
  %v172 = vunpack.c.l.b16 %v28
  %v173 = vunpack.c.l.b16 %v29
  %v174 = vunpack.c.l.b16 %v30
  %v175 = vunpack.c.l.b16 %v31
  %v176 = vunpack.c.l.b16 %v32
  %v177 = vunpack.c.l.b16 %v33
  %v178 = vunpack.c.l.b16 %v34
  %v179 = vunpack.c.l.b16 %v35
  %v180 = vunpack.c.l.b16 %v36
  %v181 = vunpack.c.l.b16 %v37
  %v182 = vunpack.c.l.b16 %v38
  %v183 = vunpack.c.l.b16 %v39
  %v184 = vunpack.c.l.b16 %v40
  %v185 = vunpack.c.l.b16 %v41
  %v186 = vunpack.c.l.b16 %v42
  %v187 = vunpack.c.l.b16 %v43
  %v188 = vunpack.c.l.b16 %v44
  %v189 = vunpack.c.l.b16 %v45
  %v190 = vunpack.c.l.b16 %v46
  %v191 = vunpack.c.l.b16 %v47
  %v192 = vunpack.c.l.b16 %v48
  %v193 = vunpack.c.l.b16 %v49
  %v194 = vunpack.c.l.b16 %v50
  %v195 = vunpack.c.l.b16 %v51
  %v196 = vunpack.c.l.b16 %v52
  %v197 = vunpack.c.l.b16 %v53
  %v198 = vunpack.c.l.b16 %v54
  %v199 = vunpack.c.l.b16 %v55
  %v200 = vunpack.c.l.b16 %v56
  %v201 = vunpack.c.l.b16 %v57
  %v202 = vunpack.c.l.b16 %v58
  %v203 = vpack.c.b16 %v172, %v171
  %v204 = vpack.c.b16 %v174, %v173
  %v205 = vpack.c.b16 %v176, %v175
  %v206 = vpack.c.b16 %v178, %v177
  %v207 = vpack.c.b16 %v180, %v179
  %v208 = vpack.c.b16 %v182, %v181
  %v209 = vpack.c.b16 %v184, %v183
  %v210 = vpack.c.b16 %v186, %v185
  %v211 = vpack.c.b16 %v188, %v187
  %v212 = vpack.c.b16 %v190, %v189
  %v213 = vpack.c.b16 %v192, %v191
  %v214 = vpack.c.b16 %v194, %v193
  %v215 = vpack.c.b16 %v196, %v195
  %v216 = vpack.c.b16 %v198, %v197
  %v217 = vpack.c.b16 %v200, %v199
  %v218 = vpack.c.b16 %v202, %v201
  %235 = vmatpush.bf16.msra.mxu0 %v210
  %236 = vmatpush.bf16.msra.mxu0 %v209
  %237 = vmatpush.bf16.msra.mxu0 %v208
  %238 = vmatpush.bf16.msra.mxu0 %v207
  %239 = vmatpush.bf16.msra.mxu0 %v206
  %240 = vmatpush.bf16.msra.mxu0 %v205
  %241 = vmatpush.bf16.msra.mxu0 %v204
  %242 = vmatpush.bf16.msra.mxu0 %v203
  %243 = vmatmul.bf16.gmra.mxu0 %v107
  %v244 = vpop.f32.mrf.mxu0
  %v245 = vadd.f32 0.0, %v244
  %v246 = vpop.f32.mrf.mxu0
  %v247 = vadd.f32 0.0, %v246
  %248 = vmatmul.bf16.gmra.mxu0 %v109
  %v249 = vpop.f32.mrf.mxu0
  %v250 = vadd.f32 0.0, %v249
  %v251 = vpop.f32.mrf.mxu0
  %v252 = vadd.f32 0.0, %v251
  %253 = vmatmul.bf16.gmra.mxu0 %v111
  %v254 = vpop.f32.mrf.mxu0
  %v255 = vadd.f32 0.0, %v254
  %v256 = vpop.f32.mrf.mxu0
  %v257 = vadd.f32 0.0, %v256
  %258 = vmatmul.bf16.gmra.mxu0 %v113
  %v259 = vpop.f32.mrf.mxu0
  %v260 = vadd.f32 0.0, %v259
  %v261 = vpop.f32.mrf.mxu0
  %v262 = vadd.f32 0.0, %v261
  %263 = vmatmul.bf16.gmra.mxu0 %v115
  %v264 = vpop.f32.mrf.mxu0
  %v265 = vadd.f32 0.0, %v264
  %v266 = vpop.f32.mrf.mxu0
  %v267 = vadd.f32 0.0, %v266
  %268 = vmatmul.bf16.gmra.mxu0 %v117
  %v269 = vpop.f32.mrf.mxu0
  %v270 = vadd.f32 0.0, %v269
  %v271 = vpop.f32.mrf.mxu0
  %v272 = vadd.f32 0.0, %v271
  %273 = vmatmul.bf16.gmra.mxu0 %v119
  %v274 = vpop.f32.mrf.mxu0
  %v275 = vadd.f32 0.0, %v274
  %v276 = vpop.f32.mrf.mxu0
  %v277 = vadd.f32 0.0, %v276
  %278 = vmatmul.bf16.gmra.mxu0 %v121
  %v279 = vpop.f32.mrf.mxu0
  %v280 = vadd.f32 0.0, %v279
  %v281 = vpop.f32.mrf.mxu0
  %v282 = vadd.f32 0.0, %v281
  %283 = vdwg.mxu0
  %284 = vmatpush.bf16.msra.mxu0 %v218
  %285 = vmatpush.bf16.msra.mxu0 %v217
  %286 = vmatpush.bf16.msra.mxu0 %v216
  %287 = vmatpush.bf16.msra.mxu0 %v215
  %288 = vmatpush.bf16.msra.mxu0 %v214
  %289 = vmatpush.bf16.msra.mxu0 %v213
  %290 = vmatpush.bf16.msra.mxu0 %v212
  %291 = vmatpush.bf16.msra.mxu0 %v211
  %292 = vmatmul.bf16.gmra.mxu0 %v108
  %v293 = vpop.f32.mrf.mxu0
  %v294 = vadd.f32 %v245, %v293
  %v295 = vpop.f32.mrf.mxu0
  %v296 = vadd.f32 %v247, %v295
  %297 = vmatmul.bf16.gmra.mxu0 %v110
  %v298 = vpop.f32.mrf.mxu0
  %v299 = vadd.f32 %v250, %v298
  %v300 = vpop.f32.mrf.mxu0
  %v301 = vadd.f32 %v252, %v300
  %302 = vmatmul.bf16.gmra.mxu0 %v112
  %v303 = vpop.f32.mrf.mxu0
  %v304 = vadd.f32 %v255, %v303
  %v305 = vpop.f32.mrf.mxu0
  %v306 = vadd.f32 %v257, %v305
  %307 = vmatmul.bf16.gmra.mxu0 %v114
  %v308 = vpop.f32.mrf.mxu0
  %v309 = vadd.f32 %v260, %v308
  %v310 = vpop.f32.mrf.mxu0
  %v311 = vadd.f32 %v262, %v310
  %312 = vmatmul.bf16.gmra.mxu0 %v116
  %v313 = vpop.f32.mrf.mxu0
  %v314 = vadd.f32 %v265, %v313
  %v315 = vpop.f32.mrf.mxu0
  %v316 = vadd.f32 %v267, %v315
  %317 = vmatmul.bf16.gmra.mxu0 %v118
  %v318 = vpop.f32.mrf.mxu0
  %v319 = vadd.f32 %v270, %v318
  %v320 = vpop.f32.mrf.mxu0
  %v321 = vadd.f32 %v272, %v320
  %322 = vmatmul.bf16.gmra.mxu0 %v120
  %v323 = vpop.f32.mrf.mxu0
  %v324 = vadd.f32 %v275, %v323
  %v325 = vpop.f32.mrf.mxu0
  %v326 = vadd.f32 %v277, %v325
  %327 = vmatmul.bf16.gmra.mxu0 %v122
  %v328 = vpop.f32.mrf.mxu0
  %v329 = vadd.f32 %v280, %v328
  %v330 = vpop.f32.mrf.mxu0
  %v331 = vadd.f32 %v282, %v330
  %332 = vdwg.mxu0
  %v333 = vmax.f32 %v294, 0.0
  %v334 = vmax.f32 %v296, 0.0
  %v335 = vmax.f32 %v299, 0.0
  %v336 = vmax.f32 %v301, 0.0
  %v337 = vmax.f32 %v304, 0.0
  %v338 = vmax.f32 %v306, 0.0
  %v339 = vmax.f32 %v309, 0.0
  %v340 = vmax.f32 %v311, 0.0
  %v341 = vmax.f32 %v314, 0.0
  %v342 = vmax.f32 %v316, 0.0
  %v343 = vmax.f32 %v319, 0.0
  %v344 = vmax.f32 %v321, 0.0
  %v345 = vmax.f32 %v324, 0.0
  %v346 = vmax.f32 %v326, 0.0
  %v347 = vmax.f32 %v329, 0.0
  %v348 = vmax.f32 %v331, 0.0
  %v349 = vpack.c.bf16 %v333, %v333
  %v350 = vpack.c.bf16 %v334, %v334
  %v351 = vpack.c.bf16 %v335, %v335
  %v352 = vpack.c.bf16 %v336, %v336
  %v353 = vpack.c.bf16 %v337, %v337
  %v354 = vpack.c.bf16 %v338, %v338
  %v355 = vpack.c.bf16 %v339, %v339
  %v356 = vpack.c.bf16 %v340, %v340
  %v357 = vpack.c.bf16 %v341, %v341
  %v358 = vpack.c.bf16 %v342, %v342
  %v359 = vpack.c.bf16 %v343, %v343
  %v360 = vpack.c.bf16 %v344, %v344
  %v361 = vpack.c.bf16 %v345, %v345
  %v362 = vpack.c.bf16 %v346, %v346
  %v363 = vpack.c.bf16 %v347, %v347
  %v364 = vpack.c.bf16 %v348, %v348
  %365 = vst [vmem:[%s2] sm:$0xf] %v349
  %366 = vst [vmem:[%s2 + $0x4] sm:$0xf] %v350
  %367 = vst [vmem:[%s2 + $0x8] sm:$0xf] %v351
  %368 = vst [vmem:[%s2 + $0xc] sm:$0xf] %v352
  %369 = vst [vmem:[%s2 + $0x10] sm:$0xf] %v353
  %370 = vst [vmem:[%s2 + $0x14] sm:$0xf] %v354
  %371 = vst [vmem:[%s2 + $0x18] sm:$0xf] %v355
  %372 = vst [vmem:[%s2 + $0x1c] sm:$0xf] %v356
  %373 = vst [vmem:[%s2 + $0x20] sm:$0xf] %v357
  %374 = vst [vmem:[%s2 + $0x24] sm:$0xf] %v358
  %375 = vst [vmem:[%s2 + $0x28] sm:$0xf] %v359
  %376 = vst [vmem:[%s2 + $0x2c] sm:$0xf] %v360
  %377 = vst [vmem:[%s2 + $0x30] sm:$0xf] %v361
  %378 = vst [vmem:[%s2 + $0x34] sm:$0xf] %v362
  %379 = vst [vmem:[%s2 + $0x38] sm:$0xf] %v363
  %380 = vst [vmem:[%s2 + $0x3c] sm:$0xf] %v364
  // Predicated region
  $region10: #{unet3d_forward.20} parent=0 // pred_check
    _
  $region11: #{unet3d_forward.20} parent=0 // pred_check_branch
    %382 = sbr.rel (0) target = $region13
  $region12: #{unet3d_forward.20} parent=0 // pred_region
    _
  $region13: #{unet3d_forward.20} parent=0 // pred_fallthru
    _
  // Predicated region
  $region14: #{unet3d_forward.20} parent=0 // pred_check
    _
  $region15: #{unet3d_forward.20} parent=0 // pred_check_branch
    %384 = sbr.rel (0) target = $region17
  $region16: #{unet3d_forward.20} parent=0 // pred_region
    _
  $region17: #{unet3d_forward.20} parent=0 // pred_fallthru
    _

// kernel: unet3d_forward.22
$region0: #{unet3d_forward.22}
  #allocation0 [shape = 'u32[]', space=smem, size = 0x4, offset = 0x4, fixed_abs, tag = 'smem constant byte address 0x4 - core index']
  #allocation1 [shape = 'u32[72,128]{1,0:T(1,128)}', space=vmem, size = 0x9000, scoped, tag = 'internal scratch']
  %s0 = inlined_call_operand.vmem [shape: bf16[128,512], index: 0, kind: input, shape index: {}]
  %s1 = inlined_call_operand.vmem [shape: bf16[512,128], index: 1, kind: input, shape index: {}]
  %s2 = inlined_call_operand.vmem [shape: bf16[128,128], index: 2, kind: output, shape index: {}]
  %s3 = sld [smem:[#allocation0]]
  $region18: #{unet3d_forward.22} parent=0
    _
  %s5 = ssub.s32 1, %s3
  %s6 = scalar_select 0, %s5, %s3
  // Predicated region
  $region2: #{unet3d_forward.22} parent=0 // pred_check
    _
  $region3: #{unet3d_forward.22} parent=0 // pred_check_branch
    %8 = sbr.rel (0) target = $region5
  $region4: #{unet3d_forward.22} parent=0 // pred_region
    _
  $region5: #{unet3d_forward.22} parent=0 // pred_fallthru
    _
  // Predicated region
  $region6: #{unet3d_forward.22} parent=0 // pred_check
    _
  $region7: #{unet3d_forward.22} parent=0 // pred_check_branch
    %10 = sbr.rel (0) target = $region9
  $region8: #{unet3d_forward.22} parent=0 // pred_region
    _
  $region9: #{unet3d_forward.22} parent=0 // pred_fallthru
    _
  %v11 = vld [vmem:[%s0] sm:$0xff]
  %v12 = vld [vmem:[%s0 + $0x8] sm:$0xff]
  %v13 = vld [vmem:[%s0 + $0x10] sm:$0xff]
  %v14 = vld [vmem:[%s0 + $0x18] sm:$0xff]
  %v15 = vld [vmem:[%s0 + $0x20] sm:$0xff]
  %v16 = vld [vmem:[%s0 + $0x28] sm:$0xff]
  %v17 = vld [vmem:[%s0 + $0x30] sm:$0xff]
  %v18 = vld [vmem:[%s0 + $0x38] sm:$0xff]
  %v19 = vld [vmem:[%s0 + $0x40] sm:$0xff]
  %v20 = vld [vmem:[%s0 + $0x48] sm:$0xff]
  %v21 = vld [vmem:[%s0 + $0x50] sm:$0xff]
  %v22 = vld [vmem:[%s0 + $0x58] sm:$0xff]
  %v23 = vld [vmem:[%s0 + $0x60] sm:$0xff]
  %v24 = vld [vmem:[%s0 + $0x68] sm:$0xff]
  %v25 = vld [vmem:[%s0 + $0x70] sm:$0xff]
  %v26 = vld [vmem:[%s0 + $0x78] sm:$0xff]
  %v27 = vld [vmem:[%s0 + $0x80] sm:$0xff]
  %v28 = vld [vmem:[%s0 + $0x88] sm:$0xff]
  %v29 = vld [vmem:[%s0 + $0x90] sm:$0xff]
  %v30 = vld [vmem:[%s0 + $0x98] sm:$0xff]
  %v31 = vld [vmem:[%s0 + $0xa0] sm:$0xff]
  %v32 = vld [vmem:[%s0 + $0xa8] sm:$0xff]
  %v33 = vld [vmem:[%s0 + $0xb0] sm:$0xff]
  %v34 = vld [vmem:[%s0 + $0xb8] sm:$0xff]
  %v35 = vld [vmem:[%s0 + $0xc0] sm:$0xff]
  %v36 = vld [vmem:[%s0 + $0xc8] sm:$0xff]
  %v37 = vld [vmem:[%s0 + $0xd0] sm:$0xff]
  %v38 = vld [vmem:[%s0 + $0xd8] sm:$0xff]
  %v39 = vld [vmem:[%s0 + $0xe0] sm:$0xff]
  %v40 = vld [vmem:[%s0 + $0xe8] sm:$0xff]
  %v41 = vld [vmem:[%s0 + $0xf0] sm:$0xff]
  %v42 = vld [vmem:[%s0 + $0xf8] sm:$0xff]
  %v43 = vld [vmem:[%s1] sm:$0xf]
  %v44 = vld [vmem:[%s1 + $0x4] sm:$0xf]
  %v45 = vld [vmem:[%s1 + $0x8] sm:$0xf]
  %v46 = vld [vmem:[%s1 + $0xc] sm:$0xf]
  %v47 = vld [vmem:[%s1 + $0x10] sm:$0xf]
  %v48 = vld [vmem:[%s1 + $0x14] sm:$0xf]
  %v49 = vld [vmem:[%s1 + $0x18] sm:$0xf]
  %v50 = vld [vmem:[%s1 + $0x1c] sm:$0xf]
  %v51 = vld [vmem:[%s1 + $0x20] sm:$0xf]
  %v52 = vld [vmem:[%s1 + $0x24] sm:$0xf]
  %v53 = vld [vmem:[%s1 + $0x28] sm:$0xf]
  %v54 = vld [vmem:[%s1 + $0x2c] sm:$0xf]
  %v55 = vld [vmem:[%s1 + $0x30] sm:$0xf]
  %v56 = vld [vmem:[%s1 + $0x34] sm:$0xf]
  %v57 = vld [vmem:[%s1 + $0x38] sm:$0xf]
  %v58 = vld [vmem:[%s1 + $0x3c] sm:$0xf]
  %v59 = vld [vmem:[%s1 + $0x40] sm:$0xf]
  %v60 = vld [vmem:[%s1 + $0x44] sm:$0xf]
  %v61 = vld [vmem:[%s1 + $0x48] sm:$0xf]
  %v62 = vld [vmem:[%s1 + $0x4c] sm:$0xf]
  %v63 = vld [vmem:[%s1 + $0x50] sm:$0xf]
  %v64 = vld [vmem:[%s1 + $0x54] sm:$0xf]
  %v65 = vld [vmem:[%s1 + $0x58] sm:$0xf]
  %v66 = vld [vmem:[%s1 + $0x5c] sm:$0xf]
  %v67 = vld [vmem:[%s1 + $0x60] sm:$0xf]
  %v68 = vld [vmem:[%s1 + $0x64] sm:$0xf]
  %v69 = vld [vmem:[%s1 + $0x68] sm:$0xf]
  %v70 = vld [vmem:[%s1 + $0x6c] sm:$0xf]
  %v71 = vld [vmem:[%s1 + $0x70] sm:$0xf]
  %v72 = vld [vmem:[%s1 + $0x74] sm:$0xf]
  %v73 = vld [vmem:[%s1 + $0x78] sm:$0xf]
  %v74 = vld [vmem:[%s1 + $0x7c] sm:$0xf]
  %v75 = vld [vmem:[%s1 + $0x80] sm:$0xf]
  %v76 = vld [vmem:[%s1 + $0x84] sm:$0xf]
  %v77 = vld [vmem:[%s1 + $0x88] sm:$0xf]
  %v78 = vld [vmem:[%s1 + $0x8c] sm:$0xf]
  %v79 = vld [vmem:[%s1 + $0x90] sm:$0xf]
  %v80 = vld [vmem:[%s1 + $0x94] sm:$0xf]
  %v81 = vld [vmem:[%s1 + $0x98] sm:$0xf]
  %v82 = vld [vmem:[%s1 + $0x9c] sm:$0xf]
  %v83 = vld [vmem:[%s1 + $0xa0] sm:$0xf]
  %v84 = vld [vmem:[%s1 + $0xa4] sm:$0xf]
  %v85 = vld [vmem:[%s1 + $0xa8] sm:$0xf]
  %v86 = vld [vmem:[%s1 + $0xac] sm:$0xf]
  %v87 = vld [vmem:[%s1 + $0xb0] sm:$0xf]
  %v88 = vld [vmem:[%s1 + $0xb4] sm:$0xf]
  %v89 = vld [vmem:[%s1 + $0xb8] sm:$0xf]
  %v90 = vld [vmem:[%s1 + $0xbc] sm:$0xf]
  %v91 = vld [vmem:[%s1 + $0xc0] sm:$0xf]
  %v92 = vld [vmem:[%s1 + $0xc4] sm:$0xf]
  %v93 = vld [vmem:[%s1 + $0xc8] sm:$0xf]
  %v94 = vld [vmem:[%s1 + $0xcc] sm:$0xf]
  %v95 = vld [vmem:[%s1 + $0xd0] sm:$0xf]
  %v96 = vld [vmem:[%s1 + $0xd4] sm:$0xf]
  %v97 = vld [vmem:[%s1 + $0xd8] sm:$0xf]
  %v98 = vld [vmem:[%s1 + $0xdc] sm:$0xf]
  %v99 = vld [vmem:[%s1 + $0xe0] sm:$0xf]
  %v100 = vld [vmem:[%s1 + $0xe4] sm:$0xf]
  %v101 = vld [vmem:[%s1 + $0xe8] sm:$0xf]
  %v102 = vld [vmem:[%s1 + $0xec] sm:$0xf]
  %v103 = vld [vmem:[%s1 + $0xf0] sm:$0xf]
  %v104 = vld [vmem:[%s1 + $0xf4] sm:$0xf]
  %v105 = vld [vmem:[%s1 + $0xf8] sm:$0xf]
  %v106 = vld [vmem:[%s1 + $0xfc] sm:$0xf]
  %v139 = vunpack.c.l.b16 %v11
  %v140 = vunpack.c.h.b16 %v11
  %v141 = vunpack.c.l.b16 %v12
  %v142 = vunpack.c.h.b16 %v12
  %v143 = vunpack.c.l.b16 %v13
  %v144 = vunpack.c.h.b16 %v13
  %v145 = vunpack.c.l.b16 %v14
  %v146 = vunpack.c.h.b16 %v14
  %v147 = vunpack.c.l.b16 %v15
  %v148 = vunpack.c.h.b16 %v15
  %v149 = vunpack.c.l.b16 %v16
  %v150 = vunpack.c.h.b16 %v16
  %v151 = vunpack.c.l.b16 %v17
  %v152 = vunpack.c.h.b16 %v17
  %v153 = vunpack.c.l.b16 %v18
  %v154 = vunpack.c.h.b16 %v18
  %v155 = vunpack.c.l.b16 %v19
  %v156 = vunpack.c.h.b16 %v19
  %v157 = vunpack.c.l.b16 %v20
  %v158 = vunpack.c.h.b16 %v20
  %v159 = vunpack.c.l.b16 %v21
  %v160 = vunpack.c.h.b16 %v21
  %v161 = vunpack.c.l.b16 %v22
  %v162 = vunpack.c.h.b16 %v22
  %v163 = vunpack.c.l.b16 %v23
  %v164 = vunpack.c.h.b16 %v23
  %v165 = vunpack.c.l.b16 %v24
  %v166 = vunpack.c.h.b16 %v24
  %v167 = vunpack.c.l.b16 %v25
  %v168 = vunpack.c.h.b16 %v25
  %v169 = vunpack.c.l.b16 %v26
  %v170 = vunpack.c.h.b16 %v26
  %v171 = vunpack.c.l.b16 %v27
  %v172 = vunpack.c.h.b16 %v27
  %v173 = vunpack.c.l.b16 %v28
  %v174 = vunpack.c.h.b16 %v28
  %v175 = vunpack.c.l.b16 %v29
  %v176 = vunpack.c.h.b16 %v29
  %v177 = vunpack.c.l.b16 %v30
  %v178 = vunpack.c.h.b16 %v30
  %v179 = vunpack.c.l.b16 %v31
  %v180 = vunpack.c.h.b16 %v31
  %v181 = vunpack.c.l.b16 %v32
  %v182 = vunpack.c.h.b16 %v32
  %v183 = vunpack.c.l.b16 %v33
  %v184 = vunpack.c.h.b16 %v33
  %v185 = vunpack.c.l.b16 %v34
  %v186 = vunpack.c.h.b16 %v34
  %v187 = vunpack.c.l.b16 %v35
  %v188 = vunpack.c.h.b16 %v35
  %v189 = vunpack.c.l.b16 %v36
  %v190 = vunpack.c.h.b16 %v36
  %v191 = vunpack.c.l.b16 %v37
  %v192 = vunpack.c.h.b16 %v37
  %v193 = vunpack.c.l.b16 %v38
  %v194 = vunpack.c.h.b16 %v38
  %v195 = vunpack.c.l.b16 %v39
  %v196 = vunpack.c.h.b16 %v39
  %v197 = vunpack.c.l.b16 %v40
  %v198 = vunpack.c.h.b16 %v40
  %v199 = vunpack.c.l.b16 %v41
  %v200 = vunpack.c.h.b16 %v41
  %v201 = vunpack.c.l.b16 %v42
  %v202 = vunpack.c.h.b16 %v42
  %v203 = vpack.c.b16 %v143, %v139
  %v204 = vpack.c.b16 %v144, %v140
  %v205 = vpack.c.b16 %v145, %v141
  %v206 = vpack.c.b16 %v146, %v142
  %v207 = vpack.c.b16 %v151, %v147
  %v208 = vpack.c.b16 %v152, %v148
  %v209 = vpack.c.b16 %v153, %v149
  %v210 = vpack.c.b16 %v154, %v150
  %v211 = vpack.c.b16 %v159, %v155
  %v212 = vpack.c.b16 %v160, %v156
  %v213 = vpack.c.b16 %v161, %v157
  %v214 = vpack.c.b16 %v162, %v158
  %v215 = vpack.c.b16 %v167, %v163
  %v216 = vpack.c.b16 %v168, %v164
  %v217 = vpack.c.b16 %v169, %v165
  %v218 = vpack.c.b16 %v170, %v166
  %v219 = vpack.c.b16 %v175, %v171
  %v220 = vpack.c.b16 %v176, %v172
  %v221 = vpack.c.b16 %v177, %v173
  %v222 = vpack.c.b16 %v178, %v174
  %v223 = vpack.c.b16 %v183, %v179
  %v224 = vpack.c.b16 %v184, %v180
  %v225 = vpack.c.b16 %v185, %v181
  %v226 = vpack.c.b16 %v186, %v182
  %v227 = vpack.c.b16 %v191, %v187
  %v228 = vpack.c.b16 %v192, %v188
  %v229 = vpack.c.b16 %v193, %v189
  %v230 = vpack.c.b16 %v194, %v190
  %v231 = vpack.c.b16 %v199, %v195
  %v232 = vpack.c.b16 %v200, %v196
  %v233 = vpack.c.b16 %v201, %v197
  %v234 = vpack.c.b16 %v202, %v198
  %v331 = vunpack.c.l.b16 %v43
  %v332 = vunpack.c.l.b16 %v44
  %v333 = vunpack.c.l.b16 %v45
  %v334 = vunpack.c.l.b16 %v46
  %v335 = vunpack.c.l.b16 %v47
  %v336 = vunpack.c.l.b16 %v48
  %v337 = vunpack.c.l.b16 %v49
  %v338 = vunpack.c.l.b16 %v50
  %v339 = vunpack.c.l.b16 %v51
  %v340 = vunpack.c.l.b16 %v52
  %v341 = vunpack.c.l.b16 %v53
  %v342 = vunpack.c.l.b16 %v54
  %v343 = vunpack.c.l.b16 %v55
  %v344 = vunpack.c.l.b16 %v56
  %v345 = vunpack.c.l.b16 %v57
  %v346 = vunpack.c.l.b16 %v58
  %v347 = vunpack.c.l.b16 %v59
  %v348 = vunpack.c.l.b16 %v60
  %v349 = vunpack.c.l.b16 %v61
  %v350 = vunpack.c.l.b16 %v62
  %v351 = vunpack.c.l.b16 %v63
  %v352 = vunpack.c.l.b16 %v64
  %v353 = vunpack.c.l.b16 %v65
  %v354 = vunpack.c.l.b16 %v66
  %v355 = vunpack.c.l.b16 %v67
  %v356 = vunpack.c.l.b16 %v68
  %v357 = vunpack.c.l.b16 %v69
  %v358 = vunpack.c.l.b16 %v70
  %v359 = vunpack.c.l.b16 %v71
  %v360 = vunpack.c.l.b16 %v72
  %v361 = vunpack.c.l.b16 %v73
  %v362 = vunpack.c.l.b16 %v74
  %v363 = vunpack.c.l.b16 %v75
  %v364 = vunpack.c.l.b16 %v76
  %v365 = vunpack.c.l.b16 %v77
  %v366 = vunpack.c.l.b16 %v78
  %v367 = vunpack.c.l.b16 %v79
  %v368 = vunpack.c.l.b16 %v80
  %v369 = vunpack.c.l.b16 %v81
  %v370 = vunpack.c.l.b16 %v82
  %v371 = vunpack.c.l.b16 %v83
  %v372 = vunpack.c.l.b16 %v84
  %v373 = vunpack.c.l.b16 %v85
  %v374 = vunpack.c.l.b16 %v86
  %v375 = vunpack.c.l.b16 %v87
  %v376 = vunpack.c.l.b16 %v88
  %v377 = vunpack.c.l.b16 %v89
  %v378 = vunpack.c.l.b16 %v90
  %v379 = vunpack.c.l.b16 %v91
  %v380 = vunpack.c.l.b16 %v92
  %v381 = vunpack.c.l.b16 %v93
  %v382 = vunpack.c.l.b16 %v94
  %v383 = vunpack.c.l.b16 %v95
  %v384 = vunpack.c.l.b16 %v96
  %v385 = vunpack.c.l.b16 %v97
  %v386 = vunpack.c.l.b16 %v98
  %v387 = vunpack.c.l.b16 %v99
  %v388 = vunpack.c.l.b16 %v100
  %v389 = vunpack.c.l.b16 %v101
  %v390 = vunpack.c.l.b16 %v102
  %v391 = vunpack.c.l.b16 %v103
  %v392 = vunpack.c.l.b16 %v104
  %v393 = vunpack.c.l.b16 %v105
  %v394 = vunpack.c.l.b16 %v106
  %v395 = vpack.c.b16 %v332, %v331
  %v396 = vpack.c.b16 %v334, %v333
  %v397 = vpack.c.b16 %v336, %v335
  %v398 = vpack.c.b16 %v338, %v337
  %v399 = vpack.c.b16 %v340, %v339
  %v400 = vpack.c.b16 %v342, %v341
  %v401 = vpack.c.b16 %v344, %v343
  %v402 = vpack.c.b16 %v346, %v345
  %v403 = vpack.c.b16 %v348, %v347
  %v404 = vpack.c.b16 %v350, %v349
  %v405 = vpack.c.b16 %v352, %v351
  %v406 = vpack.c.b16 %v354, %v353
  %v407 = vpack.c.b16 %v356, %v355
  %v408 = vpack.c.b16 %v358, %v357
  %v409 = vpack.c.b16 %v360, %v359
  %v410 = vpack.c.b16 %v362, %v361
  %v411 = vpack.c.b16 %v364, %v363
  %v412 = vpack.c.b16 %v366, %v365
  %v413 = vpack.c.b16 %v368, %v367
  %v414 = vpack.c.b16 %v370, %v369
  %v415 = vpack.c.b16 %v372, %v371
  %v416 = vpack.c.b16 %v374, %v373
  %v417 = vpack.c.b16 %v376, %v375
  %v418 = vpack.c.b16 %v378, %v377
  %v419 = vpack.c.b16 %v380, %v379
  %v420 = vpack.c.b16 %v382, %v381
  %v421 = vpack.c.b16 %v384, %v383
  %v422 = vpack.c.b16 %v386, %v385
  %v423 = vpack.c.b16 %v388, %v387
  %v424 = vpack.c.b16 %v390, %v389
  %v425 = vpack.c.b16 %v392, %v391
  %v426 = vpack.c.b16 %v394, %v393
  %459 = vmatpush.bf16.msra.mxu0 %v402
  %460 = vmatpush.bf16.msra.mxu0 %v401
  %461 = vmatpush.bf16.msra.mxu0 %v400
  %462 = vmatpush.bf16.msra.mxu0 %v399
  %463 = vmatpush.bf16.msra.mxu0 %v398
  %464 = vmatpush.bf16.msra.mxu0 %v397
  %465 = vmatpush.bf16.msra.mxu0 %v396
  %466 = vmatpush.bf16.msra.mxu0 %v395
  %467 = vmatmul.bf16.gmra.mxu0 %v203
  %v468 = vpop.f32.mrf.mxu0
  %v469 = vadd.f32 0.0, %v468
  %v470 = vpop.f32.mrf.mxu0
  %v471 = vadd.f32 0.0, %v470
  %472 = vmatmul.bf16.gmra.mxu0 %v207
  %v473 = vpop.f32.mrf.mxu0
  %v474 = vadd.f32 0.0, %v473
  %v475 = vpop.f32.mrf.mxu0
  %v476 = vadd.f32 0.0, %v475
  %477 = vmatmul.bf16.gmra.mxu0 %v211
  %v478 = vpop.f32.mrf.mxu0
  %v479 = vadd.f32 0.0, %v478
  %v480 = vpop.f32.mrf.mxu0
  %v481 = vadd.f32 0.0, %v480
  %482 = vmatmul.bf16.gmra.mxu0 %v215
  %v483 = vpop.f32.mrf.mxu0
  %v484 = vadd.f32 0.0, %v483
  %v485 = vpop.f32.mrf.mxu0
  %v486 = vadd.f32 0.0, %v485
  %487 = vmatmul.bf16.gmra.mxu0 %v219
  %v488 = vpop.f32.mrf.mxu0
  %v489 = vadd.f32 0.0, %v488
  %v490 = vpop.f32.mrf.mxu0
  %v491 = vadd.f32 0.0, %v490
  %492 = vmatmul.bf16.gmra.mxu0 %v223
  %v493 = vpop.f32.mrf.mxu0
  %v494 = vadd.f32 0.0, %v493
  %v495 = vpop.f32.mrf.mxu0
  %v496 = vadd.f32 0.0, %v495
  %497 = vmatmul.bf16.gmra.mxu0 %v227
  %v498 = vpop.f32.mrf.mxu0
  %v499 = vadd.f32 0.0, %v498
  %v500 = vpop.f32.mrf.mxu0
  %v501 = vadd.f32 0.0, %v500
  %502 = vmatmul.bf16.gmra.mxu0 %v231
  %v503 = vpop.f32.mrf.mxu0
  %v504 = vadd.f32 0.0, %v503
  %v505 = vpop.f32.mrf.mxu0
  %v506 = vadd.f32 0.0, %v505
  %507 = vdwg.mxu0
  %508 = vmatpush.bf16.msra.mxu0 %v410
  %509 = vmatpush.bf16.msra.mxu0 %v409
  %510 = vmatpush.bf16.msra.mxu0 %v408
  %511 = vmatpush.bf16.msra.mxu0 %v407
  %512 = vmatpush.bf16.msra.mxu0 %v406
  %513 = vmatpush.bf16.msra.mxu0 %v405
  %514 = vmatpush.bf16.msra.mxu0 %v404
  %515 = vmatpush.bf16.msra.mxu0 %v403
  %516 = vmatmul.bf16.gmra.mxu0 %v204
  %v517 = vpop.f32.mrf.mxu0
  %v518 = vadd.f32 %v469, %v517
  %v519 = vpop.f32.mrf.mxu0
  %v520 = vadd.f32 %v471, %v519
  %521 = vmatmul.bf16.gmra.mxu0 %v208
  %v522 = vpop.f32.mrf.mxu0
  %v523 = vadd.f32 %v474, %v522
  %v524 = vpop.f32.mrf.mxu0
  %v525 = vadd.f32 %v476, %v524
  %526 = vmatmul.bf16.gmra.mxu0 %v212
  %v527 = vpop.f32.mrf.mxu0
  %v528 = vadd.f32 %v479, %v527
  %v529 = vpop.f32.mrf.mxu0
  %v530 = vadd.f32 %v481, %v529
  %531 = vmatmul.bf16.gmra.mxu0 %v216
  %v532 = vpop.f32.mrf.mxu0
  %v533 = vadd.f32 %v484, %v532
  %v534 = vpop.f32.mrf.mxu0
  %v535 = vadd.f32 %v486, %v534
  %536 = vmatmul.bf16.gmra.mxu0 %v220
  %v537 = vpop.f32.mrf.mxu0
  %v538 = vadd.f32 %v489, %v537
  %v539 = vpop.f32.mrf.mxu0
  %v540 = vadd.f32 %v491, %v539
  %541 = vmatmul.bf16.gmra.mxu0 %v224
  %v542 = vpop.f32.mrf.mxu0
  %v543 = vadd.f32 %v494, %v542
  %v544 = vpop.f32.mrf.mxu0
  %v545 = vadd.f32 %v496, %v544
  %546 = vmatmul.bf16.gmra.mxu0 %v228
  %v547 = vpop.f32.mrf.mxu0
  %v548 = vadd.f32 %v499, %v547
  %v549 = vpop.f32.mrf.mxu0
  %v550 = vadd.f32 %v501, %v549
  %551 = vmatmul.bf16.gmra.mxu0 %v232
  %v552 = vpop.f32.mrf.mxu0
  %v553 = vadd.f32 %v504, %v552
  %v554 = vpop.f32.mrf.mxu0
  %v555 = vadd.f32 %v506, %v554
  %556 = vdwg.mxu0
  %557 = vmatpush.bf16.msra.mxu0 %v418
  %558 = vmatpush.bf16.msra.mxu0 %v417
  %559 = vmatpush.bf16.msra.mxu0 %v416
  %560 = vmatpush.bf16.msra.mxu0 %v415
  %561 = vmatpush.bf16.msra.mxu0 %v414
  %562 = vmatpush.bf16.msra.mxu0 %v413
  %563 = vmatpush.bf16.msra.mxu0 %v412
  %564 = vmatpush.bf16.msra.mxu0 %v411
  %565 = vmatmul.bf16.gmra.mxu0 %v205
  %v566 = vpop.f32.mrf.mxu0
  %v567 = vadd.f32 %v518, %v566
  %v568 = vpop.f32.mrf.mxu0
  %v569 = vadd.f32 %v520, %v568
  %570 = vmatmul.bf16.gmra.mxu0 %v209
  %v571 = vpop.f32.mrf.mxu0
  %v572 = vadd.f32 %v523, %v571
  %v573 = vpop.f32.mrf.mxu0
  %v574 = vadd.f32 %v525, %v573
  %575 = vmatmul.bf16.gmra.mxu0 %v213
  %v576 = vpop.f32.mrf.mxu0
  %v577 = vadd.f32 %v528, %v576
  %v578 = vpop.f32.mrf.mxu0
  %v579 = vadd.f32 %v530, %v578
  %580 = vmatmul.bf16.gmra.mxu0 %v217
  %v581 = vpop.f32.mrf.mxu0
  %v582 = vadd.f32 %v533, %v581
  %v583 = vpop.f32.mrf.mxu0
  %v584 = vadd.f32 %v535, %v583
  %585 = vmatmul.bf16.gmra.mxu0 %v221
  %v586 = vpop.f32.mrf.mxu0
  %v587 = vadd.f32 %v538, %v586
  %v588 = vpop.f32.mrf.mxu0
  %v589 = vadd.f32 %v540, %v588
  %590 = vmatmul.bf16.gmra.mxu0 %v225
  %v591 = vpop.f32.mrf.mxu0
  %v592 = vadd.f32 %v543, %v591
  %v593 = vpop.f32.mrf.mxu0
  %v594 = vadd.f32 %v545, %v593
  %595 = vmatmul.bf16.gmra.mxu0 %v229
  %v596 = vpop.f32.mrf.mxu0
  %v597 = vadd.f32 %v548, %v596
  %v598 = vpop.f32.mrf.mxu0
  %v599 = vadd.f32 %v550, %v598
  %600 = vmatmul.bf16.gmra.mxu0 %v233
  %v601 = vpop.f32.mrf.mxu0
  %v602 = vadd.f32 %v553, %v601
  %v603 = vpop.f32.mrf.mxu0
  %v604 = vadd.f32 %v555, %v603
  %605 = vdwg.mxu0
  %606 = vmatpush.bf16.msra.mxu0 %v426
  %607 = vmatpush.bf16.msra.mxu0 %v425
  %608 = vmatpush.bf16.msra.mxu0 %v424
  %609 = vmatpush.bf16.msra.mxu0 %v423
  %610 = vmatpush.bf16.msra.mxu0 %v422
  %611 = vmatpush.bf16.msra.mxu0 %v421
  %612 = vmatpush.bf16.msra.mxu0 %v420
  %613 = vmatpush.bf16.msra.mxu0 %v419
  %614 = vmatmul.bf16.gmra.mxu0 %v206
  %v615 = vpop.f32.mrf.mxu0
  %v616 = vadd.f32 %v567, %v615
  %v617 = vpop.f32.mrf.mxu0
  %v618 = vadd.f32 %v569, %v617
  %619 = vmatmul.bf16.gmra.mxu0 %v210
  %v620 = vpop.f32.mrf.mxu0
  %v621 = vadd.f32 %v572, %v620
  %v622 = vpop.f32.mrf.mxu0
  %v623 = vadd.f32 %v574, %v622
  %624 = vmatmul.bf16.gmra.mxu0 %v214
  %v625 = vpop.f32.mrf.mxu0
  %v626 = vadd.f32 %v577, %v625
  %v627 = vpop.f32.mrf.mxu0
  %v628 = vadd.f32 %v579, %v627
  %629 = vmatmul.bf16.gmra.mxu0 %v218
  %v630 = vpop.f32.mrf.mxu0
  %v631 = vadd.f32 %v582, %v630
  %v632 = vpop.f32.mrf.mxu0
  %v633 = vadd.f32 %v584, %v632
  %634 = vmatmul.bf16.gmra.mxu0 %v222
  %v635 = vpop.f32.mrf.mxu0
  %v636 = vadd.f32 %v587, %v635
  %v637 = vpop.f32.mrf.mxu0
  %v638 = vadd.f32 %v589, %v637
  %639 = vmatmul.bf16.gmra.mxu0 %v226
  %v640 = vpop.f32.mrf.mxu0
  %v641 = vadd.f32 %v592, %v640
  %v642 = vpop.f32.mrf.mxu0
  %v643 = vadd.f32 %v594, %v642
  %644 = vmatmul.bf16.gmra.mxu0 %v230
  %v645 = vpop.f32.mrf.mxu0
  %v646 = vadd.f32 %v597, %v645
  %v647 = vpop.f32.mrf.mxu0
  %v648 = vadd.f32 %v599, %v647
  %649 = vmatmul.bf16.gmra.mxu0 %v234
  %v650 = vpop.f32.mrf.mxu0
  %v651 = vadd.f32 %v602, %v650
  %v652 = vpop.f32.mrf.mxu0
  %v653 = vadd.f32 %v604, %v652
  %654 = vdwg.mxu0
  %v655 = vmax.f32 %v616, 0.0
  %v656 = vmax.f32 %v618, 0.0
  %v657 = vmax.f32 %v621, 0.0
  %v658 = vmax.f32 %v623, 0.0
  %v659 = vmax.f32 %v626, 0.0
  %v660 = vmax.f32 %v628, 0.0
  %v661 = vmax.f32 %v631, 0.0
  %v662 = vmax.f32 %v633, 0.0
  %v663 = vmax.f32 %v636, 0.0
  %v664 = vmax.f32 %v638, 0.0
  %v665 = vmax.f32 %v641, 0.0
  %v666 = vmax.f32 %v643, 0.0
  %v667 = vmax.f32 %v646, 0.0
  %v668 = vmax.f32 %v648, 0.0
  %v669 = vmax.f32 %v651, 0.0
  %v670 = vmax.f32 %v653, 0.0
  %v671 = vpack.c.bf16 %v655, %v655
  %v672 = vpack.c.bf16 %v656, %v656
  %v673 = vpack.c.bf16 %v657, %v657
  %v674 = vpack.c.bf16 %v658, %v658
  %v675 = vpack.c.bf16 %v659, %v659
  %v676 = vpack.c.bf16 %v660, %v660
  %v677 = vpack.c.bf16 %v661, %v661
  %v678 = vpack.c.bf16 %v662, %v662
  %v679 = vpack.c.bf16 %v663, %v663
  %v680 = vpack.c.bf16 %v664, %v664
  %v681 = vpack.c.bf16 %v665, %v665
  %v682 = vpack.c.bf16 %v666, %v666
  %v683 = vpack.c.bf16 %v667, %v667
  %v684 = vpack.c.bf16 %v668, %v668
  %v685 = vpack.c.bf16 %v669, %v669
  %v686 = vpack.c.bf16 %v670, %v670
  %687 = vst [vmem:[%s2] sm:$0xf] %v671
  %688 = vst [vmem:[%s2 + $0x4] sm:$0xf] %v672
  %689 = vst [vmem:[%s2 + $0x8] sm:$0xf] %v673
  %690 = vst [vmem:[%s2 + $0xc] sm:$0xf] %v674
  %691 = vst [vmem:[%s2 + $0x10] sm:$0xf] %v675
  %692 = vst [vmem:[%s2 + $0x14] sm:$0xf] %v676
  %693 = vst [vmem:[%s2 + $0x18] sm:$0xf] %v677
  %694 = vst [vmem:[%s2 + $0x1c] sm:$0xf] %v678
  %695 = vst [vmem:[%s2 + $0x20] sm:$0xf] %v679
  %696 = vst [vmem:[%s2 + $0x24] sm:$0xf] %v680
  %697 = vst [vmem:[%s2 + $0x28] sm:$0xf] %v681
  %698 = vst [vmem:[%s2 + $0x2c] sm:$0xf] %v682
  %699 = vst [vmem:[%s2 + $0x30] sm:$0xf] %v683
  %700 = vst [vmem:[%s2 + $0x34] sm:$0xf] %v684
  %701 = vst [vmem:[%s2 + $0x38] sm:$0xf] %v685
  %702 = vst [vmem:[%s2 + $0x3c] sm:$0xf] %v686
  // Predicated region
  $region10: #{unet3d_forward.22} parent=0 // pred_check
    _
  $region11: #{unet3d_forward.22} parent=0 // pred_check_branch
    %704 = sbr.rel (0) target = $region13
  $region12: #{unet3d_forward.22} parent=0 // pred_region
    _
  $region13: #{unet3d_forward.22} parent=0 // pred_fallthru
    _
  // Predicated region
  $region14: #{unet3d_forward.22} parent=0 // pred_check
    _
  $region15: #{unet3d_forward.22} parent=0 // pred_check_branch
    %706 = sbr.rel (0) target = $region17
  $region16: #{unet3d_forward.22} parent=0 // pred_region
    _
  $region17: #{unet3d_forward.22} parent=0 // pred_fallthru
    _

// kernel: unet3d_forward.25
$region0: #{unet3d_forward.25}
  #allocation0 [shape = 'u32[]', space=smem, size = 0x4, offset = 0x4, fixed_abs, tag = 'smem constant byte address 0x4 - core index']
  #allocation1 [shape = 'u32[72,128]{1,0:T(1,128)}', space=vmem, size = 0x9000, scoped, tag = 'internal scratch']
  %s0 = inlined_call_operand.vmem [shape: bf16[128,896], index: 0, kind: input, shape index: {}]
  %s1 = inlined_call_operand.vmem [shape: bf16[896,128], index: 1, kind: input, shape index: {}]
  %s2 = inlined_call_operand.vmem [shape: bf16[128,128], index: 2, kind: output, shape index: {}]
  %s3 = sld [smem:[#allocation0]]
  $region18: #{unet3d_forward.25} parent=0
    _
  %s5 = ssub.s32 1, %s3
  %s6 = scalar_select 0, %s5, %s3
  // Predicated region
  $region2: #{unet3d_forward.25} parent=0 // pred_check
    _
  $region3: #{unet3d_forward.25} parent=0 // pred_check_branch
    %8 = sbr.rel (0) target = $region5
  $region4: #{unet3d_forward.25} parent=0 // pred_region
    _
  $region5: #{unet3d_forward.25} parent=0 // pred_fallthru
    _
  // Predicated region
  $region6: #{unet3d_forward.25} parent=0 // pred_check
    _
  $region7: #{unet3d_forward.25} parent=0 // pred_check_branch
    %10 = sbr.rel (0) target = $region9
  $region8: #{unet3d_forward.25} parent=0 // pred_region
    _
  $region9: #{unet3d_forward.25} parent=0 // pred_fallthru
    _
  %v11 = vld [vmem:[%s0] sm:$0xff]
  %v12 = vld [vmem:[%s0 + $0x8] sm:$0xff]
  %v13 = vld [vmem:[%s0 + $0x10] sm:$0xff]
  %v14 = vld [vmem:[%s0 + $0x18] sm:$0xf]
  %v15 = vld [vmem:[%s0 + $0x1c] sm:$0xff]
  %v16 = vld [vmem:[%s0 + $0x24] sm:$0xff]
  %v17 = vld [vmem:[%s0 + $0x2c] sm:$0xff]
  %v18 = vld [vmem:[%s0 + $0x34] sm:$0xf]
  %v19 = vld [vmem:[%s0 + $0x38] sm:$0xff]
  %v20 = vld [vmem:[%s0 + $0x40] sm:$0xff]
  %v21 = vld [vmem:[%s0 + $0x48] sm:$0xff]
  %v22 = vld [vmem:[%s0 + $0x50] sm:$0xf]
  %v23 = vld [vmem:[%s0 + $0x54] sm:$0xff]
  %v24 = vld [vmem:[%s0 + $0x5c] sm:$0xff]
  %v25 = vld [vmem:[%s0 + $0x64] sm:$0xff]
  %v26 = vld [vmem:[%s0 + $0x6c] sm:$0xf]
  %v27 = vld [vmem:[%s0 + $0x70] sm:$0xff]
  %v28 = vld [vmem:[%s0 + $0x78] sm:$0xff]
  %v29 = vld [vmem:[%s0 + $0x80] sm:$0xff]
  %v30 = vld [vmem:[%s0 + $0x88] sm:$0xf]
  %v31 = vld [vmem:[%s0 + $0x8c] sm:$0xff]
  %v32 = vld [vmem:[%s0 + $0x94] sm:$0xff]
  %v33 = vld [vmem:[%s0 + $0x9c] sm:$0xff]
  %v34 = vld [vmem:[%s0 + $0xa4] sm:$0xf]
  %v35 = vld [vmem:[%s0 + $0xa8] sm:$0xff]
  %v36 = vld [vmem:[%s0 + $0xb0] sm:$0xff]
  %v37 = vld [vmem:[%s0 + $0xb8] sm:$0xff]
  %v38 = vld [vmem:[%s0 + $0xc0] sm:$0xf]
  %v39 = vld [vmem:[%s0 + $0xc4] sm:$0xff]
  %v40 = vld [vmem:[%s0 + $0xcc] sm:$0xff]
  %v41 = vld [vmem:[%s0 + $0xd4] sm:$0xff]
  %v42 = vld [vmem:[%s0 + $0xdc] sm:$0xf]
  %v43 = vld [vmem:[%s0 + $0xe0] sm:$0xff]
  %v44 = vld [vmem:[%s0 + $0xe8] sm:$0xff]
  %v45 = vld [vmem:[%s0 + $0xf0] sm:$0xff]
  %v46 = vld [vmem:[%s0 + $0xf8] sm:$0xf]
  %v47 = vld [vmem:[%s0 + $0xfc] sm:$0xff]
  %v48 = vld [vmem:[%s0 + $0x104] sm:$0xff]
  %v49 = vld [vmem:[%s0 + $0x10c] sm:$0xff]
  %v50 = vld [vmem:[%s0 + $0x114] sm:$0xf]
  %v51 = vld [vmem:[%s0 + $0x118] sm:$0xff]
  %v52 = vld [vmem:[%s0 + $0x120] sm:$0xff]
  %v53 = vld [vmem:[%s0 + $0x128] sm:$0xff]
  %v54 = vld [vmem:[%s0 + $0x130] sm:$0xf]
  %v55 = vld [vmem:[%s0 + $0x134] sm:$0xff]
  %v56 = vld [vmem:[%s0 + $0x13c] sm:$0xff]
  %v57 = vld [vmem:[%s0 + $0x144] sm:$0xff]
  %v58 = vld [vmem:[%s0 + $0x14c] sm:$0xf]
  %v59 = vld [vmem:[%s0 + $0x150] sm:$0xff]
  %v60 = vld [vmem:[%s0 + $0x158] sm:$0xff]
  %v61 = vld [vmem:[%s0 + $0x160] sm:$0xff]
  %v62 = vld [vmem:[%s0 + $0x168] sm:$0xf]
  %v63 = vld [vmem:[%s0 + $0x16c] sm:$0xff]
  %v64 = vld [vmem:[%s0 + $0x174] sm:$0xff]
  %v65 = vld [vmem:[%s0 + $0x17c] sm:$0xff]
  %v66 = vld [vmem:[%s0 + $0x184] sm:$0xf]
  %v67 = vld [vmem:[%s0 + $0x188] sm:$0xff]
  %v68 = vld [vmem:[%s0 + $0x190] sm:$0xff]
  %v69 = vld [vmem:[%s0 + $0x198] sm:$0xff]
  %v70 = vld [vmem:[%s0 + $0x1a0] sm:$0xf]
  %v71 = vld [vmem:[%s0 + $0x1a4] sm:$0xff]
  %v72 = vld [vmem:[%s0 + $0x1ac] sm:$0xff]
  %v73 = vld [vmem:[%s0 + $0x1b4] sm:$0xff]
  %v74 = vld [vmem:[%s0 + $0x1bc] sm:$0xf]
  %v75 = vld [vmem:[%s1] sm:$0xf]
  %v76 = vld [vmem:[%s1 + $0x4] sm:$0xf]
  %v77 = vld [vmem:[%s1 + $0x8] sm:$0xf]
  %v78 = vld [vmem:[%s1 + $0xc] sm:$0xf]
  %v79 = vld [vmem:[%s1 + $0x10] sm:$0xf]
  %v80 = vld [vmem:[%s1 + $0x14] sm:$0xf]
  %v81 = vld [vmem:[%s1 + $0x18] sm:$0xf]
  %v82 = vld [vmem:[%s1 + $0x1c] sm:$0xf]
  %v83 = vld [vmem:[%s1 + $0x20] sm:$0xf]
  %v84 = vld [vmem:[%s1 + $0x24] sm:$0xf]
  %v85 = vld [vmem:[%s1 + $0x28] sm:$0xf]
  %v86 = vld [vmem:[%s1 + $0x2c] sm:$0xf]
  %v87 = vld [vmem:[%s1 + $0x30] sm:$0xf]
  %v88 = vld [vmem:[%s1 + $0x34] sm:$0xf]
  %v89 = vld [vmem:[%s1 + $0x38] sm:$0xf]
  %v90 = vld [vmem:[%s1 + $0x3c] sm:$0xf]
  %v91 = vld [vmem:[%s1 + $0x40] sm:$0xf]
  %v92 = vld [vmem:[%s1 + $0x44] sm:$0xf]
  %v93 = vld [vmem:[%s1 + $0x48] sm:$0xf]
  %v94 = vld [vmem:[%s1 + $0x4c] sm:$0xf]
  %v95 = vld [vmem:[%s1 + $0x50] sm:$0xf]
  %v96 = vld [vmem:[%s1 + $0x54] sm:$0xf]
  %v97 = vld [vmem:[%s1 + $0x58] sm:$0xf]
  %v98 = vld [vmem:[%s1 + $0x5c] sm:$0xf]
  %v99 = vld [vmem:[%s1 + $0x60] sm:$0xf]
  %v100 = vld [vmem:[%s1 + $0x64] sm:$0xf]
  %v101 = vld [vmem:[%s1 + $0x68] sm:$0xf]
  %v102 = vld [vmem:[%s1 + $0x6c] sm:$0xf]
  %v103 = vld [vmem:[%s1 + $0x70] sm:$0xf]
  %v104 = vld [vmem:[%s1 + $0x74] sm:$0xf]
  %v105 = vld [vmem:[%s1 + $0x78] sm:$0xf]
  %v106 = vld [vmem:[%s1 + $0x7c] sm:$0xf]
  %v107 = vld [vmem:[%s1 + $0x80] sm:$0xf]
  %v108 = vld [vmem:[%s1 + $0x84] sm:$0xf]
  %v109 = vld [vmem:[%s1 + $0x88] sm:$0xf]
  %v110 = vld [vmem:[%s1 + $0x8c] sm:$0xf]
  %v111 = vld [vmem:[%s1 + $0x90] sm:$0xf]
  %v112 = vld [vmem:[%s1 + $0x94] sm:$0xf]
  %v113 = vld [vmem:[%s1 + $0x98] sm:$0xf]
  %v114 = vld [vmem:[%s1 + $0x9c] sm:$0xf]
  %v115 = vld [vmem:[%s1 + $0xa0] sm:$0xf]
  %v116 = vld [vmem:[%s1 + $0xa4] sm:$0xf]
  %v117 = vld [vmem:[%s1 + $0xa8] sm:$0xf]
  %v118 = vld [vmem:[%s1 + $0xac] sm:$0xf]
  %v119 = vld [vmem:[%s1 + $0xb0] sm:$0xf]
  %v120 = vld [vmem:[%s1 + $0xb4] sm:$0xf]
  %v121 = vld [vmem:[%s1 + $0xb8] sm:$0xf]
  %v122 = vld [vmem:[%s1 + $0xbc] sm:$0xf]
  %v123 = vld [vmem:[%s1 + $0xc0] sm:$0xf]
  %v124 = vld [vmem:[%s1 + $0xc4] sm:$0xf]
  %v125 = vld [vmem:[%s1 + $0xc8] sm:$0xf]
  %v126 = vld [vmem:[%s1 + $0xcc] sm:$0xf]
  %v127 = vld [vmem:[%s1 + $0xd0] sm:$0xf]
  %v128 = vld [vmem:[%s1 + $0xd4] sm:$0xf]
  %v129 = vld [vmem:[%s1 + $0xd8] sm:$0xf]
  %v130 = vld [vmem:[%s1 + $0xdc] sm:$0xf]
  %v131 = vld [vmem:[%s1 + $0xe0] sm:$0xf]
  %v132 = vld [vmem:[%s1 + $0xe4] sm:$0xf]
  %v133 = vld [vmem:[%s1 + $0xe8] sm:$0xf]
  %v134 = vld [vmem:[%s1 + $0xec] sm:$0xf]
  %v135 = vld [vmem:[%s1 + $0xf0] sm:$0xf]
  %v136 = vld [vmem:[%s1 + $0xf4] sm:$0xf]
  %v137 = vld [vmem:[%s1 + $0xf8] sm:$0xf]
  %v138 = vld [vmem:[%s1 + $0xfc] sm:$0xf]
  %v139 = vld [vmem:[%s1 + $0x100] sm:$0xf]
  %v140 = vld [vmem:[%s1 + $0x104] sm:$0xf]
  %v141 = vld [vmem:[%s1 + $0x108] sm:$0xf]
  %v142 = vld [vmem:[%s1 + $0x10c] sm:$0xf]
  %v143 = vld [vmem:[%s1 + $0x110] sm:$0xf]
  %v144 = vld [vmem:[%s1 + $0x114] sm:$0xf]
  %v145 = vld [vmem:[%s1 + $0x118] sm:$0xf]
  %v146 = vld [vmem:[%s1 + $0x11c] sm:$0xf]
  %v147 = vld [vmem:[%s1 + $0x120] sm:$0xf]
  %v148 = vld [vmem:[%s1 + $0x124] sm:$0xf]
  %v149 = vld [vmem:[%s1 + $0x128] sm:$0xf]
  %v150 = vld [vmem:[%s1 + $0x12c] sm:$0xf]
  %v151 = vld [vmem:[%s1 + $0x130] sm:$0xf]
  %v152 = vld [vmem:[%s1 + $0x134] sm:$0xf]
  %v153 = vld [vmem:[%s1 + $0x138] sm:$0xf]
  %v154 = vld [vmem:[%s1 + $0x13c] sm:$0xf]
  %v155 = vld [vmem:[%s1 + $0x140] sm:$0xf]
  %v156 = vld [vmem:[%s1 + $0x144] sm:$0xf]
  %v157 = vld [vmem:[%s1 + $0x148] sm:$0xf]
  %v158 = vld [vmem:[%s1 + $0x14c] sm:$0xf]
  %v159 = vld [vmem:[%s1 + $0x150] sm:$0xf]
  %v160 = vld [vmem:[%s1 + $0x154] sm:$0xf]
  %v161 = vld [vmem:[%s1 + $0x158] sm:$0xf]
  %v162 = vld [vmem:[%s1 + $0x15c] sm:$0xf]
  %v163 = vld [vmem:[%s1 + $0x160] sm:$0xf]
  %v164 = vld [vmem:[%s1 + $0x164] sm:$0xf]
  %v165 = vld [vmem:[%s1 + $0x168] sm:$0xf]
  %v166 = vld [vmem:[%s1 + $0x16c] sm:$0xf]
  %v167 = vld [vmem:[%s1 + $0x170] sm:$0xf]
  %v168 = vld [vmem:[%s1 + $0x174] sm:$0xf]
  %v169 = vld [vmem:[%s1 + $0x178] sm:$0xf]
  %v170 = vld [vmem:[%s1 + $0x17c] sm:$0xf]
  %v171 = vld [vmem:[%s1 + $0x180] sm:$0xf]
  %v172 = vld [vmem:[%s1 + $0x184] sm:$0xf]
  %v173 = vld [vmem:[%s1 + $0x188] sm:$0xf]
  %v174 = vld [vmem:[%s1 + $0x18c] sm:$0xf]
  %v175 = vld [vmem:[%s1 + $0x190] sm:$0xf]
  %v176 = vld [vmem:[%s1 + $0x194] sm:$0xf]
  %v177 = vld [vmem:[%s1 + $0x198] sm:$0xf]
  %v178 = vld [vmem:[%s1 + $0x19c] sm:$0xf]
  %v179 = vld [vmem:[%s1 + $0x1a0] sm:$0xf]
  %v180 = vld [vmem:[%s1 + $0x1a4] sm:$0xf]
  %v181 = vld [vmem:[%s1 + $0x1a8] sm:$0xf]
  %v182 = vld [vmem:[%s1 + $0x1ac] sm:$0xf]
  %v183 = vld [vmem:[%s1 + $0x1b0] sm:$0xf]
  %v184 = vld [vmem:[%s1 + $0x1b4] sm:$0xf]
  %v185 = vld [vmem:[%s1 + $0x1b8] sm:$0xf]
  %v186 = vld [vmem:[%s1 + $0x1bc] sm:$0xf]
  %v251 = vunpack.c.l.b16 %v11
  %v252 = vunpack.c.h.b16 %v11
  %v253 = vunpack.c.l.b16 %v12
  %v254 = vunpack.c.h.b16 %v12
  %v255 = vunpack.c.l.b16 %v13
  %v256 = vunpack.c.h.b16 %v13
  %v257 = vunpack.c.l.b16 %v14
  %v258 = vunpack.c.l.b16 %v15
  %v259 = vunpack.c.h.b16 %v15
  %v260 = vunpack.c.l.b16 %v16
  %v261 = vunpack.c.h.b16 %v16
  %v262 = vunpack.c.l.b16 %v17
  %v263 = vunpack.c.h.b16 %v17
  %v264 = vunpack.c.l.b16 %v18
  %v265 = vunpack.c.l.b16 %v19
  %v266 = vunpack.c.h.b16 %v19
  %v267 = vunpack.c.l.b16 %v20
  %v268 = vunpack.c.h.b16 %v20
  %v269 = vunpack.c.l.b16 %v21
  %v270 = vunpack.c.h.b16 %v21
  %v271 = vunpack.c.l.b16 %v22
  %v272 = vunpack.c.l.b16 %v23
  %v273 = vunpack.c.h.b16 %v23
  %v274 = vunpack.c.l.b16 %v24
  %v275 = vunpack.c.h.b16 %v24
  %v276 = vunpack.c.l.b16 %v25
  %v277 = vunpack.c.h.b16 %v25
  %v278 = vunpack.c.l.b16 %v26
  %v279 = vunpack.c.l.b16 %v27
  %v280 = vunpack.c.h.b16 %v27
  %v281 = vunpack.c.l.b16 %v28
  %v282 = vunpack.c.h.b16 %v28
  %v283 = vunpack.c.l.b16 %v29
  %v284 = vunpack.c.h.b16 %v29
  %v285 = vunpack.c.l.b16 %v30
  %v286 = vunpack.c.l.b16 %v31
  %v287 = vunpack.c.h.b16 %v31
  %v288 = vunpack.c.l.b16 %v32
  %v289 = vunpack.c.h.b16 %v32
  %v290 = vunpack.c.l.b16 %v33
  %v291 = vunpack.c.h.b16 %v33
  %v292 = vunpack.c.l.b16 %v34
  %v293 = vunpack.c.l.b16 %v35
  %v294 = vunpack.c.h.b16 %v35
  %v295 = vunpack.c.l.b16 %v36
  %v296 = vunpack.c.h.b16 %v36
  %v297 = vunpack.c.l.b16 %v37
  %v298 = vunpack.c.h.b16 %v37
  %v299 = vunpack.c.l.b16 %v38
  %v300 = vunpack.c.l.b16 %v39
  %v301 = vunpack.c.h.b16 %v39
  %v302 = vunpack.c.l.b16 %v40
  %v303 = vunpack.c.h.b16 %v40
  %v304 = vunpack.c.l.b16 %v41
  %v305 = vunpack.c.h.b16 %v41
  %v306 = vunpack.c.l.b16 %v42
  %v307 = vunpack.c.l.b16 %v43
  %v308 = vunpack.c.h.b16 %v43
  %v309 = vunpack.c.l.b16 %v44
  %v310 = vunpack.c.h.b16 %v44
  %v311 = vunpack.c.l.b16 %v45
  %v312 = vunpack.c.h.b16 %v45
  %v313 = vunpack.c.l.b16 %v46
  %v314 = vunpack.c.l.b16 %v47
  %v315 = vunpack.c.h.b16 %v47
  %v316 = vunpack.c.l.b16 %v48
  %v317 = vunpack.c.h.b16 %v48
  %v318 = vunpack.c.l.b16 %v49
  %v319 = vunpack.c.h.b16 %v49
  %v320 = vunpack.c.l.b16 %v50
  %v321 = vunpack.c.l.b16 %v51
  %v322 = vunpack.c.h.b16 %v51
  %v323 = vunpack.c.l.b16 %v52
  %v324 = vunpack.c.h.b16 %v52
  %v325 = vunpack.c.l.b16 %v53
  %v326 = vunpack.c.h.b16 %v53
  %v327 = vunpack.c.l.b16 %v54
  %v328 = vunpack.c.l.b16 %v55
  %v329 = vunpack.c.h.b16 %v55
  %v330 = vunpack.c.l.b16 %v56
  %v331 = vunpack.c.h.b16 %v56
  %v332 = vunpack.c.l.b16 %v57
  %v333 = vunpack.c.h.b16 %v57
  %v334 = vunpack.c.l.b16 %v58
  %v335 = vunpack.c.l.b16 %v59
  %v336 = vunpack.c.h.b16 %v59
  %v337 = vunpack.c.l.b16 %v60
  %v338 = vunpack.c.h.b16 %v60
  %v339 = vunpack.c.l.b16 %v61
  %v340 = vunpack.c.h.b16 %v61
  %v341 = vunpack.c.l.b16 %v62
  %v342 = vunpack.c.l.b16 %v63
  %v343 = vunpack.c.h.b16 %v63
  %v344 = vunpack.c.l.b16 %v64
  %v345 = vunpack.c.h.b16 %v64
  %v346 = vunpack.c.l.b16 %v65
  %v347 = vunpack.c.h.b16 %v65
  %v348 = vunpack.c.l.b16 %v66
  %v349 = vunpack.c.l.b16 %v67
  %v350 = vunpack.c.h.b16 %v67
  %v351 = vunpack.c.l.b16 %v68
  %v352 = vunpack.c.h.b16 %v68
  %v353 = vunpack.c.l.b16 %v69
  %v354 = vunpack.c.h.b16 %v69
  %v355 = vunpack.c.l.b16 %v70
  %v356 = vunpack.c.l.b16 %v71
  %v357 = vunpack.c.h.b16 %v71
  %v358 = vunpack.c.l.b16 %v72
  %v359 = vunpack.c.h.b16 %v72
  %v360 = vunpack.c.l.b16 %v73
  %v361 = vunpack.c.h.b16 %v73
  %v362 = vunpack.c.l.b16 %v74
  %v363 = vpack.c.b16 %v258, %v251
  %v364 = vpack.c.b16 %v259, %v252
  %v365 = vpack.c.b16 %v260, %v253
  %v366 = vpack.c.b16 %v261, %v254
  %v367 = vpack.c.b16 %v262, %v255
  %v368 = vpack.c.b16 %v263, %v256
  %v369 = vpack.c.b16 %v264, %v257
  %v370 = vpack.c.b16 %v272, %v265
  %v371 = vpack.c.b16 %v273, %v266
  %v372 = vpack.c.b16 %v274, %v267
  %v373 = vpack.c.b16 %v275, %v268
  %v374 = vpack.c.b16 %v276, %v269
  %v375 = vpack.c.b16 %v277, %v270
  %v376 = vpack.c.b16 %v278, %v271
  %v377 = vpack.c.b16 %v286, %v279
  %v378 = vpack.c.b16 %v287, %v280
  %v379 = vpack.c.b16 %v288, %v281
  %v380 = vpack.c.b16 %v289, %v282
  %v381 = vpack.c.b16 %v290, %v283
  %v382 = vpack.c.b16 %v291, %v284
  %v383 = vpack.c.b16 %v292, %v285
  %v384 = vpack.c.b16 %v300, %v293
  %v385 = vpack.c.b16 %v301, %v294
  %v386 = vpack.c.b16 %v302, %v295
  %v387 = vpack.c.b16 %v303, %v296
  %v388 = vpack.c.b16 %v304, %v297
  %v389 = vpack.c.b16 %v305, %v298
  %v390 = vpack.c.b16 %v306, %v299
  %v391 = vpack.c.b16 %v314, %v307
  %v392 = vpack.c.b16 %v315, %v308
  %v393 = vpack.c.b16 %v316, %v309
  %v394 = vpack.c.b16 %v317, %v310
  %v395 = vpack.c.b16 %v318, %v311
  %v396 = vpack.c.b16 %v319, %v312
  %v397 = vpack.c.b16 %v320, %v313
  %v398 = vpack.c.b16 %v328, %v321
  %v399 = vpack.c.b16 %v329, %v322
  %v400 = vpack.c.b16 %v330, %v323
  %v401 = vpack.c.b16 %v331, %v324
  %v402 = vpack.c.b16 %v332, %v325
  %v403 = vpack.c.b16 %v333, %v326
  %v404 = vpack.c.b16 %v334, %v327
  %v405 = vpack.c.b16 %v342, %v335
  %v406 = vpack.c.b16 %v343, %v336
  %v407 = vpack.c.b16 %v344, %v337
  %v408 = vpack.c.b16 %v345, %v338
  %v409 = vpack.c.b16 %v346, %v339
  %v410 = vpack.c.b16 %v347, %v340
  %v411 = vpack.c.b16 %v348, %v341
  %v412 = vpack.c.b16 %v356, %v349
  %v413 = vpack.c.b16 %v357, %v350
  %v414 = vpack.c.b16 %v358, %v351
  %v415 = vpack.c.b16 %v359, %v352
  %v416 = vpack.c.b16 %v360, %v353
  %v417 = vpack.c.b16 %v361, %v354
  %v418 = vpack.c.b16 %v362, %v355
  %v587 = vunpack.c.l.b16 %v75
  %v588 = vunpack.c.l.b16 %v76
  %v589 = vunpack.c.l.b16 %v77
  %v590 = vunpack.c.l.b16 %v78
  %v591 = vunpack.c.l.b16 %v79
  %v592 = vunpack.c.l.b16 %v80
  %v593 = vunpack.c.l.b16 %v81
  %v594 = vunpack.c.l.b16 %v82
  %v595 = vunpack.c.l.b16 %v83
  %v596 = vunpack.c.l.b16 %v84
  %v597 = vunpack.c.l.b16 %v85
  %v598 = vunpack.c.l.b16 %v86
  %v599 = vunpack.c.l.b16 %v87
  %v600 = vunpack.c.l.b16 %v88
  %v601 = vunpack.c.l.b16 %v89
  %v602 = vunpack.c.l.b16 %v90
  %v603 = vunpack.c.l.b16 %v91
  %v604 = vunpack.c.l.b16 %v92
  %v605 = vunpack.c.l.b16 %v93
  %v606 = vunpack.c.l.b16 %v94
  %v607 = vunpack.c.l.b16 %v95
  %v608 = vunpack.c.l.b16 %v96
  %v609 = vunpack.c.l.b16 %v97
  %v610 = vunpack.c.l.b16 %v98
  %v611 = vunpack.c.l.b16 %v99
  %v612 = vunpack.c.l.b16 %v100
  %v613 = vunpack.c.l.b16 %v101
  %v614 = vunpack.c.l.b16 %v102
  %v615 = vunpack.c.l.b16 %v103
  %v616 = vunpack.c.l.b16 %v104
  %v617 = vunpack.c.l.b16 %v105
  %v618 = vunpack.c.l.b16 %v106
  %v619 = vunpack.c.l.b16 %v107
  %v620 = vunpack.c.l.b16 %v108
  %v621 = vunpack.c.l.b16 %v109
  %v622 = vunpack.c.l.b16 %v110
  %v623 = vunpack.c.l.b16 %v111
  %v624 = vunpack.c.l.b16 %v112
  %v625 = vunpack.c.l.b16 %v113
  %v626 = vunpack.c.l.b16 %v114
  %v627 = vunpack.c.l.b16 %v115
  %v628 = vunpack.c.l.b16 %v116
  %v629 = vunpack.c.l.b16 %v117
  %v630 = vunpack.c.l.b16 %v118
  %v631 = vunpack.c.l.b16 %v119
  %v632 = vunpack.c.l.b16 %v120
  %v633 = vunpack.c.l.b16 %v121
  %v634 = vunpack.c.l.b16 %v122
  %v635 = vunpack.c.l.b16 %v123
  %v636 = vunpack.c.l.b16 %v124
  %v637 = vunpack.c.l.b16 %v125
  %v638 = vunpack.c.l.b16 %v126
  %v639 = vunpack.c.l.b16 %v127
  %v640 = vunpack.c.l.b16 %v128
  %v641 = vunpack.c.l.b16 %v129
  %v642 = vunpack.c.l.b16 %v130
  %v643 = vunpack.c.l.b16 %v131
  %v644 = vunpack.c.l.b16 %v132
  %v645 = vunpack.c.l.b16 %v133
  %v646 = vunpack.c.l.b16 %v134
  %v647 = vunpack.c.l.b16 %v135
  %v648 = vunpack.c.l.b16 %v136
  %v649 = vunpack.c.l.b16 %v137
  %v650 = vunpack.c.l.b16 %v138
  %v651 = vunpack.c.l.b16 %v139
  %v652 = vunpack.c.l.b16 %v140
  %v653 = vunpack.c.l.b16 %v141
  %v654 = vunpack.c.l.b16 %v142
  %v655 = vunpack.c.l.b16 %v143
  %v656 = vunpack.c.l.b16 %v144
  %v657 = vunpack.c.l.b16 %v145
  %v658 = vunpack.c.l.b16 %v146
  %v659 = vunpack.c.l.b16 %v147
  %v660 = vunpack.c.l.b16 %v148
  %v661 = vunpack.c.l.b16 %v149
  %v662 = vunpack.c.l.b16 %v150
  %v663 = vunpack.c.l.b16 %v151
  %v664 = vunpack.c.l.b16 %v152
  %v665 = vunpack.c.l.b16 %v153
  %v666 = vunpack.c.l.b16 %v154
  %v667 = vunpack.c.l.b16 %v155
  %v668 = vunpack.c.l.b16 %v156
  %v669 = vunpack.c.l.b16 %v157
  %v670 = vunpack.c.l.b16 %v158
  %v671 = vunpack.c.l.b16 %v159
  %v672 = vunpack.c.l.b16 %v160
  %v673 = vunpack.c.l.b16 %v161
  %v674 = vunpack.c.l.b16 %v162
  %v675 = vunpack.c.l.b16 %v163
  %v676 = vunpack.c.l.b16 %v164
  %v677 = vunpack.c.l.b16 %v165
  %v678 = vunpack.c.l.b16 %v166
  %v679 = vunpack.c.l.b16 %v167
  %v680 = vunpack.c.l.b16 %v168
  %v681 = vunpack.c.l.b16 %v169
  %v682 = vunpack.c.l.b16 %v170
  %v683 = vunpack.c.l.b16 %v171
  %v684 = vunpack.c.l.b16 %v172
  %v685 = vunpack.c.l.b16 %v173
  %v686 = vunpack.c.l.b16 %v174
  %v687 = vunpack.c.l.b16 %v175
  %v688 = vunpack.c.l.b16 %v176
  %v689 = vunpack.c.l.b16 %v177
  %v690 = vunpack.c.l.b16 %v178
  %v691 = vunpack.c.l.b16 %v179
  %v692 = vunpack.c.l.b16 %v180
  %v693 = vunpack.c.l.b16 %v181
  %v694 = vunpack.c.l.b16 %v182
  %v695 = vunpack.c.l.b16 %v183
  %v696 = vunpack.c.l.b16 %v184
  %v697 = vunpack.c.l.b16 %v185
  %v698 = vunpack.c.l.b16 %v186
  %v699 = vpack.c.b16 %v588, %v587
  %v700 = vpack.c.b16 %v590, %v589
  %v701 = vpack.c.b16 %v592, %v591
  %v702 = vpack.c.b16 %v594, %v593
  %v703 = vpack.c.b16 %v596, %v595
  %v704 = vpack.c.b16 %v598, %v597
  %v705 = vpack.c.b16 %v600, %v599
  %v706 = vpack.c.b16 %v602, %v601
  %v707 = vpack.c.b16 %v604, %v603
  %v708 = vpack.c.b16 %v606, %v605
  %v709 = vpack.c.b16 %v608, %v607
  %v710 = vpack.c.b16 %v610, %v609
  %v711 = vpack.c.b16 %v612, %v611
  %v712 = vpack.c.b16 %v614, %v613
  %v713 = vpack.c.b16 %v616, %v615
  %v714 = vpack.c.b16 %v618, %v617
  %v715 = vpack.c.b16 %v620, %v619
  %v716 = vpack.c.b16 %v622, %v621
  %v717 = vpack.c.b16 %v624, %v623
  %v718 = vpack.c.b16 %v626, %v625
  %v719 = vpack.c.b16 %v628, %v627
  %v720 = vpack.c.b16 %v630, %v629
  %v721 = vpack.c.b16 %v632, %v631
  %v722 = vpack.c.b16 %v634, %v633
  %v723 = vpack.c.b16 %v636, %v635
  %v724 = vpack.c.b16 %v638, %v637
  %v725 = vpack.c.b16 %v640, %v639
  %v726 = vpack.c.b16 %v642, %v641
  %v727 = vpack.c.b16 %v644, %v643
  %v728 = vpack.c.b16 %v646, %v645
  %v729 = vpack.c.b16 %v648, %v647
  %v730 = vpack.c.b16 %v650, %v649
  %v731 = vpack.c.b16 %v652, %v651
  %v732 = vpack.c.b16 %v654, %v653
  %v733 = vpack.c.b16 %v656, %v655
  %v734 = vpack.c.b16 %v658, %v657
  %v735 = vpack.c.b16 %v660, %v659
  %v736 = vpack.c.b16 %v662, %v661
  %v737 = vpack.c.b16 %v664, %v663
  %v738 = vpack.c.b16 %v666, %v665
  %v739 = vpack.c.b16 %v668, %v667
  %v740 = vpack.c.b16 %v670, %v669
  %v741 = vpack.c.b16 %v672, %v671
  %v742 = vpack.c.b16 %v674, %v673
  %v743 = vpack.c.b16 %v676, %v675
  %v744 = vpack.c.b16 %v678, %v677
  %v745 = vpack.c.b16 %v680, %v679
  %v746 = vpack.c.b16 %v682, %v681
  %v747 = vpack.c.b16 %v684, %v683
  %v748 = vpack.c.b16 %v686, %v685
  %v749 = vpack.c.b16 %v688, %v687
  %v750 = vpack.c.b16 %v690, %v689
  %v751 = vpack.c.b16 %v692, %v691
  %v752 = vpack.c.b16 %v694, %v693
  %v753 = vpack.c.b16 %v696, %v695
  %v754 = vpack.c.b16 %v698, %v697
  %811 = vmatpush.bf16.msra.mxu0 %v706
  %812 = vmatpush.bf16.msra.mxu0 %v705
  %813 = vmatpush.bf16.msra.mxu0 %v704
  %814 = vmatpush.bf16.msra.mxu0 %v703
  %815 = vmatpush.bf16.msra.mxu0 %v702
  %816 = vmatpush.bf16.msra.mxu0 %v701
  %817 = vmatpush.bf16.msra.mxu0 %v700
  %818 = vmatpush.bf16.msra.mxu0 %v699
  %819 = vmatmul.bf16.gmra.mxu0 %v363
  %v820 = vpop.f32.mrf.mxu0
  %v821 = vadd.f32 0.0, %v820
  %v822 = vpop.f32.mrf.mxu0
  %v823 = vadd.f32 0.0, %v822
  %824 = vmatmul.bf16.gmra.mxu0 %v370
  %v825 = vpop.f32.mrf.mxu0
  %v826 = vadd.f32 0.0, %v825
  %v827 = vpop.f32.mrf.mxu0
  %v828 = vadd.f32 0.0, %v827
  %829 = vmatmul.bf16.gmra.mxu0 %v377
  %v830 = vpop.f32.mrf.mxu0
  %v831 = vadd.f32 0.0, %v830
  %v832 = vpop.f32.mrf.mxu0
  %v833 = vadd.f32 0.0, %v832
  %834 = vmatmul.bf16.gmra.mxu0 %v384
  %v835 = vpop.f32.mrf.mxu0
  %v836 = vadd.f32 0.0, %v835
  %v837 = vpop.f32.mrf.mxu0
  %v838 = vadd.f32 0.0, %v837
  %839 = vmatmul.bf16.gmra.mxu0 %v391
  %v840 = vpop.f32.mrf.mxu0
  %v841 = vadd.f32 0.0, %v840
  %v842 = vpop.f32.mrf.mxu0
  %v843 = vadd.f32 0.0, %v842
  %844 = vmatmul.bf16.gmra.mxu0 %v398
  %v845 = vpop.f32.mrf.mxu0
  %v846 = vadd.f32 0.0, %v845
  %v847 = vpop.f32.mrf.mxu0
  %v848 = vadd.f32 0.0, %v847
  %849 = vmatmul.bf16.gmra.mxu0 %v405
  %v850 = vpop.f32.mrf.mxu0
  %v851 = vadd.f32 0.0, %v850
  %v852 = vpop.f32.mrf.mxu0
  %v853 = vadd.f32 0.0, %v852
  %854 = vmatmul.bf16.gmra.mxu0 %v412
  %v855 = vpop.f32.mrf.mxu0
  %v856 = vadd.f32 0.0, %v855
  %v857 = vpop.f32.mrf.mxu0
  %v858 = vadd.f32 0.0, %v857
  %859 = vdwg.mxu0
  %860 = vmatpush.bf16.msra.mxu0 %v714
  %861 = vmatpush.bf16.msra.mxu0 %v713
  %862 = vmatpush.bf16.msra.mxu0 %v712
  %863 = vmatpush.bf16.msra.mxu0 %v711
  %864 = vmatpush.bf16.msra.mxu0 %v710
  %865 = vmatpush.bf16.msra.mxu0 %v709
  %866 = vmatpush.bf16.msra.mxu0 %v708
  %867 = vmatpush.bf16.msra.mxu0 %v707
  %868 = vmatmul.bf16.gmra.mxu0 %v364
  %v869 = vpop.f32.mrf.mxu0
  %v870 = vadd.f32 %v821, %v869
  %v871 = vpop.f32.mrf.mxu0
  %v872 = vadd.f32 %v823, %v871
  %873 = vmatmul.bf16.gmra.mxu0 %v371
  %v874 = vpop.f32.mrf.mxu0
  %v875 = vadd.f32 %v826, %v874
  %v876 = vpop.f32.mrf.mxu0
  %v877 = vadd.f32 %v828, %v876
  %878 = vmatmul.bf16.gmra.mxu0 %v378
  %v879 = vpop.f32.mrf.mxu0
  %v880 = vadd.f32 %v831, %v879
  %v881 = vpop.f32.mrf.mxu0
  %v882 = vadd.f32 %v833, %v881
  %883 = vmatmul.bf16.gmra.mxu0 %v385
  %v884 = vpop.f32.mrf.mxu0
  %v885 = vadd.f32 %v836, %v884
  %v886 = vpop.f32.mrf.mxu0
  %v887 = vadd.f32 %v838, %v886
  %888 = vmatmul.bf16.gmra.mxu0 %v392
  %v889 = vpop.f32.mrf.mxu0
  %v890 = vadd.f32 %v841, %v889
  %v891 = vpop.f32.mrf.mxu0
  %v892 = vadd.f32 %v843, %v891
  %893 = vmatmul.bf16.gmra.mxu0 %v399
  %v894 = vpop.f32.mrf.mxu0
  %v895 = vadd.f32 %v846, %v894
  %v896 = vpop.f32.mrf.mxu0
  %v897 = vadd.f32 %v848, %v896
  %898 = vmatmul.bf16.gmra.mxu0 %v406
  %v899 = vpop.f32.mrf.mxu0
  %v900 = vadd.f32 %v851, %v899
  %v901 = vpop.f32.mrf.mxu0
  %v902 = vadd.f32 %v853, %v901
  %903 = vmatmul.bf16.gmra.mxu0 %v413
  %v904 = vpop.f32.mrf.mxu0
  %v905 = vadd.f32 %v856, %v904
  %v906 = vpop.f32.mrf.mxu0
  %v907 = vadd.f32 %v858, %v906
  %908 = vdwg.mxu0
  %909 = vmatpush.bf16.msra.mxu0 %v722
  %910 = vmatpush.bf16.msra.mxu0 %v721
  %911 = vmatpush.bf16.msra.mxu0 %v720
  %912 = vmatpush.bf16.msra.mxu0 %v719
  %913 = vmatpush.bf16.msra.mxu0 %v718
  %914 = vmatpush.bf16.msra.mxu0 %v717
  %915 = vmatpush.bf16.msra.mxu0 %v716
  %916 = vmatpush.bf16.msra.mxu0 %v715
  %917 = vmatmul.bf16.gmra.mxu0 %v365
  %v918 = vpop.f32.mrf.mxu0
  %v919 = vadd.f32 %v870, %v918
  %v920 = vpop.f32.mrf.mxu0
  %v921 = vadd.f32 %v872, %v920
  %922 = vmatmul.bf16.gmra.mxu0 %v372
  %v923 = vpop.f32.mrf.mxu0
  %v924 = vadd.f32 %v875, %v923
  %v925 = vpop.f32.mrf.mxu0
  %v926 = vadd.f32 %v877, %v925
  %927 = vmatmul.bf16.gmra.mxu0 %v379
  %v928 = vpop.f32.mrf.mxu0
  %v929 = vadd.f32 %v880, %v928
  %v930 = vpop.f32.mrf.mxu0
  %v931 = vadd.f32 %v882, %v930
  %932 = vmatmul.bf16.gmra.mxu0 %v386
  %v933 = vpop.f32.mrf.mxu0
  %v934 = vadd.f32 %v885, %v933
  %v935 = vpop.f32.mrf.mxu0
  %v936 = vadd.f32 %v887, %v935
  %937 = vmatmul.bf16.gmra.mxu0 %v393
  %v938 = vpop.f32.mrf.mxu0
  %v939 = vadd.f32 %v890, %v938
  %v940 = vpop.f32.mrf.mxu0
  %v941 = vadd.f32 %v892, %v940
  %942 = vmatmul.bf16.gmra.mxu0 %v400
  %v943 = vpop.f32.mrf.mxu0
  %v944 = vadd.f32 %v895, %v943
  %v945 = vpop.f32.mrf.mxu0
  %v946 = vadd.f32 %v897, %v945
  %947 = vmatmul.bf16.gmra.mxu0 %v407
  %v948 = vpop.f32.mrf.mxu0
  %v949 = vadd.f32 %v900, %v948
  %v950 = vpop.f32.mrf.mxu0
  %v951 = vadd.f32 %v902, %v950
  %952 = vmatmul.bf16.gmra.mxu0 %v414
  %v953 = vpop.f32.mrf.mxu0
  %v954 = vadd.f32 %v905, %v953
  %v955 = vpop.f32.mrf.mxu0
  %v956 = vadd.f32 %v907, %v955
  %957 = vdwg.mxu0
  %958 = vmatpush.bf16.msra.mxu0 %v730
  %959 = vmatpush.bf16.msra.mxu0 %v729
  %960 = vmatpush.bf16.msra.mxu0 %v728
  %961 = vmatpush.bf16.msra.mxu0 %v727
  %962 = vmatpush.bf16.msra.mxu0 %v726
  %963 = vmatpush.bf16.msra.mxu0 %v725
  %964 = vmatpush.bf16.msra.mxu0 %v724
  %965 = vmatpush.bf16.msra.mxu0 %v723
  %966 = vmatmul.bf16.gmra.mxu0 %v366
  %v967 = vpop.f32.mrf.mxu0
  %v968 = vadd.f32 %v919, %v967
  %v969 = vpop.f32.mrf.mxu0
  %v970 = vadd.f32 %v921, %v969
  %971 = vmatmul.bf16.gmra.mxu0 %v373
  %v972 = vpop.f32.mrf.mxu0
  %v973 = vadd.f32 %v924, %v972
  %v974 = vpop.f32.mrf.mxu0
  %v975 = vadd.f32 %v926, %v974
  %976 = vmatmul.bf16.gmra.mxu0 %v380
  %v977 = vpop.f32.mrf.mxu0
  %v978 = vadd.f32 %v929, %v977
  %v979 = vpop.f32.mrf.mxu0
  %v980 = vadd.f32 %v931, %v979
  %981 = vmatmul.bf16.gmra.mxu0 %v387
  %v982 = vpop.f32.mrf.mxu0
  %v983 = vadd.f32 %v934, %v982
  %v984 = vpop.f32.mrf.mxu0
  %v985 = vadd.f32 %v936, %v984
  %986 = vmatmul.bf16.gmra.mxu0 %v394
  %v987 = vpop.f32.mrf.mxu0
  %v988 = vadd.f32 %v939, %v987
  %v989 = vpop.f32.mrf.mxu0
  %v990 = vadd.f32 %v941, %v989
  %991 = vmatmul.bf16.gmra.mxu0 %v401
  %v992 = vpop.f32.mrf.mxu0
  %v993 = vadd.f32 %v944, %v992
  %v994 = vpop.f32.mrf.mxu0
  %v995 = vadd.f32 %v946, %v994
  %996 = vmatmul.bf16.gmra.mxu0 %v408
  %v997 = vpop.f32.mrf.mxu0
  %v998 = vadd.f32 %v949, %v997
  %v999 = vpop.f32.mrf.mxu0
  %v1000 = vadd.f32 %v951, %v999
  %1001 = vmatmul.bf16.gmra.mxu0 %v415
  %v1002 = vpop.f32.mrf.mxu0
  %v1003 = vadd.f32 %v954, %v1002
  %v1004 = vpop.f32.mrf.mxu0
  %v1005 = vadd.f32 %v956, %v1004
  %1006 = vdwg.mxu0
  %1007 = vmatpush.bf16.msra.mxu0 %v738
  %1008 = vmatpush.bf16.msra.mxu0 %v737
  %1009 = vmatpush.bf16.msra.mxu0 %v736
  %1010 = vmatpush.bf16.msra.mxu0 %v735
  %1011 = vmatpush.bf16.msra.mxu0 %v734
  %1012 = vmatpush.bf16.msra.mxu0 %v733
  %1013 = vmatpush.bf16.msra.mxu0 %v732
  %1014 = vmatpush.bf16.msra.mxu0 %v731
  %1015 = vmatmul.bf16.gmra.mxu0 %v367
  %v1016 = vpop.f32.mrf.mxu0
  %v1017 = vadd.f32 %v968, %v1016
  %v1018 = vpop.f32.mrf.mxu0
  %v1019 = vadd.f32 %v970, %v1018
  %1020 = vmatmul.bf16.gmra.mxu0 %v374
  %v1021 = vpop.f32.mrf.mxu0
  %v1022 = vadd.f32 %v973, %v1021
  %v1023 = vpop.f32.mrf.mxu0
  %v1024 = vadd.f32 %v975, %v1023
  %1025 = vmatmul.bf16.gmra.mxu0 %v381
  %v1026 = vpop.f32.mrf.mxu0
  %v1027 = vadd.f32 %v978, %v1026
  %v1028 = vpop.f32.mrf.mxu0
  %v1029 = vadd.f32 %v980, %v1028
  %1030 = vmatmul.bf16.gmra.mxu0 %v388
  %v1031 = vpop.f32.mrf.mxu0
  %v1032 = vadd.f32 %v983, %v1031
  %v1033 = vpop.f32.mrf.mxu0
  %v1034 = vadd.f32 %v985, %v1033
  %1035 = vmatmul.bf16.gmra.mxu0 %v395
  %v1036 = vpop.f32.mrf.mxu0
  %v1037 = vadd.f32 %v988, %v1036
  %v1038 = vpop.f32.mrf.mxu0
  %v1039 = vadd.f32 %v990, %v1038
  %1040 = vmatmul.bf16.gmra.mxu0 %v402
  %v1041 = vpop.f32.mrf.mxu0
  %v1042 = vadd.f32 %v993, %v1041
  %v1043 = vpop.f32.mrf.mxu0
  %v1044 = vadd.f32 %v995, %v1043
  %1045 = vmatmul.bf16.gmra.mxu0 %v409
  %v1046 = vpop.f32.mrf.mxu0
  %v1047 = vadd.f32 %v998, %v1046
  %v1048 = vpop.f32.mrf.mxu0
  %v1049 = vadd.f32 %v1000, %v1048
  %1050 = vmatmul.bf16.gmra.mxu0 %v416
  %v1051 = vpop.f32.mrf.mxu0
  %v1052 = vadd.f32 %v1003, %v1051
  %v1053 = vpop.f32.mrf.mxu0
  %v1054 = vadd.f32 %v1005, %v1053
  %1055 = vdwg.mxu0
  %1056 = vmatpush.bf16.msra.mxu0 %v746
  %1057 = vmatpush.bf16.msra.mxu0 %v745
  %1058 = vmatpush.bf16.msra.mxu0 %v744
  %1059 = vmatpush.bf16.msra.mxu0 %v743
  %1060 = vmatpush.bf16.msra.mxu0 %v742
  %1061 = vmatpush.bf16.msra.mxu0 %v741
  %1062 = vmatpush.bf16.msra.mxu0 %v740
  %1063 = vmatpush.bf16.msra.mxu0 %v739
  %1064 = vmatmul.bf16.gmra.mxu0 %v368
  %v1065 = vpop.f32.mrf.mxu0
  %v1066 = vadd.f32 %v1017, %v1065
  %v1067 = vpop.f32.mrf.mxu0
  %v1068 = vadd.f32 %v1019, %v1067
  %1069 = vmatmul.bf16.gmra.mxu0 %v375
  %v1070 = vpop.f32.mrf.mxu0
  %v1071 = vadd.f32 %v1022, %v1070
  %v1072 = vpop.f32.mrf.mxu0
  %v1073 = vadd.f32 %v1024, %v1072
  %1074 = vmatmul.bf16.gmra.mxu0 %v382
  %v1075 = vpop.f32.mrf.mxu0
  %v1076 = vadd.f32 %v1027, %v1075
  %v1077 = vpop.f32.mrf.mxu0
  %v1078 = vadd.f32 %v1029, %v1077
  %1079 = vmatmul.bf16.gmra.mxu0 %v389
  %v1080 = vpop.f32.mrf.mxu0
  %v1081 = vadd.f32 %v1032, %v1080
  %v1082 = vpop.f32.mrf.mxu0
  %v1083 = vadd.f32 %v1034, %v1082
  %1084 = vmatmul.bf16.gmra.mxu0 %v396
  %v1085 = vpop.f32.mrf.mxu0
  %v1086 = vadd.f32 %v1037, %v1085
  %v1087 = vpop.f32.mrf.mxu0
  %v1088 = vadd.f32 %v1039, %v1087
  %1089 = vmatmul.bf16.gmra.mxu0 %v403
  %v1090 = vpop.f32.mrf.mxu0
  %v1091 = vadd.f32 %v1042, %v1090
  %v1092 = vpop.f32.mrf.mxu0
  %v1093 = vadd.f32 %v1044, %v1092
  %1094 = vmatmul.bf16.gmra.mxu0 %v410
  %v1095 = vpop.f32.mrf.mxu0
  %v1096 = vadd.f32 %v1047, %v1095
  %v1097 = vpop.f32.mrf.mxu0
  %v1098 = vadd.f32 %v1049, %v1097
  %1099 = vmatmul.bf16.gmra.mxu0 %v417
  %v1100 = vpop.f32.mrf.mxu0
  %v1101 = vadd.f32 %v1052, %v1100
  %v1102 = vpop.f32.mrf.mxu0
  %v1103 = vadd.f32 %v1054, %v1102
  %1104 = vdwg.mxu0
  %1105 = vmatpush.bf16.msra.mxu0 %v754
  %1106 = vmatpush.bf16.msra.mxu0 %v753
  %1107 = vmatpush.bf16.msra.mxu0 %v752
  %1108 = vmatpush.bf16.msra.mxu0 %v751
  %1109 = vmatpush.bf16.msra.mxu0 %v750
  %1110 = vmatpush.bf16.msra.mxu0 %v749
  %1111 = vmatpush.bf16.msra.mxu0 %v748
  %1112 = vmatpush.bf16.msra.mxu0 %v747
  %1113 = vmatmul.bf16.gmra.mxu0 %v369
  %v1114 = vpop.f32.mrf.mxu0
  %v1115 = vadd.f32 %v1066, %v1114
  %v1116 = vpop.f32.mrf.mxu0
  %v1117 = vadd.f32 %v1068, %v1116
  %1118 = vmatmul.bf16.gmra.mxu0 %v376
  %v1119 = vpop.f32.mrf.mxu0
  %v1120 = vadd.f32 %v1071, %v1119
  %v1121 = vpop.f32.mrf.mxu0
  %v1122 = vadd.f32 %v1073, %v1121
  %1123 = vmatmul.bf16.gmra.mxu0 %v383
  %v1124 = vpop.f32.mrf.mxu0
  %v1125 = vadd.f32 %v1076, %v1124
  %v1126 = vpop.f32.mrf.mxu0
  %v1127 = vadd.f32 %v1078, %v1126
  %1128 = vmatmul.bf16.gmra.mxu0 %v390
  %v1129 = vpop.f32.mrf.mxu0
  %v1130 = vadd.f32 %v1081, %v1129
  %v1131 = vpop.f32.mrf.mxu0
  %v1132 = vadd.f32 %v1083, %v1131
  %1133 = vmatmul.bf16.gmra.mxu0 %v397
  %v1134 = vpop.f32.mrf.mxu0
  %v1135 = vadd.f32 %v1086, %v1134
  %v1136 = vpop.f32.mrf.mxu0
  %v1137 = vadd.f32 %v1088, %v1136
  %1138 = vmatmul.bf16.gmra.mxu0 %v404
  %v1139 = vpop.f32.mrf.mxu0
  %v1140 = vadd.f32 %v1091, %v1139
  %v1141 = vpop.f32.mrf.mxu0
  %v1142 = vadd.f32 %v1093, %v1141
  %1143 = vmatmul.bf16.gmra.mxu0 %v411
  %v1144 = vpop.f32.mrf.mxu0
  %v1145 = vadd.f32 %v1096, %v1144
  %v1146 = vpop.f32.mrf.mxu0
  %v1147 = vadd.f32 %v1098, %v1146
  %1148 = vmatmul.bf16.gmra.mxu0 %v418
  %v1149 = vpop.f32.mrf.mxu0
  %v1150 = vadd.f32 %v1101, %v1149
  %v1151 = vpop.f32.mrf.mxu0
  %v1152 = vadd.f32 %v1103, %v1151
  %1153 = vdwg.mxu0
  %v1154 = vmax.f32 %v1115, 0.0
  %v1155 = vmax.f32 %v1117, 0.0
  %v1156 = vmax.f32 %v1120, 0.0
  %v1157 = vmax.f32 %v1122, 0.0
  %v1158 = vmax.f32 %v1125, 0.0
  %v1159 = vmax.f32 %v1127, 0.0
  %v1160 = vmax.f32 %v1130, 0.0
  %v1161 = vmax.f32 %v1132, 0.0
  %v1162 = vmax.f32 %v1135, 0.0
  %v1163 = vmax.f32 %v1137, 0.0
  %v1164 = vmax.f32 %v1140, 0.0
  %v1165 = vmax.f32 %v1142, 0.0
  %v1166 = vmax.f32 %v1145, 0.0
  %v1167 = vmax.f32 %v1147, 0.0
  %v1168 = vmax.f32 %v1150, 0.0
  %v1169 = vmax.f32 %v1152, 0.0
  %v1170 = vpack.c.bf16 %v1154, %v1154
  %v1171 = vpack.c.bf16 %v1155, %v1155
  %v1172 = vpack.c.bf16 %v1156, %v1156
  %v1173 = vpack.c.bf16 %v1157, %v1157
  %v1174 = vpack.c.bf16 %v1158, %v1158
  %v1175 = vpack.c.bf16 %v1159, %v1159
  %v1176 = vpack.c.bf16 %v1160, %v1160
  %v1177 = vpack.c.bf16 %v1161, %v1161
  %v1178 = vpack.c.bf16 %v1162, %v1162
  %v1179 = vpack.c.bf16 %v1163, %v1163
  %v1180 = vpack.c.bf16 %v1164, %v1164
  %v1181 = vpack.c.bf16 %v1165, %v1165
  %v1182 = vpack.c.bf16 %v1166, %v1166
  %v1183 = vpack.c.bf16 %v1167, %v1167
  %v1184 = vpack.c.bf16 %v1168, %v1168
  %v1185 = vpack.c.bf16 %v1169, %v1169
  %1186 = vst [vmem:[%s2] sm:$0xf] %v1170
  %1187 = vst [vmem:[%s2 + $0x4] sm:$0xf] %v1171
  %1188 = vst [vmem:[%s2 + $0x8] sm:$0xf] %v1172
  %1189 = vst [vmem:[%s2 + $0xc] sm:$0xf] %v1173
  %1190 = vst [vmem:[%s2 + $0x10] sm:$0xf] %v1174
  %1191 = vst [vmem:[%s2 + $0x14] sm:$0xf] %v1175
  %1192 = vst [vmem:[%s2 + $0x18] sm:$0xf] %v1176
  %1193 = vst [vmem:[%s2 + $0x1c] sm:$0xf] %v1177
  %1194 = vst [vmem:[%s2 + $0x20] sm:$0xf] %v1178
  %1195 = vst [vmem:[%s2 + $0x24] sm:$0xf] %v1179
  %1196 = vst [vmem:[%s2 + $0x28] sm:$0xf] %v1180
  %1197 = vst [vmem:[%s2 + $0x2c] sm:$0xf] %v1181
  %1198 = vst [vmem:[%s2 + $0x30] sm:$0xf] %v1182
  %1199 = vst [vmem:[%s2 + $0x34] sm:$0xf] %v1183
  %1200 = vst [vmem:[%s2 + $0x38] sm:$0xf] %v1184
  %1201 = vst [vmem:[%s2 + $0x3c] sm:$0xf] %v1185
  // Predicated region
  $region10: #{unet3d_forward.25} parent=0 // pred_check
    _
  $region11: #{unet3d_forward.25} parent=0 // pred_check_branch
    %1203 = sbr.rel (0) target = $region13
  $region12: #{unet3d_forward.25} parent=0 // pred_region
    _
  $region13: #{unet3d_forward.25} parent=0 // pred_fallthru
    _
  // Predicated region
  $region14: #{unet3d_forward.25} parent=0 // pred_check
    _
  $region15: #{unet3d_forward.25} parent=0 // pred_check_branch
    %1205 = sbr.rel (0) target = $region17
  $region16: #{unet3d_forward.25} parent=0 // pred_region
    _
  $region17: #{unet3d_forward.25} parent=0 // pred_fallthru
    _

// kernel: unet3d_forward.34
$region0: #{unet3d_forward.34}
  #allocation0 [shape = 'u32[]', space=smem, size = 0x4, offset = 0x4, fixed_abs, tag = 'smem constant byte address 0x4 - core index']
  #allocation1 [shape = 'u32[72,128]{1,0:T(1,128)}', space=vmem, size = 0x9000, scoped, tag = 'internal scratch']
  %s0 = inlined_call_operand.vmem [shape: bf16[640,512], index: 0, kind: input, shape index: {}]
  %s1 = inlined_call_operand.vmem [shape: bf16[512,128], index: 1, kind: input, shape index: {}]
  %s2 = inlined_call_operand.vmem [shape: bf16[640,128], index: 2, kind: output, shape index: {}]
  %s3 = sld [smem:[#allocation0]]
  $region18: #{unet3d_forward.34} parent=0
    _
  %s5 = ssub.s32 1, %s3
  %s6 = scalar_select 0, %s5, %s3
  // Predicated region
  $region2: #{unet3d_forward.34} parent=0 // pred_check
    _
  $region3: #{unet3d_forward.34} parent=0 // pred_check_branch
    %8 = sbr.rel (0) target = $region5
  $region4: #{unet3d_forward.34} parent=0 // pred_region
    _
  $region5: #{unet3d_forward.34} parent=0 // pred_fallthru
    _
  // Predicated region
  $region6: #{unet3d_forward.34} parent=0 // pred_check
    _
  $region7: #{unet3d_forward.34} parent=0 // pred_check_branch
    %10 = sbr.rel (0) target = $region9
  $region8: #{unet3d_forward.34} parent=0 // pred_region
    _
  $region9: #{unet3d_forward.34} parent=0 // pred_fallthru
    _
  %v11 = vld [vmem:[%s0] sm:$0xff]
  %v12 = vld [vmem:[%s0 + $0x8] sm:$0xff]
  %v13 = vld [vmem:[%s0 + $0x10] sm:$0xff]
  %v14 = vld [vmem:[%s0 + $0x18] sm:$0xff]
  %v15 = vld [vmem:[%s0 + $0x20] sm:$0xff]
  %v16 = vld [vmem:[%s0 + $0x28] sm:$0xff]
  %v17 = vld [vmem:[%s0 + $0x30] sm:$0xff]
  %v18 = vld [vmem:[%s0 + $0x38] sm:$0xff]
  %v19 = vld [vmem:[%s0 + $0x40] sm:$0xff]
  %v20 = vld [vmem:[%s0 + $0x48] sm:$0xff]
  %v21 = vld [vmem:[%s0 + $0x50] sm:$0xff]
  %v22 = vld [vmem:[%s0 + $0x58] sm:$0xff]
  %v23 = vld [vmem:[%s0 + $0x60] sm:$0xff]
  %v24 = vld [vmem:[%s0 + $0x68] sm:$0xff]
  %v25 = vld [vmem:[%s0 + $0x70] sm:$0xff]
  %v26 = vld [vmem:[%s0 + $0x78] sm:$0xff]
  %v27 = vld [vmem:[%s0 + $0x80] sm:$0xff]
  %v28 = vld [vmem:[%s0 + $0x88] sm:$0xff]
  %v29 = vld [vmem:[%s0 + $0x90] sm:$0xff]
  %v30 = vld [vmem:[%s0 + $0x98] sm:$0xff]
  %v31 = vld [vmem:[%s0 + $0xa0] sm:$0xff]
  %v32 = vld [vmem:[%s0 + $0xa8] sm:$0xff]
  %v33 = vld [vmem:[%s0 + $0xb0] sm:$0xff]
  %v34 = vld [vmem:[%s0 + $0xb8] sm:$0xff]
  %v35 = vld [vmem:[%s0 + $0xc0] sm:$0xff]
  %v36 = vld [vmem:[%s0 + $0xc8] sm:$0xff]
  %v37 = vld [vmem:[%s0 + $0xd0] sm:$0xff]
  %v38 = vld [vmem:[%s0 + $0xd8] sm:$0xff]
  %v39 = vld [vmem:[%s0 + $0xe0] sm:$0xff]
  %v40 = vld [vmem:[%s0 + $0xe8] sm:$0xff]
  %v41 = vld [vmem:[%s0 + $0xf0] sm:$0xff]
  %v42 = vld [vmem:[%s0 + $0xf8] sm:$0xff]
  %v43 = vld [vmem:[%s0 + $0x100] sm:$0xff]
  %v44 = vld [vmem:[%s0 + $0x108] sm:$0xff]
  %v45 = vld [vmem:[%s0 + $0x110] sm:$0xff]
  %v46 = vld [vmem:[%s0 + $0x118] sm:$0xff]
  %v47 = vld [vmem:[%s0 + $0x120] sm:$0xff]
  %v48 = vld [vmem:[%s0 + $0x128] sm:$0xff]
  %v49 = vld [vmem:[%s0 + $0x130] sm:$0xff]
  %v50 = vld [vmem:[%s0 + $0x138] sm:$0xff]
  %v51 = vld [vmem:[%s0 + $0x140] sm:$0xff]
  %v52 = vld [vmem:[%s0 + $0x148] sm:$0xff]
  %v53 = vld [vmem:[%s0 + $0x150] sm:$0xff]
  %v54 = vld [vmem:[%s0 + $0x158] sm:$0xff]
  %v55 = vld [vmem:[%s0 + $0x160] sm:$0xff]
  %v56 = vld [vmem:[%s0 + $0x168] sm:$0xff]
  %v57 = vld [vmem:[%s0 + $0x170] sm:$0xff]
  %v58 = vld [vmem:[%s0 + $0x178] sm:$0xff]
  %v59 = vld [vmem:[%s0 + $0x180] sm:$0xff]
  %v60 = vld [vmem:[%s0 + $0x188] sm:$0xff]
  %v61 = vld [vmem:[%s0 + $0x190] sm:$0xff]
  %v62 = vld [vmem:[%s0 + $0x198] sm:$0xff]
  %v63 = vld [vmem:[%s0 + $0x1a0] sm:$0xff]
  %v64 = vld [vmem:[%s0 + $0x1a8] sm:$0xff]
  %v65 = vld [vmem:[%s0 + $0x1b0] sm:$0xff]
  %v66 = vld [vmem:[%s0 + $0x1b8] sm:$0xff]
  %v67 = vld [vmem:[%s0 + $0x1c0] sm:$0xff]
  %v68 = vld [vmem:[%s0 + $0x1c8] sm:$0xff]
  %v69 = vld [vmem:[%s0 + $0x1d0] sm:$0xff]
  %v70 = vld [vmem:[%s0 + $0x1d8] sm:$0xff]
  %v71 = vld [vmem:[%s0 + $0x1e0] sm:$0xff]
  %v72 = vld [vmem:[%s0 + $0x1e8] sm:$0xff]
  %v73 = vld [vmem:[%s0 + $0x1f0] sm:$0xff]
  %v74 = vld [vmem:[%s0 + $0x1f8] sm:$0xff]
  %v75 = vld [vmem:[%s0 + $0x200] sm:$0xff]
  %v76 = vld [vmem:[%s0 + $0x208] sm:$0xff]
  %v77 = vld [vmem:[%s0 + $0x210] sm:$0xff]
  %v78 = vld [vmem:[%s0 + $0x218] sm:$0xff]
  %v79 = vld [vmem:[%s0 + $0x220] sm:$0xff]
  %v80 = vld [vmem:[%s0 + $0x228] sm:$0xff]
  %v81 = vld [vmem:[%s0 + $0x230] sm:$0xff]
  %v82 = vld [vmem:[%s0 + $0x238] sm:$0xff]
  %v83 = vld [vmem:[%s0 + $0x240] sm:$0xff]
  %v84 = vld [vmem:[%s0 + $0x248] sm:$0xff]
  %v85 = vld [vmem:[%s0 + $0x250] sm:$0xff]
  %v86 = vld [vmem:[%s0 + $0x258] sm:$0xff]
  %v87 = vld [vmem:[%s0 + $0x260] sm:$0xff]
  %v88 = vld [vmem:[%s0 + $0x268] sm:$0xff]
  %v89 = vld [vmem:[%s0 + $0x270] sm:$0xff]
  %v90 = vld [vmem:[%s0 + $0x278] sm:$0xff]
  %v91 = vld [vmem:[%s0 + $0x280] sm:$0xff]
  %v92 = vld [vmem:[%s0 + $0x288] sm:$0xff]
  %v93 = vld [vmem:[%s0 + $0x290] sm:$0xff]
  %v94 = vld [vmem:[%s0 + $0x298] sm:$0xff]
  %v95 = vld [vmem:[%s0 + $0x2a0] sm:$0xff]
  %v96 = vld [vmem:[%s0 + $0x2a8] sm:$0xff]
  %v97 = vld [vmem:[%s0 + $0x2b0] sm:$0xff]
  %v98 = vld [vmem:[%s0 + $0x2b8] sm:$0xff]
  %v99 = vld [vmem:[%s0 + $0x2c0] sm:$0xff]
  %v100 = vld [vmem:[%s0 + $0x2c8] sm:$0xff]
  %v101 = vld [vmem:[%s0 + $0x2d0] sm:$0xff]
  %v102 = vld [vmem:[%s0 + $0x2d8] sm:$0xff]
  %v103 = vld [vmem:[%s0 + $0x2e0] sm:$0xff]
  %v104 = vld [vmem:[%s0 + $0x2e8] sm:$0xff]
  %v105 = vld [vmem:[%s0 + $0x2f0] sm:$0xff]
  %v106 = vld [vmem:[%s0 + $0x2f8] sm:$0xff]
  %v107 = vld [vmem:[%s0 + $0x300] sm:$0xff]
  %v108 = vld [vmem:[%s0 + $0x308] sm:$0xff]
  %v109 = vld [vmem:[%s0 + $0x310] sm:$0xff]
  %v110 = vld [vmem:[%s0 + $0x318] sm:$0xff]
  %v111 = vld [vmem:[%s0 + $0x320] sm:$0xff]
  %v112 = vld [vmem:[%s0 + $0x328] sm:$0xff]
  %v113 = vld [vmem:[%s0 + $0x330] sm:$0xff]
  %v114 = vld [vmem:[%s0 + $0x338] sm:$0xff]
  %v115 = vld [vmem:[%s0 + $0x340] sm:$0xff]
  %v116 = vld [vmem:[%s0 + $0x348] sm:$0xff]
  %v117 = vld [vmem:[%s0 + $0x350] sm:$0xff]
  %v118 = vld [vmem:[%s0 + $0x358] sm:$0xff]
  %v119 = vld [vmem:[%s0 + $0x360] sm:$0xff]
  %v120 = vld [vmem:[%s0 + $0x368] sm:$0xff]
  %v121 = vld [vmem:[%s0 + $0x370] sm:$0xff]
  %v122 = vld [vmem:[%s0 + $0x378] sm:$0xff]
  %v123 = vld [vmem:[%s0 + $0x380] sm:$0xff]
  %v124 = vld [vmem:[%s0 + $0x388] sm:$0xff]
  %v125 = vld [vmem:[%s0 + $0x390] sm:$0xff]
  %v126 = vld [vmem:[%s0 + $0x398] sm:$0xff]
  %v127 = vld [vmem:[%s0 + $0x3a0] sm:$0xff]
  %v128 = vld [vmem:[%s0 + $0x3a8] sm:$0xff]
  %v129 = vld [vmem:[%s0 + $0x3b0] sm:$0xff]
  %v130 = vld [vmem:[%s0 + $0x3b8] sm:$0xff]
  %v131 = vld [vmem:[%s0 + $0x3c0] sm:$0xff]
  %v132 = vld [vmem:[%s0 + $0x3c8] sm:$0xff]
  %v133 = vld [vmem:[%s0 + $0x3d0] sm:$0xff]
  %v134 = vld [vmem:[%s0 + $0x3d8] sm:$0xff]
  %v135 = vld [vmem:[%s0 + $0x3e0] sm:$0xff]
  %v136 = vld [vmem:[%s0 + $0x3e8] sm:$0xff]
  %v137 = vld [vmem:[%s0 + $0x3f0] sm:$0xff]
  %v138 = vld [vmem:[%s0 + $0x3f8] sm:$0xff]
  %v139 = vld [vmem:[%s0 + $0x400] sm:$0xff]
  %v140 = vld [vmem:[%s0 + $0x408] sm:$0xff]
  %v141 = vld [vmem:[%s0 + $0x410] sm:$0xff]
  %v142 = vld [vmem:[%s0 + $0x418] sm:$0xff]
  %v143 = vld [vmem:[%s0 + $0x420] sm:$0xff]
  %v144 = vld [vmem:[%s0 + $0x428] sm:$0xff]
  %v145 = vld [vmem:[%s0 + $0x430] sm:$0xff]
  %v146 = vld [vmem:[%s0 + $0x438] sm:$0xff]
  %v147 = vld [vmem:[%s0 + $0x440] sm:$0xff]
  %v148 = vld [vmem:[%s0 + $0x448] sm:$0xff]
  %v149 = vld [vmem:[%s0 + $0x450] sm:$0xff]
  %v150 = vld [vmem:[%s0 + $0x458] sm:$0xff]
  %v151 = vld [vmem:[%s0 + $0x460] sm:$0xff]
  %v152 = vld [vmem:[%s0 + $0x468] sm:$0xff]
  %v153 = vld [vmem:[%s0 + $0x470] sm:$0xff]
  %v154 = vld [vmem:[%s0 + $0x478] sm:$0xff]
  %v155 = vld [vmem:[%s0 + $0x480] sm:$0xff]
  %v156 = vld [vmem:[%s0 + $0x488] sm:$0xff]
  %v157 = vld [vmem:[%s0 + $0x490] sm:$0xff]
  %v158 = vld [vmem:[%s0 + $0x498] sm:$0xff]
  %v159 = vld [vmem:[%s0 + $0x4a0] sm:$0xff]
  %v160 = vld [vmem:[%s0 + $0x4a8] sm:$0xff]
  %v161 = vld [vmem:[%s0 + $0x4b0] sm:$0xff]
  %v162 = vld [vmem:[%s0 + $0x4b8] sm:$0xff]
  %v163 = vld [vmem:[%s0 + $0x4c0] sm:$0xff]
  %v164 = vld [vmem:[%s0 + $0x4c8] sm:$0xff]
  %v165 = vld [vmem:[%s0 + $0x4d0] sm:$0xff]
  %v166 = vld [vmem:[%s0 + $0x4d8] sm:$0xff]
  %v167 = vld [vmem:[%s0 + $0x4e0] sm:$0xff]
  %v168 = vld [vmem:[%s0 + $0x4e8] sm:$0xff]
  %v169 = vld [vmem:[%s0 + $0x4f0] sm:$0xff]
  %v170 = vld [vmem:[%s0 + $0x4f8] sm:$0xff]
  %v171 = vld [vmem:[%s1] sm:$0xf]
  %v172 = vld [vmem:[%s1 + $0x4] sm:$0xf]
  %v173 = vld [vmem:[%s1 + $0x8] sm:$0xf]
  %v174 = vld [vmem:[%s1 + $0xc] sm:$0xf]
  %v175 = vld [vmem:[%s1 + $0x10] sm:$0xf]
  %v176 = vld [vmem:[%s1 + $0x14] sm:$0xf]
  %v177 = vld [vmem:[%s1 + $0x18] sm:$0xf]
  %v178 = vld [vmem:[%s1 + $0x1c] sm:$0xf]
  %v179 = vld [vmem:[%s1 + $0x20] sm:$0xf]
  %v180 = vld [vmem:[%s1 + $0x24] sm:$0xf]
  %v181 = vld [vmem:[%s1 + $0x28] sm:$0xf]
  %v182 = vld [vmem:[%s1 + $0x2c] sm:$0xf]
  %v183 = vld [vmem:[%s1 + $0x30] sm:$0xf]
  %v184 = vld [vmem:[%s1 + $0x34] sm:$0xf]
  %v185 = vld [vmem:[%s1 + $0x38] sm:$0xf]
  %v186 = vld [vmem:[%s1 + $0x3c] sm:$0xf]
  %v187 = vld [vmem:[%s1 + $0x40] sm:$0xf]
  %v188 = vld [vmem:[%s1 + $0x44] sm:$0xf]
  %v189 = vld [vmem:[%s1 + $0x48] sm:$0xf]
  %v190 = vld [vmem:[%s1 + $0x4c] sm:$0xf]
  %v191 = vld [vmem:[%s1 + $0x50] sm:$0xf]
  %v192 = vld [vmem:[%s1 + $0x54] sm:$0xf]
  %v193 = vld [vmem:[%s1 + $0x58] sm:$0xf]
  %v194 = vld [vmem:[%s1 + $0x5c] sm:$0xf]
  %v195 = vld [vmem:[%s1 + $0x60] sm:$0xf]
  %v196 = vld [vmem:[%s1 + $0x64] sm:$0xf]
  %v197 = vld [vmem:[%s1 + $0x68] sm:$0xf]
  %v198 = vld [vmem:[%s1 + $0x6c] sm:$0xf]
  %v199 = vld [vmem:[%s1 + $0x70] sm:$0xf]
  %v200 = vld [vmem:[%s1 + $0x74] sm:$0xf]
  %v201 = vld [vmem:[%s1 + $0x78] sm:$0xf]
  %v202 = vld [vmem:[%s1 + $0x7c] sm:$0xf]
  %v203 = vld [vmem:[%s1 + $0x80] sm:$0xf]
  %v204 = vld [vmem:[%s1 + $0x84] sm:$0xf]
  %v205 = vld [vmem:[%s1 + $0x88] sm:$0xf]
  %v206 = vld [vmem:[%s1 + $0x8c] sm:$0xf]
  %v207 = vld [vmem:[%s1 + $0x90] sm:$0xf]
  %v208 = vld [vmem:[%s1 + $0x94] sm:$0xf]
  %v209 = vld [vmem:[%s1 + $0x98] sm:$0xf]
  %v210 = vld [vmem:[%s1 + $0x9c] sm:$0xf]
  %v211 = vld [vmem:[%s1 + $0xa0] sm:$0xf]
  %v212 = vld [vmem:[%s1 + $0xa4] sm:$0xf]
  %v213 = vld [vmem:[%s1 + $0xa8] sm:$0xf]
  %v214 = vld [vmem:[%s1 + $0xac] sm:$0xf]
  %v215 = vld [vmem:[%s1 + $0xb0] sm:$0xf]
  %v216 = vld [vmem:[%s1 + $0xb4] sm:$0xf]
  %v217 = vld [vmem:[%s1 + $0xb8] sm:$0xf]
  %v218 = vld [vmem:[%s1 + $0xbc] sm:$0xf]
  %v219 = vld [vmem:[%s1 + $0xc0] sm:$0xf]
  %v220 = vld [vmem:[%s1 + $0xc4] sm:$0xf]
  %v221 = vld [vmem:[%s1 + $0xc8] sm:$0xf]
  %v222 = vld [vmem:[%s1 + $0xcc] sm:$0xf]
  %v223 = vld [vmem:[%s1 + $0xd0] sm:$0xf]
  %v224 = vld [vmem:[%s1 + $0xd4] sm:$0xf]
  %v225 = vld [vmem:[%s1 + $0xd8] sm:$0xf]
  %v226 = vld [vmem:[%s1 + $0xdc] sm:$0xf]
  %v227 = vld [vmem:[%s1 + $0xe0] sm:$0xf]
  %v228 = vld [vmem:[%s1 + $0xe4] sm:$0xf]
  %v229 = vld [vmem:[%s1 + $0xe8] sm:$0xf]
  %v230 = vld [vmem:[%s1 + $0xec] sm:$0xf]
  %v231 = vld [vmem:[%s1 + $0xf0] sm:$0xf]
  %v232 = vld [vmem:[%s1 + $0xf4] sm:$0xf]
  %v233 = vld [vmem:[%s1 + $0xf8] sm:$0xf]
  %v234 = vld [vmem:[%s1 + $0xfc] sm:$0xf]
  %v395 = vunpack.c.l.b16 %v11
  %v396 = vunpack.c.h.b16 %v11
  %v397 = vunpack.c.l.b16 %v12
  %v398 = vunpack.c.h.b16 %v12
  %v399 = vunpack.c.l.b16 %v13
  %v400 = vunpack.c.h.b16 %v13
  %v401 = vunpack.c.l.b16 %v14
  %v402 = vunpack.c.h.b16 %v14
  %v403 = vunpack.c.l.b16 %v15
  %v404 = vunpack.c.h.b16 %v15
  %v405 = vunpack.c.l.b16 %v16
  %v406 = vunpack.c.h.b16 %v16
  %v407 = vunpack.c.l.b16 %v17
  %v408 = vunpack.c.h.b16 %v17
  %v409 = vunpack.c.l.b16 %v18
  %v410 = vunpack.c.h.b16 %v18
  %v411 = vunpack.c.l.b16 %v19
  %v412 = vunpack.c.h.b16 %v19
  %v413 = vunpack.c.l.b16 %v20
  %v414 = vunpack.c.h.b16 %v20
  %v415 = vunpack.c.l.b16 %v21
  %v416 = vunpack.c.h.b16 %v21
  %v417 = vunpack.c.l.b16 %v22
  %v418 = vunpack.c.h.b16 %v22
  %v419 = vunpack.c.l.b16 %v23
  %v420 = vunpack.c.h.b16 %v23
  %v421 = vunpack.c.l.b16 %v24
  %v422 = vunpack.c.h.b16 %v24
  %v423 = vunpack.c.l.b16 %v25
  %v424 = vunpack.c.h.b16 %v25
  %v425 = vunpack.c.l.b16 %v26
  %v426 = vunpack.c.h.b16 %v26
  %v427 = vunpack.c.l.b16 %v27
  %v428 = vunpack.c.h.b16 %v27
  %v429 = vunpack.c.l.b16 %v28
  %v430 = vunpack.c.h.b16 %v28
  %v431 = vunpack.c.l.b16 %v29
  %v432 = vunpack.c.h.b16 %v29
  %v433 = vunpack.c.l.b16 %v30
  %v434 = vunpack.c.h.b16 %v30
  %v435 = vunpack.c.l.b16 %v31
  %v436 = vunpack.c.h.b16 %v31
  %v437 = vunpack.c.l.b16 %v32
  %v438 = vunpack.c.h.b16 %v32
  %v439 = vunpack.c.l.b16 %v33
  %v440 = vunpack.c.h.b16 %v33
  %v441 = vunpack.c.l.b16 %v34
  %v442 = vunpack.c.h.b16 %v34
  %v443 = vunpack.c.l.b16 %v35
  %v444 = vunpack.c.h.b16 %v35
  %v445 = vunpack.c.l.b16 %v36
  %v446 = vunpack.c.h.b16 %v36
  %v447 = vunpack.c.l.b16 %v37
  %v448 = vunpack.c.h.b16 %v37
  %v449 = vunpack.c.l.b16 %v38
  %v450 = vunpack.c.h.b16 %v38
  %v451 = vunpack.c.l.b16 %v39
  %v452 = vunpack.c.h.b16 %v39
  %v453 = vunpack.c.l.b16 %v40
  %v454 = vunpack.c.h.b16 %v40
  %v455 = vunpack.c.l.b16 %v41
  %v456 = vunpack.c.h.b16 %v41
  %v457 = vunpack.c.l.b16 %v42
  %v458 = vunpack.c.h.b16 %v42
  %v459 = vunpack.c.l.b16 %v43
  %v460 = vunpack.c.h.b16 %v43
  %v461 = vunpack.c.l.b16 %v44
  %v462 = vunpack.c.h.b16 %v44
  %v463 = vunpack.c.l.b16 %v45
  %v464 = vunpack.c.h.b16 %v45
  %v465 = vunpack.c.l.b16 %v46
  %v466 = vunpack.c.h.b16 %v46
  %v467 = vunpack.c.l.b16 %v47
  %v468 = vunpack.c.h.b16 %v47
  %v469 = vunpack.c.l.b16 %v48
  %v470 = vunpack.c.h.b16 %v48
  %v471 = vunpack.c.l.b16 %v49
  %v472 = vunpack.c.h.b16 %v49
  %v473 = vunpack.c.l.b16 %v50
  %v474 = vunpack.c.h.b16 %v50
  %v475 = vunpack.c.l.b16 %v51
  %v476 = vunpack.c.h.b16 %v51
  %v477 = vunpack.c.l.b16 %v52
  %v478 = vunpack.c.h.b16 %v52
  %v479 = vunpack.c.l.b16 %v53
  %v480 = vunpack.c.h.b16 %v53
  %v481 = vunpack.c.l.b16 %v54
  %v482 = vunpack.c.h.b16 %v54
  %v483 = vunpack.c.l.b16 %v55
  %v484 = vunpack.c.h.b16 %v55
  %v485 = vunpack.c.l.b16 %v56
  %v486 = vunpack.c.h.b16 %v56
  %v487 = vunpack.c.l.b16 %v57
  %v488 = vunpack.c.h.b16 %v57
  %v489 = vunpack.c.l.b16 %v58
  %v490 = vunpack.c.h.b16 %v58
  %v491 = vunpack.c.l.b16 %v59
  %v492 = vunpack.c.h.b16 %v59
  %v493 = vunpack.c.l.b16 %v60
  %v494 = vunpack.c.h.b16 %v60
  %v495 = vunpack.c.l.b16 %v61
  %v496 = vunpack.c.h.b16 %v61
  %v497 = vunpack.c.l.b16 %v62
  %v498 = vunpack.c.h.b16 %v62
  %v499 = vunpack.c.l.b16 %v63
  %v500 = vunpack.c.h.b16 %v63
  %v501 = vunpack.c.l.b16 %v64
  %v502 = vunpack.c.h.b16 %v64
  %v503 = vunpack.c.l.b16 %v65
  %v504 = vunpack.c.h.b16 %v65
  %v505 = vunpack.c.l.b16 %v66
  %v506 = vunpack.c.h.b16 %v66
  %v507 = vunpack.c.l.b16 %v67
  %v508 = vunpack.c.h.b16 %v67
  %v509 = vunpack.c.l.b16 %v68
  %v510 = vunpack.c.h.b16 %v68
  %v511 = vunpack.c.l.b16 %v69
  %v512 = vunpack.c.h.b16 %v69
  %v513 = vunpack.c.l.b16 %v70
  %v514 = vunpack.c.h.b16 %v70
  %v515 = vunpack.c.l.b16 %v71
  %v516 = vunpack.c.h.b16 %v71
  %v517 = vunpack.c.l.b16 %v72
  %v518 = vunpack.c.h.b16 %v72
  %v519 = vunpack.c.l.b16 %v73
  %v520 = vunpack.c.h.b16 %v73
  %v521 = vunpack.c.l.b16 %v74
  %v522 = vunpack.c.h.b16 %v74
  %v523 = vunpack.c.l.b16 %v75
  %v524 = vunpack.c.h.b16 %v75
  %v525 = vunpack.c.l.b16 %v76
  %v526 = vunpack.c.h.b16 %v76
  %v527 = vunpack.c.l.b16 %v77
  %v528 = vunpack.c.h.b16 %v77
  %v529 = vunpack.c.l.b16 %v78
  %v530 = vunpack.c.h.b16 %v78
  %v531 = vunpack.c.l.b16 %v79
  %v532 = vunpack.c.h.b16 %v79
  %v533 = vunpack.c.l.b16 %v80
  %v534 = vunpack.c.h.b16 %v80
  %v535 = vunpack.c.l.b16 %v81
  %v536 = vunpack.c.h.b16 %v81
  %v537 = vunpack.c.l.b16 %v82
  %v538 = vunpack.c.h.b16 %v82
  %v539 = vunpack.c.l.b16 %v83
  %v540 = vunpack.c.h.b16 %v83
  %v541 = vunpack.c.l.b16 %v84
  %v542 = vunpack.c.h.b16 %v84
  %v543 = vunpack.c.l.b16 %v85
  %v544 = vunpack.c.h.b16 %v85
  %v545 = vunpack.c.l.b16 %v86
  %v546 = vunpack.c.h.b16 %v86
  %v547 = vunpack.c.l.b16 %v87
  %v548 = vunpack.c.h.b16 %v87
  %v549 = vunpack.c.l.b16 %v88
  %v550 = vunpack.c.h.b16 %v88
  %v551 = vunpack.c.l.b16 %v89
  %v552 = vunpack.c.h.b16 %v89
  %v553 = vunpack.c.l.b16 %v90
  %v554 = vunpack.c.h.b16 %v90
  %v555 = vunpack.c.l.b16 %v91
  %v556 = vunpack.c.h.b16 %v91
  %v557 = vunpack.c.l.b16 %v92
  %v558 = vunpack.c.h.b16 %v92
  %v559 = vunpack.c.l.b16 %v93
  %v560 = vunpack.c.h.b16 %v93
  %v561 = vunpack.c.l.b16 %v94
  %v562 = vunpack.c.h.b16 %v94
  %v563 = vunpack.c.l.b16 %v95
  %v564 = vunpack.c.h.b16 %v95
  %v565 = vunpack.c.l.b16 %v96
  %v566 = vunpack.c.h.b16 %v96
  %v567 = vunpack.c.l.b16 %v97
  %v568 = vunpack.c.h.b16 %v97
  %v569 = vunpack.c.l.b16 %v98
  %v570 = vunpack.c.h.b16 %v98
  %v571 = vunpack.c.l.b16 %v99
  %v572 = vunpack.c.h.b16 %v99
  %v573 = vunpack.c.l.b16 %v100
  %v574 = vunpack.c.h.b16 %v100
  %v575 = vunpack.c.l.b16 %v101
  %v576 = vunpack.c.h.b16 %v101
  %v577 = vunpack.c.l.b16 %v102
  %v578 = vunpack.c.h.b16 %v102
  %v579 = vunpack.c.l.b16 %v103
  %v580 = vunpack.c.h.b16 %v103
  %v581 = vunpack.c.l.b16 %v104
  %v582 = vunpack.c.h.b16 %v104
  %v583 = vunpack.c.l.b16 %v105
  %v584 = vunpack.c.h.b16 %v105
  %v585 = vunpack.c.l.b16 %v106
  %v586 = vunpack.c.h.b16 %v106
  %v587 = vunpack.c.l.b16 %v107
  %v588 = vunpack.c.h.b16 %v107
  %v589 = vunpack.c.l.b16 %v108
  %v590 = vunpack.c.h.b16 %v108
  %v591 = vunpack.c.l.b16 %v109
  %v592 = vunpack.c.h.b16 %v109
  %v593 = vunpack.c.l.b16 %v110
  %v594 = vunpack.c.h.b16 %v110
  %v595 = vunpack.c.l.b16 %v111
  %v596 = vunpack.c.h.b16 %v111
  %v597 = vunpack.c.l.b16 %v112
  %v598 = vunpack.c.h.b16 %v112
  %v599 = vunpack.c.l.b16 %v113
  %v600 = vunpack.c.h.b16 %v113
  %v601 = vunpack.c.l.b16 %v114
  %v602 = vunpack.c.h.b16 %v114
  %v603 = vunpack.c.l.b16 %v115
  %v604 = vunpack.c.h.b16 %v115
  %v605 = vunpack.c.l.b16 %v116
  %v606 = vunpack.c.h.b16 %v116
  %v607 = vunpack.c.l.b16 %v117
  %v608 = vunpack.c.h.b16 %v117
  %v609 = vunpack.c.l.b16 %v118
  %v610 = vunpack.c.h.b16 %v118
  %v611 = vunpack.c.l.b16 %v119
  %v612 = vunpack.c.h.b16 %v119
  %v613 = vunpack.c.l.b16 %v120
  %v614 = vunpack.c.h.b16 %v120
  %v615 = vunpack.c.l.b16 %v121
  %v616 = vunpack.c.h.b16 %v121
  %v617 = vunpack.c.l.b16 %v122
  %v618 = vunpack.c.h.b16 %v122
  %v619 = vunpack.c.l.b16 %v123
  %v620 = vunpack.c.h.b16 %v123
  %v621 = vunpack.c.l.b16 %v124
  %v622 = vunpack.c.h.b16 %v124
  %v623 = vunpack.c.l.b16 %v125
  %v624 = vunpack.c.h.b16 %v125
  %v625 = vunpack.c.l.b16 %v126
  %v626 = vunpack.c.h.b16 %v126
  %v627 = vunpack.c.l.b16 %v127
  %v628 = vunpack.c.h.b16 %v127
  %v629 = vunpack.c.l.b16 %v128
  %v630 = vunpack.c.h.b16 %v128
  %v631 = vunpack.c.l.b16 %v129
  %v632 = vunpack.c.h.b16 %v129
  %v633 = vunpack.c.l.b16 %v130
  %v634 = vunpack.c.h.b16 %v130
  %v635 = vunpack.c.l.b16 %v131
  %v636 = vunpack.c.h.b16 %v131
  %v637 = vunpack.c.l.b16 %v132
  %v638 = vunpack.c.h.b16 %v132
  %v639 = vunpack.c.l.b16 %v133
  %v640 = vunpack.c.h.b16 %v133
  %v641 = vunpack.c.l.b16 %v134
  %v642 = vunpack.c.h.b16 %v134
  %v643 = vunpack.c.l.b16 %v135
  %v644 = vunpack.c.h.b16 %v135
  %v645 = vunpack.c.l.b16 %v136
  %v646 = vunpack.c.h.b16 %v136
  %v647 = vunpack.c.l.b16 %v137
  %v648 = vunpack.c.h.b16 %v137
  %v649 = vunpack.c.l.b16 %v138
  %v650 = vunpack.c.h.b16 %v138
  %v651 = vunpack.c.l.b16 %v139
  %v652 = vunpack.c.h.b16 %v139
  %v653 = vunpack.c.l.b16 %v140
  %v654 = vunpack.c.h.b16 %v140
  %v655 = vunpack.c.l.b16 %v141
  %v656 = vunpack.c.h.b16 %v141
  %v657 = vunpack.c.l.b16 %v142
  %v658 = vunpack.c.h.b16 %v142
  %v659 = vunpack.c.l.b16 %v143
  %v660 = vunpack.c.h.b16 %v143
  %v661 = vunpack.c.l.b16 %v144
  %v662 = vunpack.c.h.b16 %v144
  %v663 = vunpack.c.l.b16 %v145
  %v664 = vunpack.c.h.b16 %v145
  %v665 = vunpack.c.l.b16 %v146
  %v666 = vunpack.c.h.b16 %v146
  %v667 = vunpack.c.l.b16 %v147
  %v668 = vunpack.c.h.b16 %v147
  %v669 = vunpack.c.l.b16 %v148
  %v670 = vunpack.c.h.b16 %v148
  %v671 = vunpack.c.l.b16 %v149
  %v672 = vunpack.c.h.b16 %v149
  %v673 = vunpack.c.l.b16 %v150
  %v674 = vunpack.c.h.b16 %v150
  %v675 = vunpack.c.l.b16 %v151
  %v676 = vunpack.c.h.b16 %v151
  %v677 = vunpack.c.l.b16 %v152
  %v678 = vunpack.c.h.b16 %v152
  %v679 = vunpack.c.l.b16 %v153
  %v680 = vunpack.c.h.b16 %v153
  %v681 = vunpack.c.l.b16 %v154
  %v682 = vunpack.c.h.b16 %v154
  %v683 = vunpack.c.l.b16 %v155
  %v684 = vunpack.c.h.b16 %v155
  %v685 = vunpack.c.l.b16 %v156
  %v686 = vunpack.c.h.b16 %v156
  %v687 = vunpack.c.l.b16 %v157
  %v688 = vunpack.c.h.b16 %v157
  %v689 = vunpack.c.l.b16 %v158
  %v690 = vunpack.c.h.b16 %v158
  %v691 = vunpack.c.l.b16 %v159
  %v692 = vunpack.c.h.b16 %v159
  %v693 = vunpack.c.l.b16 %v160
  %v694 = vunpack.c.h.b16 %v160
  %v695 = vunpack.c.l.b16 %v161
  %v696 = vunpack.c.h.b16 %v161
  %v697 = vunpack.c.l.b16 %v162
  %v698 = vunpack.c.h.b16 %v162
  %v699 = vunpack.c.l.b16 %v163
  %v700 = vunpack.c.h.b16 %v163
  %v701 = vunpack.c.l.b16 %v164
  %v702 = vunpack.c.h.b16 %v164
  %v703 = vunpack.c.l.b16 %v165
  %v704 = vunpack.c.h.b16 %v165
  %v705 = vunpack.c.l.b16 %v166
  %v706 = vunpack.c.h.b16 %v166
  %v707 = vunpack.c.l.b16 %v167
  %v708 = vunpack.c.h.b16 %v167
  %v709 = vunpack.c.l.b16 %v168
  %v710 = vunpack.c.h.b16 %v168
  %v711 = vunpack.c.l.b16 %v169
  %v712 = vunpack.c.h.b16 %v169
  %v713 = vunpack.c.l.b16 %v170
  %v714 = vunpack.c.h.b16 %v170
  %v715 = vpack.c.b16 %v399, %v395
  %v716 = vpack.c.b16 %v400, %v396
  %v717 = vpack.c.b16 %v401, %v397
  %v718 = vpack.c.b16 %v402, %v398
  %v719 = vpack.c.b16 %v407, %v403
  %v720 = vpack.c.b16 %v408, %v404
  %v721 = vpack.c.b16 %v409, %v405
  %v722 = vpack.c.b16 %v410, %v406
  %v723 = vpack.c.b16 %v415, %v411
  %v724 = vpack.c.b16 %v416, %v412
  %v725 = vpack.c.b16 %v417, %v413
  %v726 = vpack.c.b16 %v418, %v414
  %v727 = vpack.c.b16 %v423, %v419
  %v728 = vpack.c.b16 %v424, %v420
  %v729 = vpack.c.b16 %v425, %v421
  %v730 = vpack.c.b16 %v426, %v422
  %v731 = vpack.c.b16 %v431, %v427
  %v732 = vpack.c.b16 %v432, %v428
  %v733 = vpack.c.b16 %v433, %v429
  %v734 = vpack.c.b16 %v434, %v430
  %v735 = vpack.c.b16 %v439, %v435
  %v736 = vpack.c.b16 %v440, %v436
  %v737 = vpack.c.b16 %v441, %v437
  %v738 = vpack.c.b16 %v442, %v438
  %v739 = vpack.c.b16 %v447, %v443
  %v740 = vpack.c.b16 %v448, %v444
  %v741 = vpack.c.b16 %v449, %v445
  %v742 = vpack.c.b16 %v450, %v446
  %v743 = vpack.c.b16 %v455, %v451
  %v744 = vpack.c.b16 %v456, %v452
  %v745 = vpack.c.b16 %v457, %v453
  %v746 = vpack.c.b16 %v458, %v454
  %v747 = vpack.c.b16 %v463, %v459
  %v748 = vpack.c.b16 %v464, %v460
  %v749 = vpack.c.b16 %v465, %v461
  %v750 = vpack.c.b16 %v466, %v462
  %v751 = vpack.c.b16 %v471, %v467
  %v752 = vpack.c.b16 %v472, %v468
  %v753 = vpack.c.b16 %v473, %v469
  %v754 = vpack.c.b16 %v474, %v470
  %v755 = vpack.c.b16 %v479, %v475
  %v756 = vpack.c.b16 %v480, %v476
  %v757 = vpack.c.b16 %v481, %v477
  %v758 = vpack.c.b16 %v482, %v478
  %v759 = vpack.c.b16 %v487, %v483
  %v760 = vpack.c.b16 %v488, %v484
  %v761 = vpack.c.b16 %v489, %v485
  %v762 = vpack.c.b16 %v490, %v486
  %v763 = vpack.c.b16 %v495, %v491
  %v764 = vpack.c.b16 %v496, %v492
  %v765 = vpack.c.b16 %v497, %v493
  %v766 = vpack.c.b16 %v498, %v494
  %v767 = vpack.c.b16 %v503, %v499
  %v768 = vpack.c.b16 %v504, %v500
  %v769 = vpack.c.b16 %v505, %v501
  %v770 = vpack.c.b16 %v506, %v502
  %v771 = vpack.c.b16 %v511, %v507
  %v772 = vpack.c.b16 %v512, %v508
  %v773 = vpack.c.b16 %v513, %v509
  %v774 = vpack.c.b16 %v514, %v510
  %v775 = vpack.c.b16 %v519, %v515
  %v776 = vpack.c.b16 %v520, %v516
  %v777 = vpack.c.b16 %v521, %v517
  %v778 = vpack.c.b16 %v522, %v518
  %v779 = vpack.c.b16 %v527, %v523
  %v780 = vpack.c.b16 %v528, %v524
  %v781 = vpack.c.b16 %v529, %v525
  %v782 = vpack.c.b16 %v530, %v526
  %v783 = vpack.c.b16 %v535, %v531
  %v784 = vpack.c.b16 %v536, %v532
  %v785 = vpack.c.b16 %v537, %v533
  %v786 = vpack.c.b16 %v538, %v534
  %v787 = vpack.c.b16 %v543, %v539
  %v788 = vpack.c.b16 %v544, %v540
  %v789 = vpack.c.b16 %v545, %v541
  %v790 = vpack.c.b16 %v546, %v542
  %v791 = vpack.c.b16 %v551, %v547
  %v792 = vpack.c.b16 %v552, %v548
  %v793 = vpack.c.b16 %v553, %v549
  %v794 = vpack.c.b16 %v554, %v550
  %v795 = vpack.c.b16 %v559, %v555
  %v796 = vpack.c.b16 %v560, %v556
  %v797 = vpack.c.b16 %v561, %v557
  %v798 = vpack.c.b16 %v562, %v558
  %v799 = vpack.c.b16 %v567, %v563
  %v800 = vpack.c.b16 %v568, %v564
  %v801 = vpack.c.b16 %v569, %v565
  %v802 = vpack.c.b16 %v570, %v566
  %v803 = vpack.c.b16 %v575, %v571
  %v804 = vpack.c.b16 %v576, %v572
  %v805 = vpack.c.b16 %v577, %v573
  %v806 = vpack.c.b16 %v578, %v574
  %v807 = vpack.c.b16 %v583, %v579
  %v808 = vpack.c.b16 %v584, %v580
  %v809 = vpack.c.b16 %v585, %v581
  %v810 = vpack.c.b16 %v586, %v582
  %v811 = vpack.c.b16 %v591, %v587
  %v812 = vpack.c.b16 %v592, %v588
  %v813 = vpack.c.b16 %v593, %v589
  %v814 = vpack.c.b16 %v594, %v590
  %v815 = vpack.c.b16 %v599, %v595
  %v816 = vpack.c.b16 %v600, %v596
  %v817 = vpack.c.b16 %v601, %v597
  %v818 = vpack.c.b16 %v602, %v598
  %v819 = vpack.c.b16 %v607, %v603
  %v820 = vpack.c.b16 %v608, %v604
  %v821 = vpack.c.b16 %v609, %v605
  %v822 = vpack.c.b16 %v610, %v606
  %v823 = vpack.c.b16 %v615, %v611
  %v824 = vpack.c.b16 %v616, %v612
  %v825 = vpack.c.b16 %v617, %v613
  %v826 = vpack.c.b16 %v618, %v614
  %v827 = vpack.c.b16 %v623, %v619
  %v828 = vpack.c.b16 %v624, %v620
  %v829 = vpack.c.b16 %v625, %v621
  %v830 = vpack.c.b16 %v626, %v622
  %v831 = vpack.c.b16 %v631, %v627
  %v832 = vpack.c.b16 %v632, %v628
  %v833 = vpack.c.b16 %v633, %v629
  %v834 = vpack.c.b16 %v634, %v630
  %v835 = vpack.c.b16 %v639, %v635
  %v836 = vpack.c.b16 %v640, %v636
  %v837 = vpack.c.b16 %v641, %v637
  %v838 = vpack.c.b16 %v642, %v638
  %v839 = vpack.c.b16 %v647, %v643
  %v840 = vpack.c.b16 %v648, %v644
  %v841 = vpack.c.b16 %v649, %v645
  %v842 = vpack.c.b16 %v650, %v646
  %v843 = vpack.c.b16 %v655, %v651
  %v844 = vpack.c.b16 %v656, %v652
  %v845 = vpack.c.b16 %v657, %v653
  %v846 = vpack.c.b16 %v658, %v654
  %v847 = vpack.c.b16 %v663, %v659
  %v848 = vpack.c.b16 %v664, %v660
  %v849 = vpack.c.b16 %v665, %v661
  %v850 = vpack.c.b16 %v666, %v662
  %v851 = vpack.c.b16 %v671, %v667
  %v852 = vpack.c.b16 %v672, %v668
  %v853 = vpack.c.b16 %v673, %v669
  %v854 = vpack.c.b16 %v674, %v670
  %v855 = vpack.c.b16 %v679, %v675
  %v856 = vpack.c.b16 %v680, %v676
  %v857 = vpack.c.b16 %v681, %v677
  %v858 = vpack.c.b16 %v682, %v678
  %v859 = vpack.c.b16 %v687, %v683
  %v860 = vpack.c.b16 %v688, %v684
  %v861 = vpack.c.b16 %v689, %v685
  %v862 = vpack.c.b16 %v690, %v686
  %v863 = vpack.c.b16 %v695, %v691
  %v864 = vpack.c.b16 %v696, %v692
  %v865 = vpack.c.b16 %v697, %v693
  %v866 = vpack.c.b16 %v698, %v694
  %v867 = vpack.c.b16 %v703, %v699
  %v868 = vpack.c.b16 %v704, %v700
  %v869 = vpack.c.b16 %v705, %v701
  %v870 = vpack.c.b16 %v706, %v702
  %v871 = vpack.c.b16 %v711, %v707
  %v872 = vpack.c.b16 %v712, %v708
  %v873 = vpack.c.b16 %v713, %v709
  %v874 = vpack.c.b16 %v714, %v710
  %v1099 = vunpack.c.l.b16 %v171
  %v1100 = vunpack.c.l.b16 %v172
  %v1101 = vunpack.c.l.b16 %v173
  %v1102 = vunpack.c.l.b16 %v174
  %v1103 = vunpack.c.l.b16 %v175
  %v1104 = vunpack.c.l.b16 %v176
  %v1105 = vunpack.c.l.b16 %v177
  %v1106 = vunpack.c.l.b16 %v178
  %v1107 = vunpack.c.l.b16 %v179
  %v1108 = vunpack.c.l.b16 %v180
  %v1109 = vunpack.c.l.b16 %v181
  %v1110 = vunpack.c.l.b16 %v182
  %v1111 = vunpack.c.l.b16 %v183
  %v1112 = vunpack.c.l.b16 %v184
  %v1113 = vunpack.c.l.b16 %v185
  %v1114 = vunpack.c.l.b16 %v186
  %v1115 = vunpack.c.l.b16 %v187
  %v1116 = vunpack.c.l.b16 %v188
  %v1117 = vunpack.c.l.b16 %v189
  %v1118 = vunpack.c.l.b16 %v190
  %v1119 = vunpack.c.l.b16 %v191
  %v1120 = vunpack.c.l.b16 %v192
  %v1121 = vunpack.c.l.b16 %v193
  %v1122 = vunpack.c.l.b16 %v194
  %v1123 = vunpack.c.l.b16 %v195
  %v1124 = vunpack.c.l.b16 %v196
  %v1125 = vunpack.c.l.b16 %v197
  %v1126 = vunpack.c.l.b16 %v198
  %v1127 = vunpack.c.l.b16 %v199
  %v1128 = vunpack.c.l.b16 %v200
  %v1129 = vunpack.c.l.b16 %v201
  %v1130 = vunpack.c.l.b16 %v202
  %v1131 = vunpack.c.l.b16 %v203
  %v1132 = vunpack.c.l.b16 %v204
  %v1133 = vunpack.c.l.b16 %v205
  %v1134 = vunpack.c.l.b16 %v206
  %v1135 = vunpack.c.l.b16 %v207
  %v1136 = vunpack.c.l.b16 %v208
  %v1137 = vunpack.c.l.b16 %v209
  %v1138 = vunpack.c.l.b16 %v210
  %v1139 = vunpack.c.l.b16 %v211
  %v1140 = vunpack.c.l.b16 %v212
  %v1141 = vunpack.c.l.b16 %v213
  %v1142 = vunpack.c.l.b16 %v214
  %v1143 = vunpack.c.l.b16 %v215
  %v1144 = vunpack.c.l.b16 %v216
  %v1145 = vunpack.c.l.b16 %v217
  %v1146 = vunpack.c.l.b16 %v218
  %v1147 = vunpack.c.l.b16 %v219
  %v1148 = vunpack.c.l.b16 %v220
  %v1149 = vunpack.c.l.b16 %v221
  %v1150 = vunpack.c.l.b16 %v222
  %v1151 = vunpack.c.l.b16 %v223
  %v1152 = vunpack.c.l.b16 %v224
  %v1153 = vunpack.c.l.b16 %v225
  %v1154 = vunpack.c.l.b16 %v226
  %v1155 = vunpack.c.l.b16 %v227
  %v1156 = vunpack.c.l.b16 %v228
  %v1157 = vunpack.c.l.b16 %v229
  %v1158 = vunpack.c.l.b16 %v230
  %v1159 = vunpack.c.l.b16 %v231
  %v1160 = vunpack.c.l.b16 %v232
  %v1161 = vunpack.c.l.b16 %v233
  %v1162 = vunpack.c.l.b16 %v234
  %v1163 = vpack.c.b16 %v1100, %v1099
  %v1164 = vpack.c.b16 %v1102, %v1101
  %v1165 = vpack.c.b16 %v1104, %v1103
  %v1166 = vpack.c.b16 %v1106, %v1105
  %v1167 = vpack.c.b16 %v1108, %v1107
  %v1168 = vpack.c.b16 %v1110, %v1109
  %v1169 = vpack.c.b16 %v1112, %v1111
  %v1170 = vpack.c.b16 %v1114, %v1113
  %v1171 = vpack.c.b16 %v1116, %v1115
  %v1172 = vpack.c.b16 %v1118, %v1117
  %v1173 = vpack.c.b16 %v1120, %v1119
  %v1174 = vpack.c.b16 %v1122, %v1121
  %v1175 = vpack.c.b16 %v1124, %v1123
  %v1176 = vpack.c.b16 %v1126, %v1125
  %v1177 = vpack.c.b16 %v1128, %v1127
  %v1178 = vpack.c.b16 %v1130, %v1129
  %v1179 = vpack.c.b16 %v1132, %v1131
  %v1180 = vpack.c.b16 %v1134, %v1133
  %v1181 = vpack.c.b16 %v1136, %v1135
  %v1182 = vpack.c.b16 %v1138, %v1137
  %v1183 = vpack.c.b16 %v1140, %v1139
  %v1184 = vpack.c.b16 %v1142, %v1141
  %v1185 = vpack.c.b16 %v1144, %v1143
  %v1186 = vpack.c.b16 %v1146, %v1145
  %v1187 = vpack.c.b16 %v1148, %v1147
  %v1188 = vpack.c.b16 %v1150, %v1149
  %v1189 = vpack.c.b16 %v1152, %v1151
  %v1190 = vpack.c.b16 %v1154, %v1153
  %v1191 = vpack.c.b16 %v1156, %v1155
  %v1192 = vpack.c.b16 %v1158, %v1157
  %v1193 = vpack.c.b16 %v1160, %v1159
  %v1194 = vpack.c.b16 %v1162, %v1161
  %1227 = vmatpush.bf16.msra.mxu0 %v1170
  %1228 = vmatpush.bf16.msra.mxu0 %v1169
  %1229 = vmatpush.bf16.msra.mxu0 %v1168
  %1230 = vmatpush.bf16.msra.mxu0 %v1167
  %1231 = vmatpush.bf16.msra.mxu0 %v1166
  %1232 = vmatpush.bf16.msra.mxu0 %v1165
  %1233 = vmatpush.bf16.msra.mxu0 %v1164
  %1234 = vmatpush.bf16.msra.mxu0 %v1163
  %1235 = vmatmul.bf16.gmra.mxu0 %v715
  %v1236 = vpop.f32.mrf.mxu0
  %v1237 = vadd.f32 0.0, %v1236
  %v1238 = vpop.f32.mrf.mxu0
  %v1239 = vadd.f32 0.0, %v1238
  %1240 = vmatmul.bf16.gmra.mxu0 %v719
  %v1241 = vpop.f32.mrf.mxu0
  %v1242 = vadd.f32 0.0, %v1241
  %v1243 = vpop.f32.mrf.mxu0
  %v1244 = vadd.f32 0.0, %v1243
  %1245 = vmatmul.bf16.gmra.mxu0 %v723
  %v1246 = vpop.f32.mrf.mxu0
  %v1247 = vadd.f32 0.0, %v1246
  %v1248 = vpop.f32.mrf.mxu0
  %v1249 = vadd.f32 0.0, %v1248
  %1250 = vmatmul.bf16.gmra.mxu0 %v727
  %v1251 = vpop.f32.mrf.mxu0
  %v1252 = vadd.f32 0.0, %v1251
  %v1253 = vpop.f32.mrf.mxu0
  %v1254 = vadd.f32 0.0, %v1253
  %1255 = vmatmul.bf16.gmra.mxu0 %v731
  %v1256 = vpop.f32.mrf.mxu0
  %v1257 = vadd.f32 0.0, %v1256
  %v1258 = vpop.f32.mrf.mxu0
  %v1259 = vadd.f32 0.0, %v1258
  %1260 = vmatmul.bf16.gmra.mxu0 %v735
  %v1261 = vpop.f32.mrf.mxu0
  %v1262 = vadd.f32 0.0, %v1261
  %v1263 = vpop.f32.mrf.mxu0
  %v1264 = vadd.f32 0.0, %v1263
  %1265 = vmatmul.bf16.gmra.mxu0 %v739
  %v1266 = vpop.f32.mrf.mxu0
  %v1267 = vadd.f32 0.0, %v1266
  %v1268 = vpop.f32.mrf.mxu0
  %v1269 = vadd.f32 0.0, %v1268
  %1270 = vmatmul.bf16.gmra.mxu0 %v743
  %v1271 = vpop.f32.mrf.mxu0
  %v1272 = vadd.f32 0.0, %v1271
  %v1273 = vpop.f32.mrf.mxu0
  %v1274 = vadd.f32 0.0, %v1273
  %1275 = vmatmul.bf16.gmra.mxu0 %v747
  %v1276 = vpop.f32.mrf.mxu0
  %v1277 = vadd.f32 0.0, %v1276
  %v1278 = vpop.f32.mrf.mxu0
  %v1279 = vadd.f32 0.0, %v1278
  %1280 = vmatmul.bf16.gmra.mxu0 %v751
  %v1281 = vpop.f32.mrf.mxu0
  %v1282 = vadd.f32 0.0, %v1281
  %v1283 = vpop.f32.mrf.mxu0
  %v1284 = vadd.f32 0.0, %v1283
  %1285 = vmatmul.bf16.gmra.mxu0 %v755
  %v1286 = vpop.f32.mrf.mxu0
  %v1287 = vadd.f32 0.0, %v1286
  %v1288 = vpop.f32.mrf.mxu0
  %v1289 = vadd.f32 0.0, %v1288
  %1290 = vmatmul.bf16.gmra.mxu0 %v759
  %v1291 = vpop.f32.mrf.mxu0
  %v1292 = vadd.f32 0.0, %v1291
  %v1293 = vpop.f32.mrf.mxu0
  %v1294 = vadd.f32 0.0, %v1293
  %1295 = vmatmul.bf16.gmra.mxu0 %v763
  %v1296 = vpop.f32.mrf.mxu0
  %v1297 = vadd.f32 0.0, %v1296
  %v1298 = vpop.f32.mrf.mxu0
  %v1299 = vadd.f32 0.0, %v1298
  %1300 = vmatmul.bf16.gmra.mxu0 %v767
  %v1301 = vpop.f32.mrf.mxu0
  %v1302 = vadd.f32 0.0, %v1301
  %v1303 = vpop.f32.mrf.mxu0
  %v1304 = vadd.f32 0.0, %v1303
  %1305 = vmatmul.bf16.gmra.mxu0 %v771
  %v1306 = vpop.f32.mrf.mxu0
  %v1307 = vadd.f32 0.0, %v1306
  %v1308 = vpop.f32.mrf.mxu0
  %v1309 = vadd.f32 0.0, %v1308
  %1310 = vmatmul.bf16.gmra.mxu0 %v775
  %v1311 = vpop.f32.mrf.mxu0
  %v1312 = vadd.f32 0.0, %v1311
  %v1313 = vpop.f32.mrf.mxu0
  %v1314 = vadd.f32 0.0, %v1313
  %1315 = vmatmul.bf16.gmra.mxu0 %v779
  %v1316 = vpop.f32.mrf.mxu0
  %v1317 = vadd.f32 0.0, %v1316
  %v1318 = vpop.f32.mrf.mxu0
  %v1319 = vadd.f32 0.0, %v1318
  %1320 = vmatmul.bf16.gmra.mxu0 %v783
  %v1321 = vpop.f32.mrf.mxu0
  %v1322 = vadd.f32 0.0, %v1321
  %v1323 = vpop.f32.mrf.mxu0
  %v1324 = vadd.f32 0.0, %v1323
  %1325 = vmatmul.bf16.gmra.mxu0 %v787
  %v1326 = vpop.f32.mrf.mxu0
  %v1327 = vadd.f32 0.0, %v1326
  %v1328 = vpop.f32.mrf.mxu0
  %v1329 = vadd.f32 0.0, %v1328
  %1330 = vmatmul.bf16.gmra.mxu0 %v791
  %v1331 = vpop.f32.mrf.mxu0
  %v1332 = vadd.f32 0.0, %v1331
  %v1333 = vpop.f32.mrf.mxu0
  %v1334 = vadd.f32 0.0, %v1333
  %1335 = vmatmul.bf16.gmra.mxu0 %v795
  %v1336 = vpop.f32.mrf.mxu0
  %v1337 = vadd.f32 0.0, %v1336
  %v1338 = vpop.f32.mrf.mxu0
  %v1339 = vadd.f32 0.0, %v1338
  %1340 = vmatmul.bf16.gmra.mxu0 %v799
  %v1341 = vpop.f32.mrf.mxu0
  %v1342 = vadd.f32 0.0, %v1341
  %v1343 = vpop.f32.mrf.mxu0
  %v1344 = vadd.f32 0.0, %v1343
  %1345 = vmatmul.bf16.gmra.mxu0 %v803
  %v1346 = vpop.f32.mrf.mxu0
  %v1347 = vadd.f32 0.0, %v1346
  %v1348 = vpop.f32.mrf.mxu0
  %v1349 = vadd.f32 0.0, %v1348
  %1350 = vmatmul.bf16.gmra.mxu0 %v807
  %v1351 = vpop.f32.mrf.mxu0
  %v1352 = vadd.f32 0.0, %v1351
  %v1353 = vpop.f32.mrf.mxu0
  %v1354 = vadd.f32 0.0, %v1353
  %1355 = vmatmul.bf16.gmra.mxu0 %v811
  %v1356 = vpop.f32.mrf.mxu0
  %v1357 = vadd.f32 0.0, %v1356
  %v1358 = vpop.f32.mrf.mxu0
  %v1359 = vadd.f32 0.0, %v1358
  %1360 = vmatmul.bf16.gmra.mxu0 %v815
  %v1361 = vpop.f32.mrf.mxu0
  %v1362 = vadd.f32 0.0, %v1361
  %v1363 = vpop.f32.mrf.mxu0
  %v1364 = vadd.f32 0.0, %v1363
  %1365 = vmatmul.bf16.gmra.mxu0 %v819
  %v1366 = vpop.f32.mrf.mxu0
  %v1367 = vadd.f32 0.0, %v1366
  %v1368 = vpop.f32.mrf.mxu0
  %v1369 = vadd.f32 0.0, %v1368
  %1370 = vmatmul.bf16.gmra.mxu0 %v823
  %v1371 = vpop.f32.mrf.mxu0
  %v1372 = vadd.f32 0.0, %v1371
  %v1373 = vpop.f32.mrf.mxu0
  %v1374 = vadd.f32 0.0, %v1373
  %1375 = vmatmul.bf16.gmra.mxu0 %v827
  %v1376 = vpop.f32.mrf.mxu0
  %v1377 = vadd.f32 0.0, %v1376
  %v1378 = vpop.f32.mrf.mxu0
  %v1379 = vadd.f32 0.0, %v1378
  %1380 = vmatmul.bf16.gmra.mxu0 %v831
  %v1381 = vpop.f32.mrf.mxu0
  %v1382 = vadd.f32 0.0, %v1381
  %v1383 = vpop.f32.mrf.mxu0
  %v1384 = vadd.f32 0.0, %v1383
  %1385 = vmatmul.bf16.gmra.mxu0 %v835
  %v1386 = vpop.f32.mrf.mxu0
  %v1387 = vadd.f32 0.0, %v1386
  %v1388 = vpop.f32.mrf.mxu0
  %v1389 = vadd.f32 0.0, %v1388
  %1390 = vmatmul.bf16.gmra.mxu0 %v839
  %v1391 = vpop.f32.mrf.mxu0
  %v1392 = vadd.f32 0.0, %v1391
  %v1393 = vpop.f32.mrf.mxu0
  %v1394 = vadd.f32 0.0, %v1393
  %1395 = vmatmul.bf16.gmra.mxu0 %v843
  %v1396 = vpop.f32.mrf.mxu0
  %v1397 = vadd.f32 0.0, %v1396
  %v1398 = vpop.f32.mrf.mxu0
  %v1399 = vadd.f32 0.0, %v1398
  %1400 = vmatmul.bf16.gmra.mxu0 %v847
  %v1401 = vpop.f32.mrf.mxu0
  %v1402 = vadd.f32 0.0, %v1401
  %v1403 = vpop.f32.mrf.mxu0
  %v1404 = vadd.f32 0.0, %v1403
  %1405 = vmatmul.bf16.gmra.mxu0 %v851
  %v1406 = vpop.f32.mrf.mxu0
  %v1407 = vadd.f32 0.0, %v1406
  %v1408 = vpop.f32.mrf.mxu0
  %v1409 = vadd.f32 0.0, %v1408
  %1410 = vmatmul.bf16.gmra.mxu0 %v855
  %v1411 = vpop.f32.mrf.mxu0
  %v1412 = vadd.f32 0.0, %v1411
  %v1413 = vpop.f32.mrf.mxu0
  %v1414 = vadd.f32 0.0, %v1413
  %1415 = vmatmul.bf16.gmra.mxu0 %v859
  %v1416 = vpop.f32.mrf.mxu0
  %v1417 = vadd.f32 0.0, %v1416
  %v1418 = vpop.f32.mrf.mxu0
  %v1419 = vadd.f32 0.0, %v1418
  %1420 = vmatmul.bf16.gmra.mxu0 %v863
  %v1421 = vpop.f32.mrf.mxu0
  %v1422 = vadd.f32 0.0, %v1421
  %v1423 = vpop.f32.mrf.mxu0
  %v1424 = vadd.f32 0.0, %v1423
  %1425 = vmatmul.bf16.gmra.mxu0 %v867
  %v1426 = vpop.f32.mrf.mxu0
  %v1427 = vadd.f32 0.0, %v1426
  %v1428 = vpop.f32.mrf.mxu0
  %v1429 = vadd.f32 0.0, %v1428
  %1430 = vmatmul.bf16.gmra.mxu0 %v871
  %v1431 = vpop.f32.mrf.mxu0
  %v1432 = vadd.f32 0.0, %v1431
  %v1433 = vpop.f32.mrf.mxu0
  %v1434 = vadd.f32 0.0, %v1433
  %1435 = vdwg.mxu0
  %1436 = vmatpush.bf16.msra.mxu0 %v1178
  %1437 = vmatpush.bf16.msra.mxu0 %v1177
  %1438 = vmatpush.bf16.msra.mxu0 %v1176
  %1439 = vmatpush.bf16.msra.mxu0 %v1175
  %1440 = vmatpush.bf16.msra.mxu0 %v1174
  %1441 = vmatpush.bf16.msra.mxu0 %v1173
  %1442 = vmatpush.bf16.msra.mxu0 %v1172
  %1443 = vmatpush.bf16.msra.mxu0 %v1171
  %1444 = vmatmul.bf16.gmra.mxu0 %v716
  %v1445 = vpop.f32.mrf.mxu0
  %v1446 = vadd.f32 %v1237, %v1445
  %v1447 = vpop.f32.mrf.mxu0
  %v1448 = vadd.f32 %v1239, %v1447
  %1449 = vmatmul.bf16.gmra.mxu0 %v720
  %v1450 = vpop.f32.mrf.mxu0
  %v1451 = vadd.f32 %v1242, %v1450
  %v1452 = vpop.f32.mrf.mxu0
  %v1453 = vadd.f32 %v1244, %v1452
  %1454 = vmatmul.bf16.gmra.mxu0 %v724
  %v1455 = vpop.f32.mrf.mxu0
  %v1456 = vadd.f32 %v1247, %v1455
  %v1457 = vpop.f32.mrf.mxu0
  %v1458 = vadd.f32 %v1249, %v1457
  %1459 = vmatmul.bf16.gmra.mxu0 %v728
  %v1460 = vpop.f32.mrf.mxu0
  %v1461 = vadd.f32 %v1252, %v1460
  %v1462 = vpop.f32.mrf.mxu0
  %v1463 = vadd.f32 %v1254, %v1462
  %1464 = vmatmul.bf16.gmra.mxu0 %v732
  %v1465 = vpop.f32.mrf.mxu0
  %v1466 = vadd.f32 %v1257, %v1465
  %v1467 = vpop.f32.mrf.mxu0
  %v1468 = vadd.f32 %v1259, %v1467
  %1469 = vmatmul.bf16.gmra.mxu0 %v736
  %v1470 = vpop.f32.mrf.mxu0
  %v1471 = vadd.f32 %v1262, %v1470
  %v1472 = vpop.f32.mrf.mxu0
  %v1473 = vadd.f32 %v1264, %v1472
  %1474 = vmatmul.bf16.gmra.mxu0 %v740
  %v1475 = vpop.f32.mrf.mxu0
  %v1476 = vadd.f32 %v1267, %v1475
  %v1477 = vpop.f32.mrf.mxu0
  %v1478 = vadd.f32 %v1269, %v1477
  %1479 = vmatmul.bf16.gmra.mxu0 %v744
  %v1480 = vpop.f32.mrf.mxu0
  %v1481 = vadd.f32 %v1272, %v1480
  %v1482 = vpop.f32.mrf.mxu0
  %v1483 = vadd.f32 %v1274, %v1482
  %1484 = vmatmul.bf16.gmra.mxu0 %v748
  %v1485 = vpop.f32.mrf.mxu0
  %v1486 = vadd.f32 %v1277, %v1485
  %v1487 = vpop.f32.mrf.mxu0
  %v1488 = vadd.f32 %v1279, %v1487
  %1489 = vmatmul.bf16.gmra.mxu0 %v752
  %v1490 = vpop.f32.mrf.mxu0
  %v1491 = vadd.f32 %v1282, %v1490
  %v1492 = vpop.f32.mrf.mxu0
  %v1493 = vadd.f32 %v1284, %v1492
  %1494 = vmatmul.bf16.gmra.mxu0 %v756
  %v1495 = vpop.f32.mrf.mxu0
  %v1496 = vadd.f32 %v1287, %v1495
  %v1497 = vpop.f32.mrf.mxu0
  %v1498 = vadd.f32 %v1289, %v1497
  %1499 = vmatmul.bf16.gmra.mxu0 %v760
  %v1500 = vpop.f32.mrf.mxu0
  %v1501 = vadd.f32 %v1292, %v1500
  %v1502 = vpop.f32.mrf.mxu0
  %v1503 = vadd.f32 %v1294, %v1502
  %1504 = vmatmul.bf16.gmra.mxu0 %v764
  %v1505 = vpop.f32.mrf.mxu0
  %v1506 = vadd.f32 %v1297, %v1505
  %v1507 = vpop.f32.mrf.mxu0
  %v1508 = vadd.f32 %v1299, %v1507
  %1509 = vmatmul.bf16.gmra.mxu0 %v768
  %v1510 = vpop.f32.mrf.mxu0
  %v1511 = vadd.f32 %v1302, %v1510
  %v1512 = vpop.f32.mrf.mxu0
  %v1513 = vadd.f32 %v1304, %v1512
  %1514 = vmatmul.bf16.gmra.mxu0 %v772
  %v1515 = vpop.f32.mrf.mxu0
  %v1516 = vadd.f32 %v1307, %v1515
  %v1517 = vpop.f32.mrf.mxu0
  %v1518 = vadd.f32 %v1309, %v1517
  %1519 = vmatmul.bf16.gmra.mxu0 %v776
  %v1520 = vpop.f32.mrf.mxu0
  %v1521 = vadd.f32 %v1312, %v1520
  %v1522 = vpop.f32.mrf.mxu0
  %v1523 = vadd.f32 %v1314, %v1522
  %1524 = vmatmul.bf16.gmra.mxu0 %v780
  %v1525 = vpop.f32.mrf.mxu0
  %v1526 = vadd.f32 %v1317, %v1525
  %v1527 = vpop.f32.mrf.mxu0
  %v1528 = vadd.f32 %v1319, %v1527
  %1529 = vmatmul.bf16.gmra.mxu0 %v784
  %v1530 = vpop.f32.mrf.mxu0
  %v1531 = vadd.f32 %v1322, %v1530
  %v1532 = vpop.f32.mrf.mxu0
  %v1533 = vadd.f32 %v1324, %v1532
  %1534 = vmatmul.bf16.gmra.mxu0 %v788
  %v1535 = vpop.f32.mrf.mxu0
  %v1536 = vadd.f32 %v1327, %v1535
  %v1537 = vpop.f32.mrf.mxu0
  %v1538 = vadd.f32 %v1329, %v1537
  %1539 = vmatmul.bf16.gmra.mxu0 %v792
  %v1540 = vpop.f32.mrf.mxu0
  %v1541 = vadd.f32 %v1332, %v1540
  %v1542 = vpop.f32.mrf.mxu0
  %v1543 = vadd.f32 %v1334, %v1542
  %1544 = vmatmul.bf16.gmra.mxu0 %v796
  %v1545 = vpop.f32.mrf.mxu0
  %v1546 = vadd.f32 %v1337, %v1545
  %v1547 = vpop.f32.mrf.mxu0
  %v1548 = vadd.f32 %v1339, %v1547
  %1549 = vmatmul.bf16.gmra.mxu0 %v800
  %v1550 = vpop.f32.mrf.mxu0
  %v1551 = vadd.f32 %v1342, %v1550
  %v1552 = vpop.f32.mrf.mxu0
  %v1553 = vadd.f32 %v1344, %v1552
  %1554 = vmatmul.bf16.gmra.mxu0 %v804
  %v1555 = vpop.f32.mrf.mxu0
  %v1556 = vadd.f32 %v1347, %v1555
  %v1557 = vpop.f32.mrf.mxu0
  %v1558 = vadd.f32 %v1349, %v1557
  %1559 = vmatmul.bf16.gmra.mxu0 %v808
  %v1560 = vpop.f32.mrf.mxu0
  %v1561 = vadd.f32 %v1352, %v1560
  %v1562 = vpop.f32.mrf.mxu0
  %v1563 = vadd.f32 %v1354, %v1562
  %1564 = vmatmul.bf16.gmra.mxu0 %v812
  %v1565 = vpop.f32.mrf.mxu0
  %v1566 = vadd.f32 %v1357, %v1565
  %v1567 = vpop.f32.mrf.mxu0
  %v1568 = vadd.f32 %v1359, %v1567
  %1569 = vmatmul.bf16.gmra.mxu0 %v816
  %v1570 = vpop.f32.mrf.mxu0
  %v1571 = vadd.f32 %v1362, %v1570
  %v1572 = vpop.f32.mrf.mxu0
  %v1573 = vadd.f32 %v1364, %v1572
  %1574 = vmatmul.bf16.gmra.mxu0 %v820
  %v1575 = vpop.f32.mrf.mxu0
  %v1576 = vadd.f32 %v1367, %v1575
  %v1577 = vpop.f32.mrf.mxu0
  %v1578 = vadd.f32 %v1369, %v1577
  %1579 = vmatmul.bf16.gmra.mxu0 %v824
  %v1580 = vpop.f32.mrf.mxu0
  %v1581 = vadd.f32 %v1372, %v1580
  %v1582 = vpop.f32.mrf.mxu0
  %v1583 = vadd.f32 %v1374, %v1582
  %1584 = vmatmul.bf16.gmra.mxu0 %v828
  %v1585 = vpop.f32.mrf.mxu0
  %v1586 = vadd.f32 %v1377, %v1585
  %v1587 = vpop.f32.mrf.mxu0
  %v1588 = vadd.f32 %v1379, %v1587
  %1589 = vmatmul.bf16.gmra.mxu0 %v832
  %v1590 = vpop.f32.mrf.mxu0
  %v1591 = vadd.f32 %v1382, %v1590
  %v1592 = vpop.f32.mrf.mxu0
  %v1593 = vadd.f32 %v1384, %v1592
  %1594 = vmatmul.bf16.gmra.mxu0 %v836
  %v1595 = vpop.f32.mrf.mxu0
  %v1596 = vadd.f32 %v1387, %v1595
  %v1597 = vpop.f32.mrf.mxu0
  %v1598 = vadd.f32 %v1389, %v1597
  %1599 = vmatmul.bf16.gmra.mxu0 %v840
  %v1600 = vpop.f32.mrf.mxu0
  %v1601 = vadd.f32 %v1392, %v1600
  %v1602 = vpop.f32.mrf.mxu0
  %v1603 = vadd.f32 %v1394, %v1602
  %1604 = vmatmul.bf16.gmra.mxu0 %v844
  %v1605 = vpop.f32.mrf.mxu0
  %v1606 = vadd.f32 %v1397, %v1605
  %v1607 = vpop.f32.mrf.mxu0
  %v1608 = vadd.f32 %v1399, %v1607
  %1609 = vmatmul.bf16.gmra.mxu0 %v848
  %v1610 = vpop.f32.mrf.mxu0
  %v1611 = vadd.f32 %v1402, %v1610
  %v1612 = vpop.f32.mrf.mxu0
  %v1613 = vadd.f32 %v1404, %v1612
  %1614 = vmatmul.bf16.gmra.mxu0 %v852
  %v1615 = vpop.f32.mrf.mxu0
  %v1616 = vadd.f32 %v1407, %v1615
  %v1617 = vpop.f32.mrf.mxu0
  %v1618 = vadd.f32 %v1409, %v1617
  %1619 = vmatmul.bf16.gmra.mxu0 %v856
  %v1620 = vpop.f32.mrf.mxu0
  %v1621 = vadd.f32 %v1412, %v1620
  %v1622 = vpop.f32.mrf.mxu0
  %v1623 = vadd.f32 %v1414, %v1622
  %1624 = vmatmul.bf16.gmra.mxu0 %v860
  %v1625 = vpop.f32.mrf.mxu0
  %v1626 = vadd.f32 %v1417, %v1625
  %v1627 = vpop.f32.mrf.mxu0
  %v1628 = vadd.f32 %v1419, %v1627
  %1629 = vmatmul.bf16.gmra.mxu0 %v864
  %v1630 = vpop.f32.mrf.mxu0
  %v1631 = vadd.f32 %v1422, %v1630
  %v1632 = vpop.f32.mrf.mxu0
  %v1633 = vadd.f32 %v1424, %v1632
  %1634 = vmatmul.bf16.gmra.mxu0 %v868
  %v1635 = vpop.f32.mrf.mxu0
  %v1636 = vadd.f32 %v1427, %v1635
  %v1637 = vpop.f32.mrf.mxu0
  %v1638 = vadd.f32 %v1429, %v1637
  %1639 = vmatmul.bf16.gmra.mxu0 %v872
  %v1640 = vpop.f32.mrf.mxu0
  %v1641 = vadd.f32 %v1432, %v1640
  %v1642 = vpop.f32.mrf.mxu0
  %v1643 = vadd.f32 %v1434, %v1642
  %1644 = vdwg.mxu0
  %1645 = vmatpush.bf16.msra.mxu0 %v1186
  %1646 = vmatpush.bf16.msra.mxu0 %v1185
  %1647 = vmatpush.bf16.msra.mxu0 %v1184
  %1648 = vmatpush.bf16.msra.mxu0 %v1183
  %1649 = vmatpush.bf16.msra.mxu0 %v1182
  %1650 = vmatpush.bf16.msra.mxu0 %v1181
  %1651 = vmatpush.bf16.msra.mxu0 %v1180
  %1652 = vmatpush.bf16.msra.mxu0 %v1179
  %1653 = vmatmul.bf16.gmra.mxu0 %v717
  %v1654 = vpop.f32.mrf.mxu0
  %v1655 = vadd.f32 %v1446, %v1654
  %v1656 = vpop.f32.mrf.mxu0
  %v1657 = vadd.f32 %v1448, %v1656
  %1658 = vmatmul.bf16.gmra.mxu0 %v721
  %v1659 = vpop.f32.mrf.mxu0
  %v1660 = vadd.f32 %v1451, %v1659
  %v1661 = vpop.f32.mrf.mxu0
  %v1662 = vadd.f32 %v1453, %v1661
  %1663 = vmatmul.bf16.gmra.mxu0 %v725
  %v1664 = vpop.f32.mrf.mxu0
  %v1665 = vadd.f32 %v1456, %v1664
  %v1666 = vpop.f32.mrf.mxu0
  %v1667 = vadd.f32 %v1458, %v1666
  %1668 = vmatmul.bf16.gmra.mxu0 %v729
  %v1669 = vpop.f32.mrf.mxu0
  %v1670 = vadd.f32 %v1461, %v1669
  %v1671 = vpop.f32.mrf.mxu0
  %v1672 = vadd.f32 %v1463, %v1671
  %1673 = vmatmul.bf16.gmra.mxu0 %v733
  %v1674 = vpop.f32.mrf.mxu0
  %v1675 = vadd.f32 %v1466, %v1674
  %v1676 = vpop.f32.mrf.mxu0
  %v1677 = vadd.f32 %v1468, %v1676
  %1678 = vmatmul.bf16.gmra.mxu0 %v737
  %v1679 = vpop.f32.mrf.mxu0
  %v1680 = vadd.f32 %v1471, %v1679
  %v1681 = vpop.f32.mrf.mxu0
  %v1682 = vadd.f32 %v1473, %v1681
  %1683 = vmatmul.bf16.gmra.mxu0 %v741
  %v1684 = vpop.f32.mrf.mxu0
  %v1685 = vadd.f32 %v1476, %v1684
  %v1686 = vpop.f32.mrf.mxu0
  %v1687 = vadd.f32 %v1478, %v1686
  %1688 = vmatmul.bf16.gmra.mxu0 %v745
  %v1689 = vpop.f32.mrf.mxu0
  %v1690 = vadd.f32 %v1481, %v1689
  %v1691 = vpop.f32.mrf.mxu0
  %v1692 = vadd.f32 %v1483, %v1691
  %1693 = vmatmul.bf16.gmra.mxu0 %v749
  %v1694 = vpop.f32.mrf.mxu0
  %v1695 = vadd.f32 %v1486, %v1694
  %v1696 = vpop.f32.mrf.mxu0
  %v1697 = vadd.f32 %v1488, %v1696
  %1698 = vmatmul.bf16.gmra.mxu0 %v753
  %v1699 = vpop.f32.mrf.mxu0
  %v1700 = vadd.f32 %v1491, %v1699
  %v1701 = vpop.f32.mrf.mxu0
  %v1702 = vadd.f32 %v1493, %v1701
  %1703 = vmatmul.bf16.gmra.mxu0 %v757
  %v1704 = vpop.f32.mrf.mxu0
  %v1705 = vadd.f32 %v1496, %v1704
  %v1706 = vpop.f32.mrf.mxu0
  %v1707 = vadd.f32 %v1498, %v1706
  %1708 = vmatmul.bf16.gmra.mxu0 %v761
  %v1709 = vpop.f32.mrf.mxu0
  %v1710 = vadd.f32 %v1501, %v1709
  %v1711 = vpop.f32.mrf.mxu0
  %v1712 = vadd.f32 %v1503, %v1711
  %1713 = vmatmul.bf16.gmra.mxu0 %v765
  %v1714 = vpop.f32.mrf.mxu0
  %v1715 = vadd.f32 %v1506, %v1714
  %v1716 = vpop.f32.mrf.mxu0
  %v1717 = vadd.f32 %v1508, %v1716
  %1718 = vmatmul.bf16.gmra.mxu0 %v769
  %v1719 = vpop.f32.mrf.mxu0
  %v1720 = vadd.f32 %v1511, %v1719
  %v1721 = vpop.f32.mrf.mxu0
  %v1722 = vadd.f32 %v1513, %v1721
  %1723 = vmatmul.bf16.gmra.mxu0 %v773
  %v1724 = vpop.f32.mrf.mxu0
  %v1725 = vadd.f32 %v1516, %v1724
  %v1726 = vpop.f32.mrf.mxu0
  %v1727 = vadd.f32 %v1518, %v1726
  %1728 = vmatmul.bf16.gmra.mxu0 %v777
  %v1729 = vpop.f32.mrf.mxu0
  %v1730 = vadd.f32 %v1521, %v1729
  %v1731 = vpop.f32.mrf.mxu0
  %v1732 = vadd.f32 %v1523, %v1731
  %1733 = vmatmul.bf16.gmra.mxu0 %v781
  %v1734 = vpop.f32.mrf.mxu0
  %v1735 = vadd.f32 %v1526, %v1734
  %v1736 = vpop.f32.mrf.mxu0
  %v1737 = vadd.f32 %v1528, %v1736
  %1738 = vmatmul.bf16.gmra.mxu0 %v785
  %v1739 = vpop.f32.mrf.mxu0
  %v1740 = vadd.f32 %v1531, %v1739
  %v1741 = vpop.f32.mrf.mxu0
  %v1742 = vadd.f32 %v1533, %v1741
  %1743 = vmatmul.bf16.gmra.mxu0 %v789
  %v1744 = vpop.f32.mrf.mxu0
  %v1745 = vadd.f32 %v1536, %v1744
  %v1746 = vpop.f32.mrf.mxu0
  %v1747 = vadd.f32 %v1538, %v1746
  %1748 = vmatmul.bf16.gmra.mxu0 %v793
  %v1749 = vpop.f32.mrf.mxu0
  %v1750 = vadd.f32 %v1541, %v1749
  %v1751 = vpop.f32.mrf.mxu0
  %v1752 = vadd.f32 %v1543, %v1751
  %1753 = vmatmul.bf16.gmra.mxu0 %v797
  %v1754 = vpop.f32.mrf.mxu0
  %v1755 = vadd.f32 %v1546, %v1754
  %v1756 = vpop.f32.mrf.mxu0
  %v1757 = vadd.f32 %v1548, %v1756
  %1758 = vmatmul.bf16.gmra.mxu0 %v801
  %v1759 = vpop.f32.mrf.mxu0
  %v1760 = vadd.f32 %v1551, %v1759
  %v1761 = vpop.f32.mrf.mxu0
  %v1762 = vadd.f32 %v1553, %v1761
  %1763 = vmatmul.bf16.gmra.mxu0 %v805
  %v1764 = vpop.f32.mrf.mxu0
  %v1765 = vadd.f32 %v1556, %v1764
  %v1766 = vpop.f32.mrf.mxu0
  %v1767 = vadd.f32 %v1558, %v1766
  %1768 = vmatmul.bf16.gmra.mxu0 %v809
  %v1769 = vpop.f32.mrf.mxu0
  %v1770 = vadd.f32 %v1561, %v1769
  %v1771 = vpop.f32.mrf.mxu0
  %v1772 = vadd.f32 %v1563, %v1771
  %1773 = vmatmul.bf16.gmra.mxu0 %v813
  %v1774 = vpop.f32.mrf.mxu0
  %v1775 = vadd.f32 %v1566, %v1774
  %v1776 = vpop.f32.mrf.mxu0
  %v1777 = vadd.f32 %v1568, %v1776
  %1778 = vmatmul.bf16.gmra.mxu0 %v817
  %v1779 = vpop.f32.mrf.mxu0
  %v1780 = vadd.f32 %v1571, %v1779
  %v1781 = vpop.f32.mrf.mxu0
  %v1782 = vadd.f32 %v1573, %v1781
  %1783 = vmatmul.bf16.gmra.mxu0 %v821
  %v1784 = vpop.f32.mrf.mxu0
  %v1785 = vadd.f32 %v1576, %v1784
  %v1786 = vpop.f32.mrf.mxu0
  %v1787 = vadd.f32 %v1578, %v1786
  %1788 = vmatmul.bf16.gmra.mxu0 %v825
  %v1789 = vpop.f32.mrf.mxu0
  %v1790 = vadd.f32 %v1581, %v1789
  %v1791 = vpop.f32.mrf.mxu0
  %v1792 = vadd.f32 %v1583, %v1791
  %1793 = vmatmul.bf16.gmra.mxu0 %v829
  %v1794 = vpop.f32.mrf.mxu0
  %v1795 = vadd.f32 %v1586, %v1794
  %v1796 = vpop.f32.mrf.mxu0
  %v1797 = vadd.f32 %v1588, %v1796
  %1798 = vmatmul.bf16.gmra.mxu0 %v833
  %v1799 = vpop.f32.mrf.mxu0
  %v1800 = vadd.f32 %v1591, %v1799
  %v1801 = vpop.f32.mrf.mxu0
  %v1802 = vadd.f32 %v1593, %v1801
  %1803 = vmatmul.bf16.gmra.mxu0 %v837
  %v1804 = vpop.f32.mrf.mxu0
  %v1805 = vadd.f32 %v1596, %v1804
  %v1806 = vpop.f32.mrf.mxu0
  %v1807 = vadd.f32 %v1598, %v1806
  %1808 = vmatmul.bf16.gmra.mxu0 %v841
  %v1809 = vpop.f32.mrf.mxu0
  %v1810 = vadd.f32 %v1601, %v1809
  %v1811 = vpop.f32.mrf.mxu0
  %v1812 = vadd.f32 %v1603, %v1811
  %1813 = vmatmul.bf16.gmra.mxu0 %v845
  %v1814 = vpop.f32.mrf.mxu0
  %v1815 = vadd.f32 %v1606, %v1814
  %v1816 = vpop.f32.mrf.mxu0
  %v1817 = vadd.f32 %v1608, %v1816
  %1818 = vmatmul.bf16.gmra.mxu0 %v849
  %v1819 = vpop.f32.mrf.mxu0
  %v1820 = vadd.f32 %v1611, %v1819
  %v1821 = vpop.f32.mrf.mxu0
  %v1822 = vadd.f32 %v1613, %v1821
  %1823 = vmatmul.bf16.gmra.mxu0 %v853
  %v1824 = vpop.f32.mrf.mxu0
  %v1825 = vadd.f32 %v1616, %v1824
  %v1826 = vpop.f32.mrf.mxu0
  %v1827 = vadd.f32 %v1618, %v1826
  %1828 = vmatmul.bf16.gmra.mxu0 %v857
  %v1829 = vpop.f32.mrf.mxu0
  %v1830 = vadd.f32 %v1621, %v1829
  %v1831 = vpop.f32.mrf.mxu0
  %v1832 = vadd.f32 %v1623, %v1831
  %1833 = vmatmul.bf16.gmra.mxu0 %v861
  %v1834 = vpop.f32.mrf.mxu0
  %v1835 = vadd.f32 %v1626, %v1834
  %v1836 = vpop.f32.mrf.mxu0
  %v1837 = vadd.f32 %v1628, %v1836
  %1838 = vmatmul.bf16.gmra.mxu0 %v865
  %v1839 = vpop.f32.mrf.mxu0
  %v1840 = vadd.f32 %v1631, %v1839
  %v1841 = vpop.f32.mrf.mxu0
  %v1842 = vadd.f32 %v1633, %v1841
  %1843 = vmatmul.bf16.gmra.mxu0 %v869
  %v1844 = vpop.f32.mrf.mxu0
  %v1845 = vadd.f32 %v1636, %v1844
  %v1846 = vpop.f32.mrf.mxu0
  %v1847 = vadd.f32 %v1638, %v1846
  %1848 = vmatmul.bf16.gmra.mxu0 %v873
  %v1849 = vpop.f32.mrf.mxu0
  %v1850 = vadd.f32 %v1641, %v1849
  %v1851 = vpop.f32.mrf.mxu0
  %v1852 = vadd.f32 %v1643, %v1851
  %1853 = vdwg.mxu0
  %1854 = vmatpush.bf16.msra.mxu0 %v1194
  %1855 = vmatpush.bf16.msra.mxu0 %v1193
  %1856 = vmatpush.bf16.msra.mxu0 %v1192
  %1857 = vmatpush.bf16.msra.mxu0 %v1191
  %1858 = vmatpush.bf16.msra.mxu0 %v1190
  %1859 = vmatpush.bf16.msra.mxu0 %v1189
  %1860 = vmatpush.bf16.msra.mxu0 %v1188
  %1861 = vmatpush.bf16.msra.mxu0 %v1187
  %1862 = vmatmul.bf16.gmra.mxu0 %v718
  %v1863 = vpop.f32.mrf.mxu0
  %v1864 = vadd.f32 %v1655, %v1863
  %v1865 = vpop.f32.mrf.mxu0
  %v1866 = vadd.f32 %v1657, %v1865
  %1867 = vmatmul.bf16.gmra.mxu0 %v722
  %v1868 = vpop.f32.mrf.mxu0
  %v1869 = vadd.f32 %v1660, %v1868
  %v1870 = vpop.f32.mrf.mxu0
  %v1871 = vadd.f32 %v1662, %v1870
  %1872 = vmatmul.bf16.gmra.mxu0 %v726
  %v1873 = vpop.f32.mrf.mxu0
  %v1874 = vadd.f32 %v1665, %v1873
  %v1875 = vpop.f32.mrf.mxu0
  %v1876 = vadd.f32 %v1667, %v1875
  %1877 = vmatmul.bf16.gmra.mxu0 %v730
  %v1878 = vpop.f32.mrf.mxu0
  %v1879 = vadd.f32 %v1670, %v1878
  %v1880 = vpop.f32.mrf.mxu0
  %v1881 = vadd.f32 %v1672, %v1880
  %1882 = vmatmul.bf16.gmra.mxu0 %v734
  %v1883 = vpop.f32.mrf.mxu0
  %v1884 = vadd.f32 %v1675, %v1883
  %v1885 = vpop.f32.mrf.mxu0
  %v1886 = vadd.f32 %v1677, %v1885
  %1887 = vmatmul.bf16.gmra.mxu0 %v738
  %v1888 = vpop.f32.mrf.mxu0
  %v1889 = vadd.f32 %v1680, %v1888
  %v1890 = vpop.f32.mrf.mxu0
  %v1891 = vadd.f32 %v1682, %v1890
  %1892 = vmatmul.bf16.gmra.mxu0 %v742
  %v1893 = vpop.f32.mrf.mxu0
  %v1894 = vadd.f32 %v1685, %v1893
  %v1895 = vpop.f32.mrf.mxu0
  %v1896 = vadd.f32 %v1687, %v1895
  %1897 = vmatmul.bf16.gmra.mxu0 %v746
  %v1898 = vpop.f32.mrf.mxu0
  %v1899 = vadd.f32 %v1690, %v1898
  %v1900 = vpop.f32.mrf.mxu0
  %v1901 = vadd.f32 %v1692, %v1900
  %1902 = vmatmul.bf16.gmra.mxu0 %v750
  %v1903 = vpop.f32.mrf.mxu0
  %v1904 = vadd.f32 %v1695, %v1903
  %v1905 = vpop.f32.mrf.mxu0
  %v1906 = vadd.f32 %v1697, %v1905
  %1907 = vmatmul.bf16.gmra.mxu0 %v754
  %v1908 = vpop.f32.mrf.mxu0
  %v1909 = vadd.f32 %v1700, %v1908
  %v1910 = vpop.f32.mrf.mxu0
  %v1911 = vadd.f32 %v1702, %v1910
  %1912 = vmatmul.bf16.gmra.mxu0 %v758
  %v1913 = vpop.f32.mrf.mxu0
  %v1914 = vadd.f32 %v1705, %v1913
  %v1915 = vpop.f32.mrf.mxu0
  %v1916 = vadd.f32 %v1707, %v1915
  %1917 = vmatmul.bf16.gmra.mxu0 %v762
  %v1918 = vpop.f32.mrf.mxu0
  %v1919 = vadd.f32 %v1710, %v1918
  %v1920 = vpop.f32.mrf.mxu0
  %v1921 = vadd.f32 %v1712, %v1920
  %1922 = vmatmul.bf16.gmra.mxu0 %v766
  %v1923 = vpop.f32.mrf.mxu0
  %v1924 = vadd.f32 %v1715, %v1923
  %v1925 = vpop.f32.mrf.mxu0
  %v1926 = vadd.f32 %v1717, %v1925
  %1927 = vmatmul.bf16.gmra.mxu0 %v770
  %v1928 = vpop.f32.mrf.mxu0
  %v1929 = vadd.f32 %v1720, %v1928
  %v1930 = vpop.f32.mrf.mxu0
  %v1931 = vadd.f32 %v1722, %v1930
  %1932 = vmatmul.bf16.gmra.mxu0 %v774
  %v1933 = vpop.f32.mrf.mxu0
  %v1934 = vadd.f32 %v1725, %v1933
  %v1935 = vpop.f32.mrf.mxu0
  %v1936 = vadd.f32 %v1727, %v1935
  %1937 = vmatmul.bf16.gmra.mxu0 %v778
  %v1938 = vpop.f32.mrf.mxu0
  %v1939 = vadd.f32 %v1730, %v1938
  %v1940 = vpop.f32.mrf.mxu0
  %v1941 = vadd.f32 %v1732, %v1940
  %1942 = vmatmul.bf16.gmra.mxu0 %v782
  %v1943 = vpop.f32.mrf.mxu0
  %v1944 = vadd.f32 %v1735, %v1943
  %v1945 = vpop.f32.mrf.mxu0
  %v1946 = vadd.f32 %v1737, %v1945
  %1947 = vmatmul.bf16.gmra.mxu0 %v786
  %v1948 = vpop.f32.mrf.mxu0
  %v1949 = vadd.f32 %v1740, %v1948
  %v1950 = vpop.f32.mrf.mxu0
  %v1951 = vadd.f32 %v1742, %v1950
  %1952 = vmatmul.bf16.gmra.mxu0 %v790
  %v1953 = vpop.f32.mrf.mxu0
  %v1954 = vadd.f32 %v1745, %v1953
  %v1955 = vpop.f32.mrf.mxu0
  %v1956 = vadd.f32 %v1747, %v1955
  %1957 = vmatmul.bf16.gmra.mxu0 %v794
  %v1958 = vpop.f32.mrf.mxu0
  %v1959 = vadd.f32 %v1750, %v1958
  %v1960 = vpop.f32.mrf.mxu0
  %v1961 = vadd.f32 %v1752, %v1960
  %1962 = vmatmul.bf16.gmra.mxu0 %v798
  %v1963 = vpop.f32.mrf.mxu0
  %v1964 = vadd.f32 %v1755, %v1963
  %v1965 = vpop.f32.mrf.mxu0
  %v1966 = vadd.f32 %v1757, %v1965
  %1967 = vmatmul.bf16.gmra.mxu0 %v802
  %v1968 = vpop.f32.mrf.mxu0
  %v1969 = vadd.f32 %v1760, %v1968
  %v1970 = vpop.f32.mrf.mxu0
  %v1971 = vadd.f32 %v1762, %v1970
  %1972 = vmatmul.bf16.gmra.mxu0 %v806
  %v1973 = vpop.f32.mrf.mxu0
  %v1974 = vadd.f32 %v1765, %v1973
  %v1975 = vpop.f32.mrf.mxu0
  %v1976 = vadd.f32 %v1767, %v1975
  %1977 = vmatmul.bf16.gmra.mxu0 %v810
  %v1978 = vpop.f32.mrf.mxu0
  %v1979 = vadd.f32 %v1770, %v1978
  %v1980 = vpop.f32.mrf.mxu0
  %v1981 = vadd.f32 %v1772, %v1980
  %1982 = vmatmul.bf16.gmra.mxu0 %v814
  %v1983 = vpop.f32.mrf.mxu0
  %v1984 = vadd.f32 %v1775, %v1983
  %v1985 = vpop.f32.mrf.mxu0
  %v1986 = vadd.f32 %v1777, %v1985
  %1987 = vmatmul.bf16.gmra.mxu0 %v818
  %v1988 = vpop.f32.mrf.mxu0
  %v1989 = vadd.f32 %v1780, %v1988
  %v1990 = vpop.f32.mrf.mxu0
  %v1991 = vadd.f32 %v1782, %v1990
  %1992 = vmatmul.bf16.gmra.mxu0 %v822
  %v1993 = vpop.f32.mrf.mxu0
  %v1994 = vadd.f32 %v1785, %v1993
  %v1995 = vpop.f32.mrf.mxu0
  %v1996 = vadd.f32 %v1787, %v1995
  %1997 = vmatmul.bf16.gmra.mxu0 %v826
  %v1998 = vpop.f32.mrf.mxu0
  %v1999 = vadd.f32 %v1790, %v1998
  %v2000 = vpop.f32.mrf.mxu0
  %v2001 = vadd.f32 %v1792, %v2000
  %2002 = vmatmul.bf16.gmra.mxu0 %v830
  %v2003 = vpop.f32.mrf.mxu0
  %v2004 = vadd.f32 %v1795, %v2003
  %v2005 = vpop.f32.mrf.mxu0
  %v2006 = vadd.f32 %v1797, %v2005
  %2007 = vmatmul.bf16.gmra.mxu0 %v834
  %v2008 = vpop.f32.mrf.mxu0
  %v2009 = vadd.f32 %v1800, %v2008
  %v2010 = vpop.f32.mrf.mxu0
  %v2011 = vadd.f32 %v1802, %v2010
  %2012 = vmatmul.bf16.gmra.mxu0 %v838
  %v2013 = vpop.f32.mrf.mxu0
  %v2014 = vadd.f32 %v1805, %v2013
  %v2015 = vpop.f32.mrf.mxu0
  %v2016 = vadd.f32 %v1807, %v2015
  %2017 = vmatmul.bf16.gmra.mxu0 %v842
  %v2018 = vpop.f32.mrf.mxu0
  %v2019 = vadd.f32 %v1810, %v2018
  %v2020 = vpop.f32.mrf.mxu0
  %v2021 = vadd.f32 %v1812, %v2020
  %2022 = vmatmul.bf16.gmra.mxu0 %v846
  %v2023 = vpop.f32.mrf.mxu0
  %v2024 = vadd.f32 %v1815, %v2023
  %v2025 = vpop.f32.mrf.mxu0
  %v2026 = vadd.f32 %v1817, %v2025
  %2027 = vmatmul.bf16.gmra.mxu0 %v850
  %v2028 = vpop.f32.mrf.mxu0
  %v2029 = vadd.f32 %v1820, %v2028
  %v2030 = vpop.f32.mrf.mxu0
  %v2031 = vadd.f32 %v1822, %v2030
  %2032 = vmatmul.bf16.gmra.mxu0 %v854
  %v2033 = vpop.f32.mrf.mxu0
  %v2034 = vadd.f32 %v1825, %v2033
  %v2035 = vpop.f32.mrf.mxu0
  %v2036 = vadd.f32 %v1827, %v2035
  %2037 = vmatmul.bf16.gmra.mxu0 %v858
  %v2038 = vpop.f32.mrf.mxu0
  %v2039 = vadd.f32 %v1830, %v2038
  %v2040 = vpop.f32.mrf.mxu0
  %v2041 = vadd.f32 %v1832, %v2040
  %2042 = vmatmul.bf16.gmra.mxu0 %v862
  %v2043 = vpop.f32.mrf.mxu0
  %v2044 = vadd.f32 %v1835, %v2043
  %v2045 = vpop.f32.mrf.mxu0
  %v2046 = vadd.f32 %v1837, %v2045
  %2047 = vmatmul.bf16.gmra.mxu0 %v866
  %v2048 = vpop.f32.mrf.mxu0
  %v2049 = vadd.f32 %v1840, %v2048
  %v2050 = vpop.f32.mrf.mxu0
  %v2051 = vadd.f32 %v1842, %v2050
  %2052 = vmatmul.bf16.gmra.mxu0 %v870
  %v2053 = vpop.f32.mrf.mxu0
  %v2054 = vadd.f32 %v1845, %v2053
  %v2055 = vpop.f32.mrf.mxu0
  %v2056 = vadd.f32 %v1847, %v2055
  %2057 = vmatmul.bf16.gmra.mxu0 %v874
  %v2058 = vpop.f32.mrf.mxu0
  %v2059 = vadd.f32 %v1850, %v2058
  %v2060 = vpop.f32.mrf.mxu0
  %v2061 = vadd.f32 %v1852, %v2060
  %2062 = vdwg.mxu0
  %v2063 = vmax.f32 %v1864, 0.0
  %v2064 = vmax.f32 %v1866, 0.0
  %v2065 = vmax.f32 %v1869, 0.0
  %v2066 = vmax.f32 %v1871, 0.0
  %v2067 = vmax.f32 %v1874, 0.0
  %v2068 = vmax.f32 %v1876, 0.0
  %v2069 = vmax.f32 %v1879, 0.0
  %v2070 = vmax.f32 %v1881, 0.0
  %v2071 = vmax.f32 %v1884, 0.0
  %v2072 = vmax.f32 %v1886, 0.0
  %v2073 = vmax.f32 %v1889, 0.0
  %v2074 = vmax.f32 %v1891, 0.0
  %v2075 = vmax.f32 %v1894, 0.0
  %v2076 = vmax.f32 %v1896, 0.0
  %v2077 = vmax.f32 %v1899, 0.0
  %v2078 = vmax.f32 %v1901, 0.0
  %v2079 = vmax.f32 %v1904, 0.0
  %v2080 = vmax.f32 %v1906, 0.0
  %v2081 = vmax.f32 %v1909, 0.0
  %v2082 = vmax.f32 %v1911, 0.0
  %v2083 = vmax.f32 %v1914, 0.0
  %v2084 = vmax.f32 %v1916, 0.0
  %v2085 = vmax.f32 %v1919, 0.0
  %v2086 = vmax.f32 %v1921, 0.0
  %v2087 = vmax.f32 %v1924, 0.0
  %v2088 = vmax.f32 %v1926, 0.0
  %v2089 = vmax.f32 %v1929, 0.0
  %v2090 = vmax.f32 %v1931, 0.0
  %v2091 = vmax.f32 %v1934, 0.0
  %v2092 = vmax.f32 %v1936, 0.0
  %v2093 = vmax.f32 %v1939, 0.0
  %v2094 = vmax.f32 %v1941, 0.0
  %v2095 = vmax.f32 %v1944, 0.0
  %v2096 = vmax.f32 %v1946, 0.0
  %v2097 = vmax.f32 %v1949, 0.0
  %v2098 = vmax.f32 %v1951, 0.0
  %v2099 = vmax.f32 %v1954, 0.0
  %v2100 = vmax.f32 %v1956, 0.0
  %v2101 = vmax.f32 %v1959, 0.0
  %v2102 = vmax.f32 %v1961, 0.0
  %v2103 = vmax.f32 %v1964, 0.0
  %v2104 = vmax.f32 %v1966, 0.0
  %v2105 = vmax.f32 %v1969, 0.0
  %v2106 = vmax.f32 %v1971, 0.0
  %v2107 = vmax.f32 %v1974, 0.0
  %v2108 = vmax.f32 %v1976, 0.0
  %v2109 = vmax.f32 %v1979, 0.0
  %v2110 = vmax.f32 %v1981, 0.0
  %v2111 = vmax.f32 %v1984, 0.0
  %v2112 = vmax.f32 %v1986, 0.0
  %v2113 = vmax.f32 %v1989, 0.0
  %v2114 = vmax.f32 %v1991, 0.0
  %v2115 = vmax.f32 %v1994, 0.0
  %v2116 = vmax.f32 %v1996, 0.0
  %v2117 = vmax.f32 %v1999, 0.0
  %v2118 = vmax.f32 %v2001, 0.0
  %v2119 = vmax.f32 %v2004, 0.0
  %v2120 = vmax.f32 %v2006, 0.0
  %v2121 = vmax.f32 %v2009, 0.0
  %v2122 = vmax.f32 %v2011, 0.0
  %v2123 = vmax.f32 %v2014, 0.0
  %v2124 = vmax.f32 %v2016, 0.0
  %v2125 = vmax.f32 %v2019, 0.0
  %v2126 = vmax.f32 %v2021, 0.0
  %v2127 = vmax.f32 %v2024, 0.0
  %v2128 = vmax.f32 %v2026, 0.0
  %v2129 = vmax.f32 %v2029, 0.0
  %v2130 = vmax.f32 %v2031, 0.0
  %v2131 = vmax.f32 %v2034, 0.0
  %v2132 = vmax.f32 %v2036, 0.0
  %v2133 = vmax.f32 %v2039, 0.0
  %v2134 = vmax.f32 %v2041, 0.0
  %v2135 = vmax.f32 %v2044, 0.0
  %v2136 = vmax.f32 %v2046, 0.0
  %v2137 = vmax.f32 %v2049, 0.0
  %v2138 = vmax.f32 %v2051, 0.0
  %v2139 = vmax.f32 %v2054, 0.0
  %v2140 = vmax.f32 %v2056, 0.0
  %v2141 = vmax.f32 %v2059, 0.0
  %v2142 = vmax.f32 %v2061, 0.0
  %v2143 = vpack.c.bf16 %v2063, %v2063
  %v2144 = vpack.c.bf16 %v2064, %v2064
  %v2145 = vpack.c.bf16 %v2065, %v2065
  %v2146 = vpack.c.bf16 %v2066, %v2066
  %v2147 = vpack.c.bf16 %v2067, %v2067
  %v2148 = vpack.c.bf16 %v2068, %v2068
  %v2149 = vpack.c.bf16 %v2069, %v2069
  %v2150 = vpack.c.bf16 %v2070, %v2070
  %v2151 = vpack.c.bf16 %v2071, %v2071
  %v2152 = vpack.c.bf16 %v2072, %v2072
  %v2153 = vpack.c.bf16 %v2073, %v2073
  %v2154 = vpack.c.bf16 %v2074, %v2074
  %v2155 = vpack.c.bf16 %v2075, %v2075
  %v2156 = vpack.c.bf16 %v2076, %v2076
  %v2157 = vpack.c.bf16 %v2077, %v2077
  %v2158 = vpack.c.bf16 %v2078, %v2078
  %v2159 = vpack.c.bf16 %v2079, %v2079
  %v2160 = vpack.c.bf16 %v2080, %v2080
  %v2161 = vpack.c.bf16 %v2081, %v2081
  %v2162 = vpack.c.bf16 %v2082, %v2082
  %v2163 = vpack.c.bf16 %v2083, %v2083
  %v2164 = vpack.c.bf16 %v2084, %v2084
  %v2165 = vpack.c.bf16 %v2085, %v2085
  %v2166 = vpack.c.bf16 %v2086, %v2086
  %v2167 = vpack.c.bf16 %v2087, %v2087
  %v2168 = vpack.c.bf16 %v2088, %v2088
  %v2169 = vpack.c.bf16 %v2089, %v2089
  %v2170 = vpack.c.bf16 %v2090, %v2090
  %v2171 = vpack.c.bf16 %v2091, %v2091
  %v2172 = vpack.c.bf16 %v2092, %v2092
  %v2173 = vpack.c.bf16 %v2093, %v2093
  %v2174 = vpack.c.bf16 %v2094, %v2094
  %v2175 = vpack.c.bf16 %v2095, %v2095
  %v2176 = vpack.c.bf16 %v2096, %v2096
  %v2177 = vpack.c.bf16 %v2097, %v2097
  %v2178 = vpack.c.bf16 %v2098, %v2098
  %v2179 = vpack.c.bf16 %v2099, %v2099
  %v2180 = vpack.c.bf16 %v2100, %v2100
  %v2181 = vpack.c.bf16 %v2101, %v2101
  %v2182 = vpack.c.bf16 %v2102, %v2102
  %v2183 = vpack.c.bf16 %v2103, %v2103
  %v2184 = vpack.c.bf16 %v2104, %v2104
  %v2185 = vpack.c.bf16 %v2105, %v2105
  %v2186 = vpack.c.bf16 %v2106, %v2106
  %v2187 = vpack.c.bf16 %v2107, %v2107
  %v2188 = vpack.c.bf16 %v2108, %v2108
  %v2189 = vpack.c.bf16 %v2109, %v2109
  %v2190 = vpack.c.bf16 %v2110, %v2110
  %v2191 = vpack.c.bf16 %v2111, %v2111
  %v2192 = vpack.c.bf16 %v2112, %v2112
  %v2193 = vpack.c.bf16 %v2113, %v2113
  %v2194 = vpack.c.bf16 %v2114, %v2114
  %v2195 = vpack.c.bf16 %v2115, %v2115
  %v2196 = vpack.c.bf16 %v2116, %v2116
  %v2197 = vpack.c.bf16 %v2117, %v2117
  %v2198 = vpack.c.bf16 %v2118, %v2118
  %v2199 = vpack.c.bf16 %v2119, %v2119
  %v2200 = vpack.c.bf16 %v2120, %v2120
  %v2201 = vpack.c.bf16 %v2121, %v2121
  %v2202 = vpack.c.bf16 %v2122, %v2122
  %v2203 = vpack.c.bf16 %v2123, %v2123
  %v2204 = vpack.c.bf16 %v2124, %v2124
  %v2205 = vpack.c.bf16 %v2125, %v2125
  %v2206 = vpack.c.bf16 %v2126, %v2126
  %v2207 = vpack.c.bf16 %v2127, %v2127
  %v2208 = vpack.c.bf16 %v2128, %v2128
  %v2209 = vpack.c.bf16 %v2129, %v2129
  %v2210 = vpack.c.bf16 %v2130, %v2130
  %v2211 = vpack.c.bf16 %v2131, %v2131
  %v2212 = vpack.c.bf16 %v2132, %v2132
  %v2213 = vpack.c.bf16 %v2133, %v2133
  %v2214 = vpack.c.bf16 %v2134, %v2134
  %v2215 = vpack.c.bf16 %v2135, %v2135
  %v2216 = vpack.c.bf16 %v2136, %v2136
  %v2217 = vpack.c.bf16 %v2137, %v2137
  %v2218 = vpack.c.bf16 %v2138, %v2138
  %v2219 = vpack.c.bf16 %v2139, %v2139
  %v2220 = vpack.c.bf16 %v2140, %v2140
  %v2221 = vpack.c.bf16 %v2141, %v2141
  %v2222 = vpack.c.bf16 %v2142, %v2142
  %2223 = vst [vmem:[%s2] sm:$0xf] %v2143
  %2224 = vst [vmem:[%s2 + $0x4] sm:$0xf] %v2144
  %2225 = vst [vmem:[%s2 + $0x8] sm:$0xf] %v2145
  %2226 = vst [vmem:[%s2 + $0xc] sm:$0xf] %v2146
  %2227 = vst [vmem:[%s2 + $0x10] sm:$0xf] %v2147
  %2228 = vst [vmem:[%s2 + $0x14] sm:$0xf] %v2148
  %2229 = vst [vmem:[%s2 + $0x18] sm:$0xf] %v2149
  %2230 = vst [vmem:[%s2 + $0x1c] sm:$0xf] %v2150
  %2231 = vst [vmem:[%s2 + $0x20] sm:$0xf] %v2151
  %2232 = vst [vmem:[%s2 + $0x24] sm:$0xf] %v2152
  %2233 = vst [vmem:[%s2 + $0x28] sm:$0xf] %v2153
  %2234 = vst [vmem:[%s2 + $0x2c] sm:$0xf] %v2154
  %2235 = vst [vmem:[%s2 + $0x30] sm:$0xf] %v2155
  %2236 = vst [vmem:[%s2 + $0x34] sm:$0xf] %v2156
  %2237 = vst [vmem:[%s2 + $0x38] sm:$0xf] %v2157
  %2238 = vst [vmem:[%s2 + $0x3c] sm:$0xf] %v2158
  %2239 = vst [vmem:[%s2 + $0x40] sm:$0xf] %v2159
  %2240 = vst [vmem:[%s2 + $0x44] sm:$0xf] %v2160
  %2241 = vst [vmem:[%s2 + $0x48] sm:$0xf] %v2161
  %2242 = vst [vmem:[%s2 + $0x4c] sm:$0xf] %v2162
  %2243 = vst [vmem:[%s2 + $0x50] sm:$0xf] %v2163
  %2244 = vst [vmem:[%s2 + $0x54] sm:$0xf] %v2164
  %2245 = vst [vmem:[%s2 + $0x58] sm:$0xf] %v2165
  %2246 = vst [vmem:[%s2 + $0x5c] sm:$0xf] %v2166
  %2247 = vst [vmem:[%s2 + $0x60] sm:$0xf] %v2167
  %2248 = vst [vmem:[%s2 + $0x64] sm:$0xf] %v2168
  %2249 = vst [vmem:[%s2 + $0x68] sm:$0xf] %v2169
  %2250 = vst [vmem:[%s2 + $0x6c] sm:$0xf] %v2170
  %2251 = vst [vmem:[%s2 + $0x70] sm:$0xf] %v2171
  %2252 = vst [vmem:[%s2 + $0x74] sm:$0xf] %v2172
  %2253 = vst [vmem:[%s2 + $0x78] sm:$0xf] %v2173
  %2254 = vst [vmem:[%s2 + $0x7c] sm:$0xf] %v2174
  %2255 = vst [vmem:[%s2 + $0x80] sm:$0xf] %v2175
  %2256 = vst [vmem:[%s2 + $0x84] sm:$0xf] %v2176
  %2257 = vst [vmem:[%s2 + $0x88] sm:$0xf] %v2177
  %2258 = vst [vmem:[%s2 + $0x8c] sm:$0xf] %v2178
  %2259 = vst [vmem:[%s2 + $0x90] sm:$0xf] %v2179
  %2260 = vst [vmem:[%s2 + $0x94] sm:$0xf] %v2180
  %2261 = vst [vmem:[%s2 + $0x98] sm:$0xf] %v2181
  %2262 = vst [vmem:[%s2 + $0x9c] sm:$0xf] %v2182
  %2263 = vst [vmem:[%s2 + $0xa0] sm:$0xf] %v2183
  %2264 = vst [vmem:[%s2 + $0xa4] sm:$0xf] %v2184
  %2265 = vst [vmem:[%s2 + $0xa8] sm:$0xf] %v2185
  %2266 = vst [vmem:[%s2 + $0xac] sm:$0xf] %v2186
  %2267 = vst [vmem:[%s2 + $0xb0] sm:$0xf] %v2187
  %2268 = vst [vmem:[%s2 + $0xb4] sm:$0xf] %v2188
  %2269 = vst [vmem:[%s2 + $0xb8] sm:$0xf] %v2189
  %2270 = vst [vmem:[%s2 + $0xbc] sm:$0xf] %v2190
  %2271 = vst [vmem:[%s2 + $0xc0] sm:$0xf] %v2191
  %2272 = vst [vmem:[%s2 + $0xc4] sm:$0xf] %v2192
  %2273 = vst [vmem:[%s2 + $0xc8] sm:$0xf] %v2193
  %2274 = vst [vmem:[%s2 + $0xcc] sm:$0xf] %v2194
  %2275 = vst [vmem:[%s2 + $0xd0] sm:$0xf] %v2195
  %2276 = vst [vmem:[%s2 + $0xd4] sm:$0xf] %v2196
  %2277 = vst [vmem:[%s2 + $0xd8] sm:$0xf] %v2197
  %2278 = vst [vmem:[%s2 + $0xdc] sm:$0xf] %v2198
  %2279 = vst [vmem:[%s2 + $0xe0] sm:$0xf] %v2199
  %2280 = vst [vmem:[%s2 + $0xe4] sm:$0xf] %v2200
  %2281 = vst [vmem:[%s2 + $0xe8] sm:$0xf] %v2201
  %2282 = vst [vmem:[%s2 + $0xec] sm:$0xf] %v2202
  %2283 = vst [vmem:[%s2 + $0xf0] sm:$0xf] %v2203
  %2284 = vst [vmem:[%s2 + $0xf4] sm:$0xf] %v2204
  %2285 = vst [vmem:[%s2 + $0xf8] sm:$0xf] %v2205
  %2286 = vst [vmem:[%s2 + $0xfc] sm:$0xf] %v2206
  %2287 = vst [vmem:[%s2 + $0x100] sm:$0xf] %v2207
  %2288 = vst [vmem:[%s2 + $0x104] sm:$0xf] %v2208
  %2289 = vst [vmem:[%s2 + $0x108] sm:$0xf] %v2209
  %2290 = vst [vmem:[%s2 + $0x10c] sm:$0xf] %v2210
  %2291 = vst [vmem:[%s2 + $0x110] sm:$0xf] %v2211
  %2292 = vst [vmem:[%s2 + $0x114] sm:$0xf] %v2212
  %2293 = vst [vmem:[%s2 + $0x118] sm:$0xf] %v2213
  %2294 = vst [vmem:[%s2 + $0x11c] sm:$0xf] %v2214
  %2295 = vst [vmem:[%s2 + $0x120] sm:$0xf] %v2215
  %2296 = vst [vmem:[%s2 + $0x124] sm:$0xf] %v2216
  %2297 = vst [vmem:[%s2 + $0x128] sm:$0xf] %v2217
  %2298 = vst [vmem:[%s2 + $0x12c] sm:$0xf] %v2218
  %2299 = vst [vmem:[%s2 + $0x130] sm:$0xf] %v2219
  %2300 = vst [vmem:[%s2 + $0x134] sm:$0xf] %v2220
  %2301 = vst [vmem:[%s2 + $0x138] sm:$0xf] %v2221
  %2302 = vst [vmem:[%s2 + $0x13c] sm:$0xf] %v2222
  // Predicated region
  $region10: #{unet3d_forward.34} parent=0 // pred_check
    _
  $region11: #{unet3d_forward.34} parent=0 // pred_check_branch
    %2304 = sbr.rel (0) target = $region13
  $region12: #{unet3d_forward.34} parent=0 // pred_region
    _
  $region13: #{unet3d_forward.34} parent=0 // pred_fallthru
    _
  // Predicated region
  $region14: #{unet3d_forward.34} parent=0 // pred_check
    _
  $region15: #{unet3d_forward.34} parent=0 // pred_check_branch
    %2306 = sbr.rel (0) target = $region17
  $region16: #{unet3d_forward.34} parent=0 // pred_region
    _
  $region17: #{unet3d_forward.34} parent=0 // pred_fallthru
    _

</llo_original>
